<compile_context>
chip_gen: v5e
topology: v5e:2x2
jax: 0.10.0
libtpu: 0.0.40
codegen_flags: <defaults>
</compile_context>

<pallas_src>
import jax
import jax.numpy as jnp
from jax.experimental import pallas as pl
from jax.experimental.pallas import tpu as pltpu

_LANE = 128
_VMEM_LIMIT = 32 * 1024 * 1024  # safe on v5e/v6e (128 MiB) and v7x (64 MiB phys)


def _pick_tile(total, target, unit):
    """Largest multiple of `unit` dividing `total`, at most ~target (>= unit)."""
    t = min(total, max(unit, (target // unit) * unit))
    while total % t != 0:
        t -= unit
    return t


# ----------------------------------------------------------------------------
# Encoder stand-in: 3x3 conv (pad=1) -> ReLU -> global average pool (as matmul)
# ----------------------------------------------------------------------------
def _encoder_kernel(p_ref, w_ref, b_ref, pool_ref, o_ref):
    # p_ref: (rows_per_tile, Kp) bf16   w_ref: (Kp, Dp) bf16   b_ref: (1, Dp) f32
    # pool_ref: (imgs_per_tile, rows_per_tile) bf16    o_ref: (imgs_per_tile, Dp) bf16
    y = jnp.dot(p_ref[...], w_ref[...], preferred_element_type=jnp.float32)
    y = jnp.maximum(y + b_ref[...], 0.0).astype(jnp.bfloat16)      # conv bias + ReLU
    # global average pool as a matmul (block-diagonal 1/HW matrix) -> MXU
    o_ref[...] = jnp.dot(pool_ref[...], y,
                         preferred_element_type=jnp.float32).astype(o_ref.dtype)


def encoder_forward(x_nchw, w_conv, b_conv, *, imgs_per_tile=16):
    """x_nchw: (N, C, H, W) f32 -> (N_img_pad, Dp) bf16 (Dp = Din padded to 128)."""
    N, C, H, W = x_nchw.shape
    Din = w_conv.shape[0]
    HW = H * W
    K = C * 9
    Kp = 32 * pl.cdiv(K, 32)                      # pad contraction 27 -> 32
    Dp = _LANE * pl.cdiv(Din, _LANE)              # lane-dense output features

    # pad N up to a multiple of the image tile (uniform pipelined grid; the
    # padded rows are killed downstream by zero adjacency columns).
    N_img = imgs_per_tile * pl.cdiv(N, imgs_per_tile)
    num_tiles = N_img // imgs_per_tile
    rows_per_tile = imgs_per_tile * HW

    x_pad = jnp.pad(x_nchw, ((0, N_img - N), (0, 0), (0, 0), (0, 0)))

    # im2col (host glue), patch features ordered (c, kh, kw), flattened rows.
    xp = jnp.pad(x_pad, ((0, 0), (0, 0), (1, 1), (1, 1)))
    cols = [xp[:, :, dh:dh + H, dw:dw + W] for dh in range(3) for dw in range(3)]
    patches = jnp.stack(cols, axis=2)                     # (N_img, C, 9, H, W)
    patches = patches.transpose(0, 3, 4, 1, 2).reshape(N_img * HW, K)
    patches = jnp.pad(patches, ((0, 0), (0, Kp - K))).astype(jnp.bfloat16)

    w_mat = w_conv.reshape(Din, K).T                      # (K, Din), (c,kh,kw) order
    w_mat = jnp.pad(w_mat, ((0, Kp - K), (0, Dp - Din))).astype(jnp.bfloat16)
    b_mat = jnp.pad(b_conv, (0, Dp - Din)).reshape(1, Dp).astype(jnp.float32)

    # block-diagonal average-pool matrix: (imgs_per_tile, rows_per_tile)
    pool = jnp.kron(jnp.eye(imgs_per_tile, dtype=jnp.float32),
                    jnp.full((1, HW), 1.0 / HW, jnp.float32)).astype(jnp.bfloat16)

    return pl.pallas_call(
        _encoder_kernel,
        out_shape=jax.ShapeDtypeStruct((N_img, Dp), jnp.bfloat16),
        grid=(num_tiles,),
        in_specs=[
            pl.BlockSpec((rows_per_tile, Kp), lambda i: (i, 0)),
            pl.BlockSpec((Kp, Dp), lambda i: (0, 0)),
            pl.BlockSpec((1, Dp), lambda i: (0, 0)),
            pl.BlockSpec((imgs_per_tile, rows_per_tile), lambda i: (0, 0)),
        ],
        out_specs=pl.BlockSpec((imgs_per_tile, Dp), lambda i: (i, 0)),
        compiler_params=pltpu.CompilerParams(dimension_semantics=("parallel",)),
    )(patches, w_mat, b_mat, pool)


# ----------------------------------------------------------------------------
# Support matmul: S_stacked[r*Np:(r+1)*Np, :] = X @ W_r   (bf16, lane-dense)
# ----------------------------------------------------------------------------
def _support_kernel(x_ref, w_ref, o_ref):
    o_ref[...] = jnp.dot(x_ref[...], w_ref[...],
                         preferred_element_type=jnp.float32).astype(o_ref.dtype)


def support_matmul(x, w_cat, n_blocks, N_p, Din_p, Dout_p):
    tn = _pick_tile(N_p, 256, _LANE)
    nj = N_p // tn
    return pl.pallas_call(
        _support_kernel,
        out_shape=jax.ShapeDtypeStruct((n_blocks * N_p, Dout_p), jnp.bfloat16),
        grid=(n_blocks, nj),
        in_specs=[
            pl.BlockSpec((tn, Din_p), lambda r, j: (j, 0)),
            pl.BlockSpec((Din_p, Dout_p), lambda r, j: (0, r)),
        ],
        out_specs=pl.BlockSpec((tn, Dout_p), lambda r, j: (r * nj + j, 0)),
        compiler_params=pltpu.CompilerParams(
            dimension_semantics=("parallel", "parallel"),
            vmem_limit_bytes=_VMEM_LIMIT),
    )(x, w_cat)


# ----------------------------------------------------------------------------
# Aggregation matmul: fea = A_aug @ S_stacked + b_total (tiled, f32 accumulator)
# ----------------------------------------------------------------------------
def _agg_kernel(a_ref, s_ref, b_ref, o_ref, acc_ref):
    @pl.when(pl.program_id(1) == 0)
    def _():
        acc_ref[...] = jnp.zeros_like(acc_ref)

    acc_ref[...] += jnp.dot(a_ref[...], s_ref[...],
                            preferred_element_type=jnp.float32)

    @pl.when(pl.program_id(1) == pl.num_programs(1) - 1)
    def _():
        o_ref[...] = (acc_ref[...] + b_ref[...]).astype(o_ref.dtype)


def aggregate_matmul(a_aug, s_stacked, b_total, M_p, Dout_p):
    K_a = a_aug.shape[1]
    tm = _pick_tile(M_p, 128, 16)
    tk = _pick_tile(K_a, 512, _LANE)
    return pl.pallas_call(
        _agg_kernel,
        out_shape=jax.ShapeDtypeStruct((M_p, Dout_p), jnp.float32),
        grid=(M_p // tm, K_a // tk),
        in_specs=[
            pl.BlockSpec((tm, tk), lambda i, kk: (i, kk)),
            pl.BlockSpec((tk, Dout_p), lambda i, kk: (kk, 0)),
            pl.BlockSpec((1, Dout_p), lambda i, kk: (0, 0)),
        ],
        out_specs=pl.BlockSpec((tm, Dout_p), lambda i, kk: (i, 0)),
        scratch_shapes=[pltpu.VMEM((tm, Dout_p), jnp.float32)],
        compiler_params=pltpu.CompilerParams(
            dimension_semantics=("parallel", "arbitrary"),
            vmem_limit_bytes=_VMEM_LIMIT),
    )(a_aug, s_stacked, b_total)


# ----------------------------------------------------------------------------
# MRGCN forward (share_encoder='partly')
# ----------------------------------------------------------------------------
def mrgcn_forward(images, k, adj_mats, relations, params, selfweight=1.0):
    k = int(k)
    N = images.shape[0]
    M = N - k
    R = len(relations)
    Din = params["conv_w"].shape[0]
    Dout = params["w_self"].shape[1]

    # encoder -> bf16 lane-dense features (rows padded up to the image tile)
    x = encoder_forward(images, params["conv_w"], params["conv_b"])   # (N_img, Din_p) bf16
    Din_p = x.shape[1]

    # padded sizes: N to a 128-lane multiple (contraction packing), M to 16 rows
    Dout_p = _LANE * pl.cdiv(Dout, _LANE)
    N_p = _LANE * pl.cdiv(N, _LANE)
    M_p = 16 * pl.cdiv(M, 16)
    x = jnp.pad(x, ((0, N_p - x.shape[0]), (0, 0)))                    # (N_p, Din_p) bf16

    # W_cat: (Din_p, (R+1)*Dout_p), r-major; last block = selfweight * W_self
    def _pad_w(w):
        return jnp.pad(w, ((0, Din_p - w.shape[0]), (0, Dout_p - w.shape[1])))
    w_blocks = [_pad_w(params["w"][r]) for r in relations] + \
               [selfweight * _pad_w(params["w_self"])]
    W_cat = jnp.concatenate(w_blocks, axis=1).astype(jnp.bfloat16)

    # support: S_stacked ((R+1)*N_p, Dout_p) bf16, no in-kernel concat/cast
    S = support_matmul(x, W_cat, R + 1, N_p, Din_p, Dout_p)

    # A_aug = [A_r0 | ... | A_r(R-1) | E], E selects rows k: of the self support
    def _pad_a(a):
        return jnp.pad(a, ((0, M_p - M), (0, N_p - N)))
    E = jnp.eye(M_p, N_p, k, dtype=jnp.float32)
    A_aug = jnp.concatenate([_pad_a(adj_mats[r]) for r in relations] + [E],
                            axis=1).astype(jnp.bfloat16)              # (M_p, (R+1)*N_p)

    b_total = params["b_self"] + sum(params["b"][r] for r in relations)
    b_total = jnp.pad(b_total, (0, Dout_p - Dout)).reshape(1, Dout_p).astype(jnp.float32)

    out = aggregate_matmul(A_aug, S, b_total, M_p, Dout_p)             # (M_p, Dout_p) f32
    return out[:M, :Dout]


# ----------------------------------------------------------------------------
# Plain-JAX f32 reference (same math) for a smoke-test comparison.
# ----------------------------------------------------------------------------
def _reference_forward(images, k, adj_mats, relations, params, selfweight):
    N, C, H, W = images.shape
    D = params["conv_w"].shape[0]
    xp = jnp.pad(images, ((0, 0), (0, 0), (1, 1), (1, 1)))
    cols = [xp[:, :, dh:dh + H, dw:dw + W] for dh in range(3) for dw in range(3)]
    patches = jnp.stack(cols, axis=2).transpose(0, 3, 4, 1, 2).reshape(N, H * W, C * 9)
    y = jnp.maximum(patches @ params["conv_w"].reshape(D, C * 9).T
                    + params["conv_b"], 0.0)
    feat = jnp.mean(y, axis=1)                                          # (N, D)
    fea = selfweight * (feat[k:] @ params["w_self"]) + params["b_self"]
    for r in relations:
        fea = fea + adj_mats[r] @ (feat @ params["w"][r]) + params["b"][r]
    return fea


# ----------------------------------------------------------------------------
if __name__ == "__main__":
    key = jax.random.PRNGKey(0)
    keys = jax.random.split(key, 8)

    # small shapes: 16 region images, inchannel=3, 16x16 spatial, k=4 query nodes
    N, C, H, W = 16, 3, 16, 16
    Din, Dout = 32, 32
    k = 4
    relations = ["r0", "r1"]

    images = jax.random.normal(keys[0], (N, C, H, W), jnp.float32)
    adj_mats = {
        "r0": jax.random.uniform(keys[1], (N - k, N), jnp.float32),
        "r1": jax.random.uniform(keys[2], (N - k, N), jnp.float32),
    }

    # deterministic synthetic parameters (shapes from __init__ semantics)
    params = {
        "conv_w": 0.1 * jax.random.normal(keys[3], (Din, C, 3, 3), jnp.float32),
        "conv_b": jnp.zeros((Din,), jnp.float32),
        "w_self": 0.1 * jax.random.normal(keys[4], (Din, Dout), jnp.float32),
        "b_self": 0.01 * jnp.ones((Dout,), jnp.float32),
        "w": {
            "r0": 0.1 * jax.random.normal(keys[5], (Din, Dout), jnp.float32),
            "r1": 0.1 * jax.random.normal(keys[6], (Din, Dout), jnp.float32),
        },
        "b": {
            "r0": jnp.zeros((Dout,), jnp.float32),
            "r1": jnp.zeros((Dout,), jnp.float32),
        },
    }

    out = mrgcn_forward(images, k, adj_mats, relations, params, selfweight=1.0)
    out = jax.block_until_ready(out)
    assert out.shape == (N - k, Dout)

    ref = _reference_forward(images, k, adj_mats, relations, params, 1.0)
    max_err = float(jnp.max(jnp.abs(out - ref)))
    assert max_err < 1e-1, f"max abs err vs f32 reference: {max_err}"

    print("KERNEL_OK")
</pallas_src>

<mosaic_0001>
module attributes {stable_mosaic.version = 11 : i64} {
  func.func @_encoder_kernel(%arg0: i32, %arg1: memref<4096x32xbf16, #tpu.memory_space<vmem>>, %arg2: memref<32x128xbf16, #tpu.memory_space<vmem>>, %arg3: memref<1x128xf32, #tpu.memory_space<vmem>>, %arg4: memref<16x4096xbf16, #tpu.memory_space<vmem>>, %arg5: memref<16x128xbf16, #tpu.memory_space<vmem>>) attributes {dimension_semantics = [#tpu.dimension_semantics<parallel>], iteration_bounds = array<i64: 1>, scalar_prefetch = 0 : i64, scratch_operands = 0 : i64, tpu.core_type = #tpu.core_type<tc>, window_params = [{transform_indices = @transform_0, window_bounds = array<i64: 4096, 32>}, {pipeline_mode = #tpu.pipeline_mode<synchronous>, transform_indices = @transform_1, window_bounds = array<i64: 32, 128>}, {pipeline_mode = #tpu.pipeline_mode<synchronous>, transform_indices = @transform_2, window_bounds = array<i64: 1, 128>}, {pipeline_mode = #tpu.pipeline_mode<synchronous>, transform_indices = @transform_3, window_bounds = array<i64: 16, 4096>}, {transform_indices = @transform_4, window_bounds = array<i64: 16, 128>}]} {
    %c0 = arith.constant 0 : index
    %c0_0 = arith.constant 0 : index
    %0 = vector.load %arg1[%c0, %c0_0] : memref<4096x32xbf16, #tpu.memory_space<vmem>>, vector<4096x32xbf16>
    %c0_1 = arith.constant 0 : index
    %c0_2 = arith.constant 0 : index
    %1 = vector.load %arg2[%c0_1, %c0_2] : memref<32x128xbf16, #tpu.memory_space<vmem>>, vector<32x128xbf16>
    %cst = arith.constant dense<0.000000e+00> : vector<4096x128xf32>
    %2 = tpu.matmul %0, %1, %cst {dimension_numbers = #tpu.dot_dimension_numbers<[1], [0], [0], [1], [0, 0, 1, 1], [], []>} : vector<4096x32xbf16>, vector<32x128xbf16>, vector<4096x128xf32> -> vector<4096x128xf32>
    %c0_3 = arith.constant 0 : index
    %c0_4 = arith.constant 0 : index
    %3 = vector.load %arg3[%c0_3, %c0_4] : memref<1x128xf32, #tpu.memory_space<vmem>>, vector<1x128xf32>
    %4 = vector.broadcast %3 : vector<1x128xf32> to vector<4096x128xf32>
    %5 = arith.addf %2, %4 : vector<4096x128xf32>
    %cst_5 = arith.constant 0.000000e+00 : f32
    %6 = vector.broadcast %cst_5 : f32 to vector<4096x128xf32>
    %7 = arith.maximumf %5, %6 : vector<4096x128xf32>
    %8 = arith.truncf %7 : vector<4096x128xf32> to vector<4096x128xbf16>
    %c0_6 = arith.constant 0 : index
    %c0_7 = arith.constant 0 : index
    %9 = vector.load %arg4[%c0_6, %c0_7] : memref<16x4096xbf16, #tpu.memory_space<vmem>>, vector<16x4096xbf16>
    %cst_8 = arith.constant dense<0.000000e+00> : vector<16x128xf32>
    %10 = tpu.matmul %9, %8, %cst_8 {dimension_numbers = #tpu.dot_dimension_numbers<[1], [0], [0], [1], [0, 0, 1, 1], [], []>} : vector<16x4096xbf16>, vector<4096x128xbf16>, vector<16x128xf32> -> vector<16x128xf32>
    %11 = arith.truncf %10 : vector<16x128xf32> to vector<16x128xbf16>
    %c0_9 = arith.constant 0 : index
    %c0_10 = arith.constant 0 : index
    %12 = vector.load %arg5[%c0_9, %c0_10] : memref<16x128xbf16, #tpu.memory_space<vmem>>, vector<16x128xbf16>
    tpu.vector_store %arg5[%c0_9, %c0_10], %11 {strides = array<i32>} : memref<16x128xbf16, #tpu.memory_space<vmem>>, vector<16x128xbf16>,
    return
  }
  func.func @transform_0(%arg0: i32) -> (i32, i32) {
    %c0_i32 = arith.constant 0 : i32
    %c0_i32_0 = arith.constant 0 : i32
    return %arg0, %c0_i32 : i32, i32
  }
  func.func @transform_1(%arg0: i32) -> (i32, i32) {
    %c0_i32 = arith.constant 0 : i32
    %c0_i32_0 = arith.constant 0 : i32
    %c0_i32_1 = arith.constant 0 : i32
    return %c0_i32, %c0_i32_0 : i32, i32
  }
  func.func @transform_2(%arg0: i32) -> (i32, i32) {
    %c0_i32 = arith.constant 0 : i32
    %c0_i32_0 = arith.constant 0 : i32
    %c0_i32_1 = arith.constant 0 : i32
    return %c0_i32, %c0_i32_0 : i32, i32
  }
  func.func @transform_3(%arg0: i32) -> (i32, i32) {
    %c0_i32 = arith.constant 0 : i32
    %c0_i32_0 = arith.constant 0 : i32
    %c0_i32_1 = arith.constant 0 : i32
    return %c0_i32, %c0_i32_0 : i32, i32
  }
  func.func @transform_4(%arg0: i32) -> (i32, i32) {
    %c0_i32 = arith.constant 0 : i32
    %c0_i32_0 = arith.constant 0 : i32
    return %arg0, %c0_i32 : i32, i32
  }
}

</mosaic_0001>

<llo_original>
// kernel: tpu_custom_call.1
$region0: #{tpu_custom_call.1}
  #allocation0 [shape = 'u32[]', space=smem, size = 0x4, offset = 0x4, fixed_abs, tag = 'smem constant byte address 0x4 - core index']
  #allocation1 [shape = 'u32[72,128]{1,0:T(1,128)}', space=vmem, size = 0x9000, scoped, tag = 'internal scratch']
  %s0 = inlined_call_operand.vmem [shape: bf16[4096,32], index: 0, kind: input, shape index: {}]
  %s1 = inlined_call_operand.vmem [shape: bf16[32,128], index: 1, kind: input, shape index: {}]
  %s2 = inlined_call_operand.vmem [shape: f32[1,128], index: 2, kind: input, shape index: {}]
  %s3 = inlined_call_operand.vmem [shape: bf16[16,4096], index: 3, kind: input, shape index: {}]
  %s4 = inlined_call_operand.hbm [shape: bf16[16,128], index: 4, kind: output, shape index: {}]
  %s5 = sld [smem:[#allocation0]]
  $region26: #{tpu_custom_call.1} parent=0
    _
  %s7 = ssub.s32 1, %s5
  %s8 = scalar_select 0, %s7, %s5
  $region1: #{tpu_custom_call.1} parent=0
    #allocation2 [shape = 'u8[4096]{0}', space=vmem, size = 0x1000, scoped, tag = 'output window, operand 0, single buffered']
    #allocation3 [shape = 's32[1]{0}', space=sflag, size = 0x4, scoped, tag = 'scoped memory for tpu_custom_call.1']
    %9 = vsyncpa [#allocation3], 0
    // Predicated region
    $region2: #{tpu_custom_call.1} parent=1 // pred_check
      _
    $region3: #{tpu_custom_call.1} parent=1 // pred_check_branch
      %11 = sbr.rel (0) target = $region5
    $region4: #{tpu_custom_call.1} parent=1 // pred_region
      _
    $region5: #{tpu_custom_call.1} parent=1 // pred_fallthru
      _
    // Predicated region
    $region6: #{tpu_custom_call.1} parent=1 // pred_check
      _
    $region7: #{tpu_custom_call.1} parent=1 // pred_check_branch
      %13 = sbr.rel (0) target = $region9
    $region8: #{tpu_custom_call.1} parent=1 // pred_region
      _
    $region9: #{tpu_custom_call.1} parent=1 // pred_fallthru
      _
    // Predicated region
    $region10: #{tpu_custom_call.1} parent=1 // pred_check
      _
    $region11: #{tpu_custom_call.1} parent=1 // pred_check_branch
      %15 = sbr.rel (0) target = $region13
    $region12: #{tpu_custom_call.1} parent=1 // pred_region
      _
    $region13: #{tpu_custom_call.1} parent=1 // pred_fallthru
      _
    // Predicated region
    $region14: #{tpu_custom_call.1} parent=1 // pred_check
      _
    $region15: #{tpu_custom_call.1} parent=1 // pred_check_branch
      %17 = sbr.rel (0) target = $region17
    $region16: #{tpu_custom_call.1} parent=1 // pred_region
      _
    $region17: #{tpu_custom_call.1} parent=1 // pred_fallthru
      _
    %v19 = vld [vmem:[%s0] sm:$0xf]
    %v20 = vld [vmem:[%s0 + $0x4] sm:$0xf]
    %v21 = vld [vmem:[%s0 + $0x8] sm:$0xf]
    %v22 = vld [vmem:[%s0 + $0xc] sm:$0xf]
    %v23 = vld [vmem:[%s0 + $0x10] sm:$0xf]
    %v24 = vld [vmem:[%s0 + $0x14] sm:$0xf]
    %v25 = vld [vmem:[%s0 + $0x18] sm:$0xf]
    %v26 = vld [vmem:[%s0 + $0x1c] sm:$0xf]
    %v27 = vld [vmem:[%s0 + $0x20] sm:$0xf]
    %v28 = vld [vmem:[%s0 + $0x24] sm:$0xf]
    %v29 = vld [vmem:[%s0 + $0x28] sm:$0xf]
    %v30 = vld [vmem:[%s0 + $0x2c] sm:$0xf]
    %v31 = vld [vmem:[%s0 + $0x30] sm:$0xf]
    %v32 = vld [vmem:[%s0 + $0x34] sm:$0xf]
    %v33 = vld [vmem:[%s0 + $0x38] sm:$0xf]
    %v34 = vld [vmem:[%s0 + $0x3c] sm:$0xf]
    %v35 = vld [vmem:[%s0 + $0x40] sm:$0xf]
    %v36 = vld [vmem:[%s0 + $0x44] sm:$0xf]
    %v37 = vld [vmem:[%s0 + $0x48] sm:$0xf]
    %v38 = vld [vmem:[%s0 + $0x4c] sm:$0xf]
    %v39 = vld [vmem:[%s0 + $0x50] sm:$0xf]
    %v40 = vld [vmem:[%s0 + $0x54] sm:$0xf]
    %v41 = vld [vmem:[%s0 + $0x58] sm:$0xf]
    %v42 = vld [vmem:[%s0 + $0x5c] sm:$0xf]
    %v43 = vld [vmem:[%s0 + $0x60] sm:$0xf]
    %v44 = vld [vmem:[%s0 + $0x64] sm:$0xf]
    %v45 = vld [vmem:[%s0 + $0x68] sm:$0xf]
    %v46 = vld [vmem:[%s0 + $0x6c] sm:$0xf]
    %v47 = vld [vmem:[%s0 + $0x70] sm:$0xf]
    %v48 = vld [vmem:[%s0 + $0x74] sm:$0xf]
    %v49 = vld [vmem:[%s0 + $0x78] sm:$0xf]
    %v50 = vld [vmem:[%s0 + $0x7c] sm:$0xf]
    %v51 = vld [vmem:[%s0 + $0x80] sm:$0xf]
    %v52 = vld [vmem:[%s0 + $0x84] sm:$0xf]
    %v53 = vld [vmem:[%s0 + $0x88] sm:$0xf]
    %v54 = vld [vmem:[%s0 + $0x8c] sm:$0xf]
    %v55 = vld [vmem:[%s0 + $0x90] sm:$0xf]
    %v56 = vld [vmem:[%s0 + $0x94] sm:$0xf]
    %v57 = vld [vmem:[%s0 + $0x98] sm:$0xf]
    %v58 = vld [vmem:[%s0 + $0x9c] sm:$0xf]
    %v59 = vld [vmem:[%s0 + $0xa0] sm:$0xf]
    %v60 = vld [vmem:[%s0 + $0xa4] sm:$0xf]
    %v61 = vld [vmem:[%s0 + $0xa8] sm:$0xf]
    %v62 = vld [vmem:[%s0 + $0xac] sm:$0xf]
    %v63 = vld [vmem:[%s0 + $0xb0] sm:$0xf]
    %v64 = vld [vmem:[%s0 + $0xb4] sm:$0xf]
    %v65 = vld [vmem:[%s0 + $0xb8] sm:$0xf]
    %v66 = vld [vmem:[%s0 + $0xbc] sm:$0xf]
    %v67 = vld [vmem:[%s0 + $0xc0] sm:$0xf]
    %v68 = vld [vmem:[%s0 + $0xc4] sm:$0xf]
    %v69 = vld [vmem:[%s0 + $0xc8] sm:$0xf]
    %v70 = vld [vmem:[%s0 + $0xcc] sm:$0xf]
    %v71 = vld [vmem:[%s0 + $0xd0] sm:$0xf]
    %v72 = vld [vmem:[%s0 + $0xd4] sm:$0xf]
    %v73 = vld [vmem:[%s0 + $0xd8] sm:$0xf]
    %v74 = vld [vmem:[%s0 + $0xdc] sm:$0xf]
    %v75 = vld [vmem:[%s0 + $0xe0] sm:$0xf]
    %v76 = vld [vmem:[%s0 + $0xe4] sm:$0xf]
    %v77 = vld [vmem:[%s0 + $0xe8] sm:$0xf]
    %v78 = vld [vmem:[%s0 + $0xec] sm:$0xf]
    %v79 = vld [vmem:[%s0 + $0xf0] sm:$0xf]
    %v80 = vld [vmem:[%s0 + $0xf4] sm:$0xf]
    %v81 = vld [vmem:[%s0 + $0xf8] sm:$0xf]
    %v82 = vld [vmem:[%s0 + $0xfc] sm:$0xf]
    %v83 = vld [vmem:[%s0 + $0x100] sm:$0xf]
    %v84 = vld [vmem:[%s0 + $0x104] sm:$0xf]
    %v85 = vld [vmem:[%s0 + $0x108] sm:$0xf]
    %v86 = vld [vmem:[%s0 + $0x10c] sm:$0xf]
    %v87 = vld [vmem:[%s0 + $0x110] sm:$0xf]
    %v88 = vld [vmem:[%s0 + $0x114] sm:$0xf]
    %v89 = vld [vmem:[%s0 + $0x118] sm:$0xf]
    %v90 = vld [vmem:[%s0 + $0x11c] sm:$0xf]
    %v91 = vld [vmem:[%s0 + $0x120] sm:$0xf]
    %v92 = vld [vmem:[%s0 + $0x124] sm:$0xf]
    %v93 = vld [vmem:[%s0 + $0x128] sm:$0xf]
    %v94 = vld [vmem:[%s0 + $0x12c] sm:$0xf]
    %v95 = vld [vmem:[%s0 + $0x130] sm:$0xf]
    %v96 = vld [vmem:[%s0 + $0x134] sm:$0xf]
    %v97 = vld [vmem:[%s0 + $0x138] sm:$0xf]
    %v98 = vld [vmem:[%s0 + $0x13c] sm:$0xf]
    %v99 = vld [vmem:[%s0 + $0x140] sm:$0xf]
    %v100 = vld [vmem:[%s0 + $0x144] sm:$0xf]
    %v101 = vld [vmem:[%s0 + $0x148] sm:$0xf]
    %v102 = vld [vmem:[%s0 + $0x14c] sm:$0xf]
    %v103 = vld [vmem:[%s0 + $0x150] sm:$0xf]
    %v104 = vld [vmem:[%s0 + $0x154] sm:$0xf]
    %v105 = vld [vmem:[%s0 + $0x158] sm:$0xf]
    %v106 = vld [vmem:[%s0 + $0x15c] sm:$0xf]
    %v107 = vld [vmem:[%s0 + $0x160] sm:$0xf]
    %v108 = vld [vmem:[%s0 + $0x164] sm:$0xf]
    %v109 = vld [vmem:[%s0 + $0x168] sm:$0xf]
    %v110 = vld [vmem:[%s0 + $0x16c] sm:$0xf]
    %v111 = vld [vmem:[%s0 + $0x170] sm:$0xf]
    %v112 = vld [vmem:[%s0 + $0x174] sm:$0xf]
    %v113 = vld [vmem:[%s0 + $0x178] sm:$0xf]
    %v114 = vld [vmem:[%s0 + $0x17c] sm:$0xf]
    %v115 = vld [vmem:[%s0 + $0x180] sm:$0xf]
    %v116 = vld [vmem:[%s0 + $0x184] sm:$0xf]
    %v117 = vld [vmem:[%s0 + $0x188] sm:$0xf]
    %v118 = vld [vmem:[%s0 + $0x18c] sm:$0xf]
    %v119 = vld [vmem:[%s0 + $0x190] sm:$0xf]
    %v120 = vld [vmem:[%s0 + $0x194] sm:$0xf]
    %v121 = vld [vmem:[%s0 + $0x198] sm:$0xf]
    %v122 = vld [vmem:[%s0 + $0x19c] sm:$0xf]
    %v123 = vld [vmem:[%s0 + $0x1a0] sm:$0xf]
    %v124 = vld [vmem:[%s0 + $0x1a4] sm:$0xf]
    %v125 = vld [vmem:[%s0 + $0x1a8] sm:$0xf]
    %v126 = vld [vmem:[%s0 + $0x1ac] sm:$0xf]
    %v127 = vld [vmem:[%s0 + $0x1b0] sm:$0xf]
    %v128 = vld [vmem:[%s0 + $0x1b4] sm:$0xf]
    %v129 = vld [vmem:[%s0 + $0x1b8] sm:$0xf]
    %v130 = vld [vmem:[%s0 + $0x1bc] sm:$0xf]
    %v131 = vld [vmem:[%s0 + $0x1c0] sm:$0xf]
    %v132 = vld [vmem:[%s0 + $0x1c4] sm:$0xf]
    %v133 = vld [vmem:[%s0 + $0x1c8] sm:$0xf]
    %v134 = vld [vmem:[%s0 + $0x1cc] sm:$0xf]
    %v135 = vld [vmem:[%s0 + $0x1d0] sm:$0xf]
    %v136 = vld [vmem:[%s0 + $0x1d4] sm:$0xf]
    %v137 = vld [vmem:[%s0 + $0x1d8] sm:$0xf]
    %v138 = vld [vmem:[%s0 + $0x1dc] sm:$0xf]
    %v139 = vld [vmem:[%s0 + $0x1e0] sm:$0xf]
    %v140 = vld [vmem:[%s0 + $0x1e4] sm:$0xf]
    %v141 = vld [vmem:[%s0 + $0x1e8] sm:$0xf]
    %v142 = vld [vmem:[%s0 + $0x1ec] sm:$0xf]
    %v143 = vld [vmem:[%s0 + $0x1f0] sm:$0xf]
    %v144 = vld [vmem:[%s0 + $0x1f4] sm:$0xf]
    %v145 = vld [vmem:[%s0 + $0x1f8] sm:$0xf]
    %v146 = vld [vmem:[%s0 + $0x1fc] sm:$0xf]
    %v147 = vld [vmem:[%s0 + $0x200] sm:$0xf]
    %v148 = vld [vmem:[%s0 + $0x204] sm:$0xf]
    %v149 = vld [vmem:[%s0 + $0x208] sm:$0xf]
    %v150 = vld [vmem:[%s0 + $0x20c] sm:$0xf]
    %v151 = vld [vmem:[%s0 + $0x210] sm:$0xf]
    %v152 = vld [vmem:[%s0 + $0x214] sm:$0xf]
    %v153 = vld [vmem:[%s0 + $0x218] sm:$0xf]
    %v154 = vld [vmem:[%s0 + $0x21c] sm:$0xf]
    %v155 = vld [vmem:[%s0 + $0x220] sm:$0xf]
    %v156 = vld [vmem:[%s0 + $0x224] sm:$0xf]
    %v157 = vld [vmem:[%s0 + $0x228] sm:$0xf]
    %v158 = vld [vmem:[%s0 + $0x22c] sm:$0xf]
    %v159 = vld [vmem:[%s0 + $0x230] sm:$0xf]
    %v160 = vld [vmem:[%s0 + $0x234] sm:$0xf]
    %v161 = vld [vmem:[%s0 + $0x238] sm:$0xf]
    %v162 = vld [vmem:[%s0 + $0x23c] sm:$0xf]
    %v163 = vld [vmem:[%s0 + $0x240] sm:$0xf]
    %v164 = vld [vmem:[%s0 + $0x244] sm:$0xf]
    %v165 = vld [vmem:[%s0 + $0x248] sm:$0xf]
    %v166 = vld [vmem:[%s0 + $0x24c] sm:$0xf]
    %v167 = vld [vmem:[%s0 + $0x250] sm:$0xf]
    %v168 = vld [vmem:[%s0 + $0x254] sm:$0xf]
    %v169 = vld [vmem:[%s0 + $0x258] sm:$0xf]
    %v170 = vld [vmem:[%s0 + $0x25c] sm:$0xf]
    %v171 = vld [vmem:[%s0 + $0x260] sm:$0xf]
    %v172 = vld [vmem:[%s0 + $0x264] sm:$0xf]
    %v173 = vld [vmem:[%s0 + $0x268] sm:$0xf]
    %v174 = vld [vmem:[%s0 + $0x26c] sm:$0xf]
    %v175 = vld [vmem:[%s0 + $0x270] sm:$0xf]
    %v176 = vld [vmem:[%s0 + $0x274] sm:$0xf]
    %v177 = vld [vmem:[%s0 + $0x278] sm:$0xf]
    %v178 = vld [vmem:[%s0 + $0x27c] sm:$0xf]
    %v179 = vld [vmem:[%s0 + $0x280] sm:$0xf]
    %v180 = vld [vmem:[%s0 + $0x284] sm:$0xf]
    %v181 = vld [vmem:[%s0 + $0x288] sm:$0xf]
    %v182 = vld [vmem:[%s0 + $0x28c] sm:$0xf]
    %v183 = vld [vmem:[%s0 + $0x290] sm:$0xf]
    %v184 = vld [vmem:[%s0 + $0x294] sm:$0xf]
    %v185 = vld [vmem:[%s0 + $0x298] sm:$0xf]
    %v186 = vld [vmem:[%s0 + $0x29c] sm:$0xf]
    %v187 = vld [vmem:[%s0 + $0x2a0] sm:$0xf]
    %v188 = vld [vmem:[%s0 + $0x2a4] sm:$0xf]
    %v189 = vld [vmem:[%s0 + $0x2a8] sm:$0xf]
    %v190 = vld [vmem:[%s0 + $0x2ac] sm:$0xf]
    %v191 = vld [vmem:[%s0 + $0x2b0] sm:$0xf]
    %v192 = vld [vmem:[%s0 + $0x2b4] sm:$0xf]
    %v193 = vld [vmem:[%s0 + $0x2b8] sm:$0xf]
    %v194 = vld [vmem:[%s0 + $0x2bc] sm:$0xf]
    %v195 = vld [vmem:[%s0 + $0x2c0] sm:$0xf]
    %v196 = vld [vmem:[%s0 + $0x2c4] sm:$0xf]
    %v197 = vld [vmem:[%s0 + $0x2c8] sm:$0xf]
    %v198 = vld [vmem:[%s0 + $0x2cc] sm:$0xf]
    %v199 = vld [vmem:[%s0 + $0x2d0] sm:$0xf]
    %v200 = vld [vmem:[%s0 + $0x2d4] sm:$0xf]
    %v201 = vld [vmem:[%s0 + $0x2d8] sm:$0xf]
    %v202 = vld [vmem:[%s0 + $0x2dc] sm:$0xf]
    %v203 = vld [vmem:[%s0 + $0x2e0] sm:$0xf]
    %v204 = vld [vmem:[%s0 + $0x2e4] sm:$0xf]
    %v205 = vld [vmem:[%s0 + $0x2e8] sm:$0xf]
    %v206 = vld [vmem:[%s0 + $0x2ec] sm:$0xf]
    %v207 = vld [vmem:[%s0 + $0x2f0] sm:$0xf]
    %v208 = vld [vmem:[%s0 + $0x2f4] sm:$0xf]
    %v209 = vld [vmem:[%s0 + $0x2f8] sm:$0xf]
    %v210 = vld [vmem:[%s0 + $0x2fc] sm:$0xf]
    %v211 = vld [vmem:[%s0 + $0x300] sm:$0xf]
    %v212 = vld [vmem:[%s0 + $0x304] sm:$0xf]
    %v213 = vld [vmem:[%s0 + $0x308] sm:$0xf]
    %v214 = vld [vmem:[%s0 + $0x30c] sm:$0xf]
    %v215 = vld [vmem:[%s0 + $0x310] sm:$0xf]
    %v216 = vld [vmem:[%s0 + $0x314] sm:$0xf]
    %v217 = vld [vmem:[%s0 + $0x318] sm:$0xf]
    %v218 = vld [vmem:[%s0 + $0x31c] sm:$0xf]
    %v219 = vld [vmem:[%s0 + $0x320] sm:$0xf]
    %v220 = vld [vmem:[%s0 + $0x324] sm:$0xf]
    %v221 = vld [vmem:[%s0 + $0x328] sm:$0xf]
    %v222 = vld [vmem:[%s0 + $0x32c] sm:$0xf]
    %v223 = vld [vmem:[%s0 + $0x330] sm:$0xf]
    %v224 = vld [vmem:[%s0 + $0x334] sm:$0xf]
    %v225 = vld [vmem:[%s0 + $0x338] sm:$0xf]
    %v226 = vld [vmem:[%s0 + $0x33c] sm:$0xf]
    %v227 = vld [vmem:[%s0 + $0x340] sm:$0xf]
    %v228 = vld [vmem:[%s0 + $0x344] sm:$0xf]
    %v229 = vld [vmem:[%s0 + $0x348] sm:$0xf]
    %v230 = vld [vmem:[%s0 + $0x34c] sm:$0xf]
    %v231 = vld [vmem:[%s0 + $0x350] sm:$0xf]
    %v232 = vld [vmem:[%s0 + $0x354] sm:$0xf]
    %v233 = vld [vmem:[%s0 + $0x358] sm:$0xf]
    %v234 = vld [vmem:[%s0 + $0x35c] sm:$0xf]
    %v235 = vld [vmem:[%s0 + $0x360] sm:$0xf]
    %v236 = vld [vmem:[%s0 + $0x364] sm:$0xf]
    %v237 = vld [vmem:[%s0 + $0x368] sm:$0xf]
    %v238 = vld [vmem:[%s0 + $0x36c] sm:$0xf]
    %v239 = vld [vmem:[%s0 + $0x370] sm:$0xf]
    %v240 = vld [vmem:[%s0 + $0x374] sm:$0xf]
    %v241 = vld [vmem:[%s0 + $0x378] sm:$0xf]
    %v242 = vld [vmem:[%s0 + $0x37c] sm:$0xf]
    %v243 = vld [vmem:[%s0 + $0x380] sm:$0xf]
    %v244 = vld [vmem:[%s0 + $0x384] sm:$0xf]
    %v245 = vld [vmem:[%s0 + $0x388] sm:$0xf]
    %v246 = vld [vmem:[%s0 + $0x38c] sm:$0xf]
    %v247 = vld [vmem:[%s0 + $0x390] sm:$0xf]
    %v248 = vld [vmem:[%s0 + $0x394] sm:$0xf]
    %v249 = vld [vmem:[%s0 + $0x398] sm:$0xf]
    %v250 = vld [vmem:[%s0 + $0x39c] sm:$0xf]
    %v251 = vld [vmem:[%s0 + $0x3a0] sm:$0xf]
    %v252 = vld [vmem:[%s0 + $0x3a4] sm:$0xf]
    %v253 = vld [vmem:[%s0 + $0x3a8] sm:$0xf]
    %v254 = vld [vmem:[%s0 + $0x3ac] sm:$0xf]
    %v255 = vld [vmem:[%s0 + $0x3b0] sm:$0xf]
    %v256 = vld [vmem:[%s0 + $0x3b4] sm:$0xf]
    %v257 = vld [vmem:[%s0 + $0x3b8] sm:$0xf]
    %v258 = vld [vmem:[%s0 + $0x3bc] sm:$0xf]
    %v259 = vld [vmem:[%s0 + $0x3c0] sm:$0xf]
    %v260 = vld [vmem:[%s0 + $0x3c4] sm:$0xf]
    %v261 = vld [vmem:[%s0 + $0x3c8] sm:$0xf]
    %v262 = vld [vmem:[%s0 + $0x3cc] sm:$0xf]
    %v263 = vld [vmem:[%s0 + $0x3d0] sm:$0xf]
    %v264 = vld [vmem:[%s0 + $0x3d4] sm:$0xf]
    %v265 = vld [vmem:[%s0 + $0x3d8] sm:$0xf]
    %v266 = vld [vmem:[%s0 + $0x3dc] sm:$0xf]
    %v267 = vld [vmem:[%s0 + $0x3e0] sm:$0xf]
    %v268 = vld [vmem:[%s0 + $0x3e4] sm:$0xf]
    %v269 = vld [vmem:[%s0 + $0x3e8] sm:$0xf]
    %v270 = vld [vmem:[%s0 + $0x3ec] sm:$0xf]
    %v271 = vld [vmem:[%s0 + $0x3f0] sm:$0xf]
    %v272 = vld [vmem:[%s0 + $0x3f4] sm:$0xf]
    %v273 = vld [vmem:[%s0 + $0x3f8] sm:$0xf]
    %v274 = vld [vmem:[%s0 + $0x3fc] sm:$0xf]
    %v275 = vld [vmem:[%s0 + $0x400] sm:$0xf]
    %v276 = vld [vmem:[%s0 + $0x404] sm:$0xf]
    %v277 = vld [vmem:[%s0 + $0x408] sm:$0xf]
    %v278 = vld [vmem:[%s0 + $0x40c] sm:$0xf]
    %v279 = vld [vmem:[%s0 + $0x410] sm:$0xf]
    %v280 = vld [vmem:[%s0 + $0x414] sm:$0xf]
    %v281 = vld [vmem:[%s0 + $0x418] sm:$0xf]
    %v282 = vld [vmem:[%s0 + $0x41c] sm:$0xf]
    %v283 = vld [vmem:[%s0 + $0x420] sm:$0xf]
    %v284 = vld [vmem:[%s0 + $0x424] sm:$0xf]
    %v285 = vld [vmem:[%s0 + $0x428] sm:$0xf]
    %v286 = vld [vmem:[%s0 + $0x42c] sm:$0xf]
    %v287 = vld [vmem:[%s0 + $0x430] sm:$0xf]
    %v288 = vld [vmem:[%s0 + $0x434] sm:$0xf]
    %v289 = vld [vmem:[%s0 + $0x438] sm:$0xf]
    %v290 = vld [vmem:[%s0 + $0x43c] sm:$0xf]
    %v291 = vld [vmem:[%s0 + $0x440] sm:$0xf]
    %v292 = vld [vmem:[%s0 + $0x444] sm:$0xf]
    %v293 = vld [vmem:[%s0 + $0x448] sm:$0xf]
    %v294 = vld [vmem:[%s0 + $0x44c] sm:$0xf]
    %v295 = vld [vmem:[%s0 + $0x450] sm:$0xf]
    %v296 = vld [vmem:[%s0 + $0x454] sm:$0xf]
    %v297 = vld [vmem:[%s0 + $0x458] sm:$0xf]
    %v298 = vld [vmem:[%s0 + $0x45c] sm:$0xf]
    %v299 = vld [vmem:[%s0 + $0x460] sm:$0xf]
    %v300 = vld [vmem:[%s0 + $0x464] sm:$0xf]
    %v301 = vld [vmem:[%s0 + $0x468] sm:$0xf]
    %v302 = vld [vmem:[%s0 + $0x46c] sm:$0xf]
    %v303 = vld [vmem:[%s0 + $0x470] sm:$0xf]
    %v304 = vld [vmem:[%s0 + $0x474] sm:$0xf]
    %v305 = vld [vmem:[%s0 + $0x478] sm:$0xf]
    %v306 = vld [vmem:[%s0 + $0x47c] sm:$0xf]
    %v307 = vld [vmem:[%s0 + $0x480] sm:$0xf]
    %v308 = vld [vmem:[%s0 + $0x484] sm:$0xf]
    %v309 = vld [vmem:[%s0 + $0x488] sm:$0xf]
    %v310 = vld [vmem:[%s0 + $0x48c] sm:$0xf]
    %v311 = vld [vmem:[%s0 + $0x490] sm:$0xf]
    %v312 = vld [vmem:[%s0 + $0x494] sm:$0xf]
    %v313 = vld [vmem:[%s0 + $0x498] sm:$0xf]
    %v314 = vld [vmem:[%s0 + $0x49c] sm:$0xf]
    %v315 = vld [vmem:[%s0 + $0x4a0] sm:$0xf]
    %v316 = vld [vmem:[%s0 + $0x4a4] sm:$0xf]
    %v317 = vld [vmem:[%s0 + $0x4a8] sm:$0xf]
    %v318 = vld [vmem:[%s0 + $0x4ac] sm:$0xf]
    %v319 = vld [vmem:[%s0 + $0x4b0] sm:$0xf]
    %v320 = vld [vmem:[%s0 + $0x4b4] sm:$0xf]
    %v321 = vld [vmem:[%s0 + $0x4b8] sm:$0xf]
    %v322 = vld [vmem:[%s0 + $0x4bc] sm:$0xf]
    %v323 = vld [vmem:[%s0 + $0x4c0] sm:$0xf]
    %v324 = vld [vmem:[%s0 + $0x4c4] sm:$0xf]
    %v325 = vld [vmem:[%s0 + $0x4c8] sm:$0xf]
    %v326 = vld [vmem:[%s0 + $0x4cc] sm:$0xf]
    %v327 = vld [vmem:[%s0 + $0x4d0] sm:$0xf]
    %v328 = vld [vmem:[%s0 + $0x4d4] sm:$0xf]
    %v329 = vld [vmem:[%s0 + $0x4d8] sm:$0xf]
    %v330 = vld [vmem:[%s0 + $0x4dc] sm:$0xf]
    %v331 = vld [vmem:[%s0 + $0x4e0] sm:$0xf]
    %v332 = vld [vmem:[%s0 + $0x4e4] sm:$0xf]
    %v333 = vld [vmem:[%s0 + $0x4e8] sm:$0xf]
    %v334 = vld [vmem:[%s0 + $0x4ec] sm:$0xf]
    %v335 = vld [vmem:[%s0 + $0x4f0] sm:$0xf]
    %v336 = vld [vmem:[%s0 + $0x4f4] sm:$0xf]
    %v337 = vld [vmem:[%s0 + $0x4f8] sm:$0xf]
    %v338 = vld [vmem:[%s0 + $0x4fc] sm:$0xf]
    %v339 = vld [vmem:[%s0 + $0x500] sm:$0xf]
    %v340 = vld [vmem:[%s0 + $0x504] sm:$0xf]
    %v341 = vld [vmem:[%s0 + $0x508] sm:$0xf]
    %v342 = vld [vmem:[%s0 + $0x50c] sm:$0xf]
    %v343 = vld [vmem:[%s0 + $0x510] sm:$0xf]
    %v344 = vld [vmem:[%s0 + $0x514] sm:$0xf]
    %v345 = vld [vmem:[%s0 + $0x518] sm:$0xf]
    %v346 = vld [vmem:[%s0 + $0x51c] sm:$0xf]
    %v347 = vld [vmem:[%s0 + $0x520] sm:$0xf]
    %v348 = vld [vmem:[%s0 + $0x524] sm:$0xf]
    %v349 = vld [vmem:[%s0 + $0x528] sm:$0xf]
    %v350 = vld [vmem:[%s0 + $0x52c] sm:$0xf]
    %v351 = vld [vmem:[%s0 + $0x530] sm:$0xf]
    %v352 = vld [vmem:[%s0 + $0x534] sm:$0xf]
    %v353 = vld [vmem:[%s0 + $0x538] sm:$0xf]
    %v354 = vld [vmem:[%s0 + $0x53c] sm:$0xf]
    %v355 = vld [vmem:[%s0 + $0x540] sm:$0xf]
    %v356 = vld [vmem:[%s0 + $0x544] sm:$0xf]
    %v357 = vld [vmem:[%s0 + $0x548] sm:$0xf]
    %v358 = vld [vmem:[%s0 + $0x54c] sm:$0xf]
    %v359 = vld [vmem:[%s0 + $0x550] sm:$0xf]
    %v360 = vld [vmem:[%s0 + $0x554] sm:$0xf]
    %v361 = vld [vmem:[%s0 + $0x558] sm:$0xf]
    %v362 = vld [vmem:[%s0 + $0x55c] sm:$0xf]
    %v363 = vld [vmem:[%s0 + $0x560] sm:$0xf]
    %v364 = vld [vmem:[%s0 + $0x564] sm:$0xf]
    %v365 = vld [vmem:[%s0 + $0x568] sm:$0xf]
    %v366 = vld [vmem:[%s0 + $0x56c] sm:$0xf]
    %v367 = vld [vmem:[%s0 + $0x570] sm:$0xf]
    %v368 = vld [vmem:[%s0 + $0x574] sm:$0xf]
    %v369 = vld [vmem:[%s0 + $0x578] sm:$0xf]
    %v370 = vld [vmem:[%s0 + $0x57c] sm:$0xf]
    %v371 = vld [vmem:[%s0 + $0x580] sm:$0xf]
    %v372 = vld [vmem:[%s0 + $0x584] sm:$0xf]
    %v373 = vld [vmem:[%s0 + $0x588] sm:$0xf]
    %v374 = vld [vmem:[%s0 + $0x58c] sm:$0xf]
    %v375 = vld [vmem:[%s0 + $0x590] sm:$0xf]
    %v376 = vld [vmem:[%s0 + $0x594] sm:$0xf]
    %v377 = vld [vmem:[%s0 + $0x598] sm:$0xf]
    %v378 = vld [vmem:[%s0 + $0x59c] sm:$0xf]
    %v379 = vld [vmem:[%s0 + $0x5a0] sm:$0xf]
    %v380 = vld [vmem:[%s0 + $0x5a4] sm:$0xf]
    %v381 = vld [vmem:[%s0 + $0x5a8] sm:$0xf]
    %v382 = vld [vmem:[%s0 + $0x5ac] sm:$0xf]
    %v383 = vld [vmem:[%s0 + $0x5b0] sm:$0xf]
    %v384 = vld [vmem:[%s0 + $0x5b4] sm:$0xf]
    %v385 = vld [vmem:[%s0 + $0x5b8] sm:$0xf]
    %v386 = vld [vmem:[%s0 + $0x5bc] sm:$0xf]
    %v387 = vld [vmem:[%s0 + $0x5c0] sm:$0xf]
    %v388 = vld [vmem:[%s0 + $0x5c4] sm:$0xf]
    %v389 = vld [vmem:[%s0 + $0x5c8] sm:$0xf]
    %v390 = vld [vmem:[%s0 + $0x5cc] sm:$0xf]
    %v391 = vld [vmem:[%s0 + $0x5d0] sm:$0xf]
    %v392 = vld [vmem:[%s0 + $0x5d4] sm:$0xf]
    %v393 = vld [vmem:[%s0 + $0x5d8] sm:$0xf]
    %v394 = vld [vmem:[%s0 + $0x5dc] sm:$0xf]
    %v395 = vld [vmem:[%s0 + $0x5e0] sm:$0xf]
    %v396 = vld [vmem:[%s0 + $0x5e4] sm:$0xf]
    %v397 = vld [vmem:[%s0 + $0x5e8] sm:$0xf]
    %v398 = vld [vmem:[%s0 + $0x5ec] sm:$0xf]
    %v399 = vld [vmem:[%s0 + $0x5f0] sm:$0xf]
    %v400 = vld [vmem:[%s0 + $0x5f4] sm:$0xf]
    %v401 = vld [vmem:[%s0 + $0x5f8] sm:$0xf]
    %v402 = vld [vmem:[%s0 + $0x5fc] sm:$0xf]
    %v403 = vld [vmem:[%s0 + $0x600] sm:$0xf]
    %v404 = vld [vmem:[%s0 + $0x604] sm:$0xf]
    %v405 = vld [vmem:[%s0 + $0x608] sm:$0xf]
    %v406 = vld [vmem:[%s0 + $0x60c] sm:$0xf]
    %v407 = vld [vmem:[%s0 + $0x610] sm:$0xf]
    %v408 = vld [vmem:[%s0 + $0x614] sm:$0xf]
    %v409 = vld [vmem:[%s0 + $0x618] sm:$0xf]
    %v410 = vld [vmem:[%s0 + $0x61c] sm:$0xf]
    %v411 = vld [vmem:[%s0 + $0x620] sm:$0xf]
    %v412 = vld [vmem:[%s0 + $0x624] sm:$0xf]
    %v413 = vld [vmem:[%s0 + $0x628] sm:$0xf]
    %v414 = vld [vmem:[%s0 + $0x62c] sm:$0xf]
    %v415 = vld [vmem:[%s0 + $0x630] sm:$0xf]
    %v416 = vld [vmem:[%s0 + $0x634] sm:$0xf]
    %v417 = vld [vmem:[%s0 + $0x638] sm:$0xf]
    %v418 = vld [vmem:[%s0 + $0x63c] sm:$0xf]
    %v419 = vld [vmem:[%s0 + $0x640] sm:$0xf]
    %v420 = vld [vmem:[%s0 + $0x644] sm:$0xf]
    %v421 = vld [vmem:[%s0 + $0x648] sm:$0xf]
    %v422 = vld [vmem:[%s0 + $0x64c] sm:$0xf]
    %v423 = vld [vmem:[%s0 + $0x650] sm:$0xf]
    %v424 = vld [vmem:[%s0 + $0x654] sm:$0xf]
    %v425 = vld [vmem:[%s0 + $0x658] sm:$0xf]
    %v426 = vld [vmem:[%s0 + $0x65c] sm:$0xf]
    %v427 = vld [vmem:[%s0 + $0x660] sm:$0xf]
    %v428 = vld [vmem:[%s0 + $0x664] sm:$0xf]
    %v429 = vld [vmem:[%s0 + $0x668] sm:$0xf]
    %v430 = vld [vmem:[%s0 + $0x66c] sm:$0xf]
    %v431 = vld [vmem:[%s0 + $0x670] sm:$0xf]
    %v432 = vld [vmem:[%s0 + $0x674] sm:$0xf]
    %v433 = vld [vmem:[%s0 + $0x678] sm:$0xf]
    %v434 = vld [vmem:[%s0 + $0x67c] sm:$0xf]
    %v435 = vld [vmem:[%s0 + $0x680] sm:$0xf]
    %v436 = vld [vmem:[%s0 + $0x684] sm:$0xf]
    %v437 = vld [vmem:[%s0 + $0x688] sm:$0xf]
    %v438 = vld [vmem:[%s0 + $0x68c] sm:$0xf]
    %v439 = vld [vmem:[%s0 + $0x690] sm:$0xf]
    %v440 = vld [vmem:[%s0 + $0x694] sm:$0xf]
    %v441 = vld [vmem:[%s0 + $0x698] sm:$0xf]
    %v442 = vld [vmem:[%s0 + $0x69c] sm:$0xf]
    %v443 = vld [vmem:[%s0 + $0x6a0] sm:$0xf]
    %v444 = vld [vmem:[%s0 + $0x6a4] sm:$0xf]
    %v445 = vld [vmem:[%s0 + $0x6a8] sm:$0xf]
    %v446 = vld [vmem:[%s0 + $0x6ac] sm:$0xf]
    %v447 = vld [vmem:[%s0 + $0x6b0] sm:$0xf]
    %v448 = vld [vmem:[%s0 + $0x6b4] sm:$0xf]
    %v449 = vld [vmem:[%s0 + $0x6b8] sm:$0xf]
    %v450 = vld [vmem:[%s0 + $0x6bc] sm:$0xf]
    %v451 = vld [vmem:[%s0 + $0x6c0] sm:$0xf]
    %v452 = vld [vmem:[%s0 + $0x6c4] sm:$0xf]
    %v453 = vld [vmem:[%s0 + $0x6c8] sm:$0xf]
    %v454 = vld [vmem:[%s0 + $0x6cc] sm:$0xf]
    %v455 = vld [vmem:[%s0 + $0x6d0] sm:$0xf]
    %v456 = vld [vmem:[%s0 + $0x6d4] sm:$0xf]
    %v457 = vld [vmem:[%s0 + $0x6d8] sm:$0xf]
    %v458 = vld [vmem:[%s0 + $0x6dc] sm:$0xf]
    %v459 = vld [vmem:[%s0 + $0x6e0] sm:$0xf]
    %v460 = vld [vmem:[%s0 + $0x6e4] sm:$0xf]
    %v461 = vld [vmem:[%s0 + $0x6e8] sm:$0xf]
    %v462 = vld [vmem:[%s0 + $0x6ec] sm:$0xf]
    %v463 = vld [vmem:[%s0 + $0x6f0] sm:$0xf]
    %v464 = vld [vmem:[%s0 + $0x6f4] sm:$0xf]
    %v465 = vld [vmem:[%s0 + $0x6f8] sm:$0xf]
    %v466 = vld [vmem:[%s0 + $0x6fc] sm:$0xf]
    %v467 = vld [vmem:[%s0 + $0x700] sm:$0xf]
    %v468 = vld [vmem:[%s0 + $0x704] sm:$0xf]
    %v469 = vld [vmem:[%s0 + $0x708] sm:$0xf]
    %v470 = vld [vmem:[%s0 + $0x70c] sm:$0xf]
    %v471 = vld [vmem:[%s0 + $0x710] sm:$0xf]
    %v472 = vld [vmem:[%s0 + $0x714] sm:$0xf]
    %v473 = vld [vmem:[%s0 + $0x718] sm:$0xf]
    %v474 = vld [vmem:[%s0 + $0x71c] sm:$0xf]
    %v475 = vld [vmem:[%s0 + $0x720] sm:$0xf]
    %v476 = vld [vmem:[%s0 + $0x724] sm:$0xf]
    %v477 = vld [vmem:[%s0 + $0x728] sm:$0xf]
    %v478 = vld [vmem:[%s0 + $0x72c] sm:$0xf]
    %v479 = vld [vmem:[%s0 + $0x730] sm:$0xf]
    %v480 = vld [vmem:[%s0 + $0x734] sm:$0xf]
    %v481 = vld [vmem:[%s0 + $0x738] sm:$0xf]
    %v482 = vld [vmem:[%s0 + $0x73c] sm:$0xf]
    %v483 = vld [vmem:[%s0 + $0x740] sm:$0xf]
    %v484 = vld [vmem:[%s0 + $0x744] sm:$0xf]
    %v485 = vld [vmem:[%s0 + $0x748] sm:$0xf]
    %v486 = vld [vmem:[%s0 + $0x74c] sm:$0xf]
    %v487 = vld [vmem:[%s0 + $0x750] sm:$0xf]
    %v488 = vld [vmem:[%s0 + $0x754] sm:$0xf]
    %v489 = vld [vmem:[%s0 + $0x758] sm:$0xf]
    %v490 = vld [vmem:[%s0 + $0x75c] sm:$0xf]
    %v491 = vld [vmem:[%s0 + $0x760] sm:$0xf]
    %v492 = vld [vmem:[%s0 + $0x764] sm:$0xf]
    %v493 = vld [vmem:[%s0 + $0x768] sm:$0xf]
    %v494 = vld [vmem:[%s0 + $0x76c] sm:$0xf]
    %v495 = vld [vmem:[%s0 + $0x770] sm:$0xf]
    %v496 = vld [vmem:[%s0 + $0x774] sm:$0xf]
    %v497 = vld [vmem:[%s0 + $0x778] sm:$0xf]
    %v498 = vld [vmem:[%s0 + $0x77c] sm:$0xf]
    %v499 = vld [vmem:[%s0 + $0x780] sm:$0xf]
    %v500 = vld [vmem:[%s0 + $0x784] sm:$0xf]
    %v501 = vld [vmem:[%s0 + $0x788] sm:$0xf]
    %v502 = vld [vmem:[%s0 + $0x78c] sm:$0xf]
    %v503 = vld [vmem:[%s0 + $0x790] sm:$0xf]
    %v504 = vld [vmem:[%s0 + $0x794] sm:$0xf]
    %v505 = vld [vmem:[%s0 + $0x798] sm:$0xf]
    %v506 = vld [vmem:[%s0 + $0x79c] sm:$0xf]
    %v507 = vld [vmem:[%s0 + $0x7a0] sm:$0xf]
    %v508 = vld [vmem:[%s0 + $0x7a4] sm:$0xf]
    %v509 = vld [vmem:[%s0 + $0x7a8] sm:$0xf]
    %v510 = vld [vmem:[%s0 + $0x7ac] sm:$0xf]
    %v511 = vld [vmem:[%s0 + $0x7b0] sm:$0xf]
    %v512 = vld [vmem:[%s0 + $0x7b4] sm:$0xf]
    %v513 = vld [vmem:[%s0 + $0x7b8] sm:$0xf]
    %v514 = vld [vmem:[%s0 + $0x7bc] sm:$0xf]
    %v515 = vld [vmem:[%s0 + $0x7c0] sm:$0xf]
    %v516 = vld [vmem:[%s0 + $0x7c4] sm:$0xf]
    %v517 = vld [vmem:[%s0 + $0x7c8] sm:$0xf]
    %v518 = vld [vmem:[%s0 + $0x7cc] sm:$0xf]
    %v519 = vld [vmem:[%s0 + $0x7d0] sm:$0xf]
    %v520 = vld [vmem:[%s0 + $0x7d4] sm:$0xf]
    %v521 = vld [vmem:[%s0 + $0x7d8] sm:$0xf]
    %v522 = vld [vmem:[%s0 + $0x7dc] sm:$0xf]
    %v523 = vld [vmem:[%s0 + $0x7e0] sm:$0xf]
    %v524 = vld [vmem:[%s0 + $0x7e4] sm:$0xf]
    %v525 = vld [vmem:[%s0 + $0x7e8] sm:$0xf]
    %v526 = vld [vmem:[%s0 + $0x7ec] sm:$0xf]
    %v527 = vld [vmem:[%s0 + $0x7f0] sm:$0xf]
    %v528 = vld [vmem:[%s0 + $0x7f4] sm:$0xf]
    %v529 = vld [vmem:[%s0 + $0x7f8] sm:$0xf]
    %v530 = vld [vmem:[%s0 + $0x7fc] sm:$0xf]
    %v531 = vld [vmem:[%s1] sm:$0xf]
    %v532 = vld [vmem:[%s1 + $0x4] sm:$0xf]
    %v533 = vld [vmem:[%s1 + $0x8] sm:$0xf]
    %v534 = vld [vmem:[%s1 + $0xc] sm:$0xf]
    %v535 = vld [vmem:[%s2] sm:$0x1]
    %v537 = vperm.slane %v535, 0
    %v1051 = vunpack.c.l.b16 %v19
    %v1052 = vunpack.c.l.b16 %v20
    %v1053 = vunpack.c.l.b16 %v21
    %v1054 = vunpack.c.l.b16 %v22
    %v1055 = vunpack.c.l.b16 %v23
    %v1056 = vunpack.c.l.b16 %v24
    %v1057 = vunpack.c.l.b16 %v25
    %v1058 = vunpack.c.l.b16 %v26
    %v1059 = vunpack.c.l.b16 %v27
    %v1060 = vunpack.c.l.b16 %v28
    %v1061 = vunpack.c.l.b16 %v29
    %v1062 = vunpack.c.l.b16 %v30
    %v1063 = vunpack.c.l.b16 %v31
    %v1064 = vunpack.c.l.b16 %v32
    %v1065 = vunpack.c.l.b16 %v33
    %v1066 = vunpack.c.l.b16 %v34
    %v1067 = vunpack.c.l.b16 %v35
    %v1068 = vunpack.c.l.b16 %v36
    %v1069 = vunpack.c.l.b16 %v37
    %v1070 = vunpack.c.l.b16 %v38
    %v1071 = vunpack.c.l.b16 %v39
    %v1072 = vunpack.c.l.b16 %v40
    %v1073 = vunpack.c.l.b16 %v41
    %v1074 = vunpack.c.l.b16 %v42
    %v1075 = vunpack.c.l.b16 %v43
    %v1076 = vunpack.c.l.b16 %v44
    %v1077 = vunpack.c.l.b16 %v45
    %v1078 = vunpack.c.l.b16 %v46
    %v1079 = vunpack.c.l.b16 %v47
    %v1080 = vunpack.c.l.b16 %v48
    %v1081 = vunpack.c.l.b16 %v49
    %v1082 = vunpack.c.l.b16 %v50
    %v1083 = vunpack.c.l.b16 %v51
    %v1084 = vunpack.c.l.b16 %v52
    %v1085 = vunpack.c.l.b16 %v53
    %v1086 = vunpack.c.l.b16 %v54
    %v1087 = vunpack.c.l.b16 %v55
    %v1088 = vunpack.c.l.b16 %v56
    %v1089 = vunpack.c.l.b16 %v57
    %v1090 = vunpack.c.l.b16 %v58
    %v1091 = vunpack.c.l.b16 %v59
    %v1092 = vunpack.c.l.b16 %v60
    %v1093 = vunpack.c.l.b16 %v61
    %v1094 = vunpack.c.l.b16 %v62
    %v1095 = vunpack.c.l.b16 %v63
    %v1096 = vunpack.c.l.b16 %v64
    %v1097 = vunpack.c.l.b16 %v65
    %v1098 = vunpack.c.l.b16 %v66
    %v1099 = vunpack.c.l.b16 %v67
    %v1100 = vunpack.c.l.b16 %v68
    %v1101 = vunpack.c.l.b16 %v69
    %v1102 = vunpack.c.l.b16 %v70
    %v1103 = vunpack.c.l.b16 %v71
    %v1104 = vunpack.c.l.b16 %v72
    %v1105 = vunpack.c.l.b16 %v73
    %v1106 = vunpack.c.l.b16 %v74
    %v1107 = vunpack.c.l.b16 %v75
    %v1108 = vunpack.c.l.b16 %v76
    %v1109 = vunpack.c.l.b16 %v77
    %v1110 = vunpack.c.l.b16 %v78
    %v1111 = vunpack.c.l.b16 %v79
    %v1112 = vunpack.c.l.b16 %v80
    %v1113 = vunpack.c.l.b16 %v81
    %v1114 = vunpack.c.l.b16 %v82
    %v1115 = vunpack.c.l.b16 %v83
    %v1116 = vunpack.c.l.b16 %v84
    %v1117 = vunpack.c.l.b16 %v85
    %v1118 = vunpack.c.l.b16 %v86
    %v1119 = vunpack.c.l.b16 %v87
    %v1120 = vunpack.c.l.b16 %v88
    %v1121 = vunpack.c.l.b16 %v89
    %v1122 = vunpack.c.l.b16 %v90
    %v1123 = vunpack.c.l.b16 %v91
    %v1124 = vunpack.c.l.b16 %v92
    %v1125 = vunpack.c.l.b16 %v93
    %v1126 = vunpack.c.l.b16 %v94
    %v1127 = vunpack.c.l.b16 %v95
    %v1128 = vunpack.c.l.b16 %v96
    %v1129 = vunpack.c.l.b16 %v97
    %v1130 = vunpack.c.l.b16 %v98
    %v1131 = vunpack.c.l.b16 %v99
    %v1132 = vunpack.c.l.b16 %v100
    %v1133 = vunpack.c.l.b16 %v101
    %v1134 = vunpack.c.l.b16 %v102
    %v1135 = vunpack.c.l.b16 %v103
    %v1136 = vunpack.c.l.b16 %v104
    %v1137 = vunpack.c.l.b16 %v105
    %v1138 = vunpack.c.l.b16 %v106
    %v1139 = vunpack.c.l.b16 %v107
    %v1140 = vunpack.c.l.b16 %v108
    %v1141 = vunpack.c.l.b16 %v109
    %v1142 = vunpack.c.l.b16 %v110
    %v1143 = vunpack.c.l.b16 %v111
    %v1144 = vunpack.c.l.b16 %v112
    %v1145 = vunpack.c.l.b16 %v113
    %v1146 = vunpack.c.l.b16 %v114
    %v1147 = vunpack.c.l.b16 %v115
    %v1148 = vunpack.c.l.b16 %v116
    %v1149 = vunpack.c.l.b16 %v117
    %v1150 = vunpack.c.l.b16 %v118
    %v1151 = vunpack.c.l.b16 %v119
    %v1152 = vunpack.c.l.b16 %v120
    %v1153 = vunpack.c.l.b16 %v121
    %v1154 = vunpack.c.l.b16 %v122
    %v1155 = vunpack.c.l.b16 %v123
    %v1156 = vunpack.c.l.b16 %v124
    %v1157 = vunpack.c.l.b16 %v125
    %v1158 = vunpack.c.l.b16 %v126
    %v1159 = vunpack.c.l.b16 %v127
    %v1160 = vunpack.c.l.b16 %v128
    %v1161 = vunpack.c.l.b16 %v129
    %v1162 = vunpack.c.l.b16 %v130
    %v1163 = vunpack.c.l.b16 %v131
    %v1164 = vunpack.c.l.b16 %v132
    %v1165 = vunpack.c.l.b16 %v133
    %v1166 = vunpack.c.l.b16 %v134
    %v1167 = vunpack.c.l.b16 %v135
    %v1168 = vunpack.c.l.b16 %v136
    %v1169 = vunpack.c.l.b16 %v137
    %v1170 = vunpack.c.l.b16 %v138
    %v1171 = vunpack.c.l.b16 %v139
    %v1172 = vunpack.c.l.b16 %v140
    %v1173 = vunpack.c.l.b16 %v141
    %v1174 = vunpack.c.l.b16 %v142
    %v1175 = vunpack.c.l.b16 %v143
    %v1176 = vunpack.c.l.b16 %v144
    %v1177 = vunpack.c.l.b16 %v145
    %v1178 = vunpack.c.l.b16 %v146
    %v1179 = vunpack.c.l.b16 %v147
    %v1180 = vunpack.c.l.b16 %v148
    %v1181 = vunpack.c.l.b16 %v149
    %v1182 = vunpack.c.l.b16 %v150
    %v1183 = vunpack.c.l.b16 %v151
    %v1184 = vunpack.c.l.b16 %v152
    %v1185 = vunpack.c.l.b16 %v153
    %v1186 = vunpack.c.l.b16 %v154
    %v1187 = vunpack.c.l.b16 %v155
    %v1188 = vunpack.c.l.b16 %v156
    %v1189 = vunpack.c.l.b16 %v157
    %v1190 = vunpack.c.l.b16 %v158
    %v1191 = vunpack.c.l.b16 %v159
    %v1192 = vunpack.c.l.b16 %v160
    %v1193 = vunpack.c.l.b16 %v161
    %v1194 = vunpack.c.l.b16 %v162
    %v1195 = vunpack.c.l.b16 %v163
    %v1196 = vunpack.c.l.b16 %v164
    %v1197 = vunpack.c.l.b16 %v165
    %v1198 = vunpack.c.l.b16 %v166
    %v1199 = vunpack.c.l.b16 %v167
    %v1200 = vunpack.c.l.b16 %v168
    %v1201 = vunpack.c.l.b16 %v169
    %v1202 = vunpack.c.l.b16 %v170
    %v1203 = vunpack.c.l.b16 %v171
    %v1204 = vunpack.c.l.b16 %v172
    %v1205 = vunpack.c.l.b16 %v173
    %v1206 = vunpack.c.l.b16 %v174
    %v1207 = vunpack.c.l.b16 %v175
    %v1208 = vunpack.c.l.b16 %v176
    %v1209 = vunpack.c.l.b16 %v177
    %v1210 = vunpack.c.l.b16 %v178
    %v1211 = vunpack.c.l.b16 %v179
    %v1212 = vunpack.c.l.b16 %v180
    %v1213 = vunpack.c.l.b16 %v181
    %v1214 = vunpack.c.l.b16 %v182
    %v1215 = vunpack.c.l.b16 %v183
    %v1216 = vunpack.c.l.b16 %v184
    %v1217 = vunpack.c.l.b16 %v185
    %v1218 = vunpack.c.l.b16 %v186
    %v1219 = vunpack.c.l.b16 %v187
    %v1220 = vunpack.c.l.b16 %v188
    %v1221 = vunpack.c.l.b16 %v189
    %v1222 = vunpack.c.l.b16 %v190
    %v1223 = vunpack.c.l.b16 %v191
    %v1224 = vunpack.c.l.b16 %v192
    %v1225 = vunpack.c.l.b16 %v193
    %v1226 = vunpack.c.l.b16 %v194
    %v1227 = vunpack.c.l.b16 %v195
    %v1228 = vunpack.c.l.b16 %v196
    %v1229 = vunpack.c.l.b16 %v197
    %v1230 = vunpack.c.l.b16 %v198
    %v1231 = vunpack.c.l.b16 %v199
    %v1232 = vunpack.c.l.b16 %v200
    %v1233 = vunpack.c.l.b16 %v201
    %v1234 = vunpack.c.l.b16 %v202
    %v1235 = vunpack.c.l.b16 %v203
    %v1236 = vunpack.c.l.b16 %v204
    %v1237 = vunpack.c.l.b16 %v205
    %v1238 = vunpack.c.l.b16 %v206
    %v1239 = vunpack.c.l.b16 %v207
    %v1240 = vunpack.c.l.b16 %v208
    %v1241 = vunpack.c.l.b16 %v209
    %v1242 = vunpack.c.l.b16 %v210
    %v1243 = vunpack.c.l.b16 %v211
    %v1244 = vunpack.c.l.b16 %v212
    %v1245 = vunpack.c.l.b16 %v213
    %v1246 = vunpack.c.l.b16 %v214
    %v1247 = vunpack.c.l.b16 %v215
    %v1248 = vunpack.c.l.b16 %v216
    %v1249 = vunpack.c.l.b16 %v217
    %v1250 = vunpack.c.l.b16 %v218
    %v1251 = vunpack.c.l.b16 %v219
    %v1252 = vunpack.c.l.b16 %v220
    %v1253 = vunpack.c.l.b16 %v221
    %v1254 = vunpack.c.l.b16 %v222
    %v1255 = vunpack.c.l.b16 %v223
    %v1256 = vunpack.c.l.b16 %v224
    %v1257 = vunpack.c.l.b16 %v225
    %v1258 = vunpack.c.l.b16 %v226
    %v1259 = vunpack.c.l.b16 %v227
    %v1260 = vunpack.c.l.b16 %v228
    %v1261 = vunpack.c.l.b16 %v229
    %v1262 = vunpack.c.l.b16 %v230
    %v1263 = vunpack.c.l.b16 %v231
    %v1264 = vunpack.c.l.b16 %v232
    %v1265 = vunpack.c.l.b16 %v233
    %v1266 = vunpack.c.l.b16 %v234
    %v1267 = vunpack.c.l.b16 %v235
    %v1268 = vunpack.c.l.b16 %v236
    %v1269 = vunpack.c.l.b16 %v237
    %v1270 = vunpack.c.l.b16 %v238
    %v1271 = vunpack.c.l.b16 %v239
    %v1272 = vunpack.c.l.b16 %v240
    %v1273 = vunpack.c.l.b16 %v241
    %v1274 = vunpack.c.l.b16 %v242
    %v1275 = vunpack.c.l.b16 %v243
    %v1276 = vunpack.c.l.b16 %v244
    %v1277 = vunpack.c.l.b16 %v245
    %v1278 = vunpack.c.l.b16 %v246
    %v1279 = vunpack.c.l.b16 %v247
    %v1280 = vunpack.c.l.b16 %v248
    %v1281 = vunpack.c.l.b16 %v249
    %v1282 = vunpack.c.l.b16 %v250
    %v1283 = vunpack.c.l.b16 %v251
    %v1284 = vunpack.c.l.b16 %v252
    %v1285 = vunpack.c.l.b16 %v253
    %v1286 = vunpack.c.l.b16 %v254
    %v1287 = vunpack.c.l.b16 %v255
    %v1288 = vunpack.c.l.b16 %v256
    %v1289 = vunpack.c.l.b16 %v257
    %v1290 = vunpack.c.l.b16 %v258
    %v1291 = vunpack.c.l.b16 %v259
    %v1292 = vunpack.c.l.b16 %v260
    %v1293 = vunpack.c.l.b16 %v261
    %v1294 = vunpack.c.l.b16 %v262
    %v1295 = vunpack.c.l.b16 %v263
    %v1296 = vunpack.c.l.b16 %v264
    %v1297 = vunpack.c.l.b16 %v265
    %v1298 = vunpack.c.l.b16 %v266
    %v1299 = vunpack.c.l.b16 %v267
    %v1300 = vunpack.c.l.b16 %v268
    %v1301 = vunpack.c.l.b16 %v269
    %v1302 = vunpack.c.l.b16 %v270
    %v1303 = vunpack.c.l.b16 %v271
    %v1304 = vunpack.c.l.b16 %v272
    %v1305 = vunpack.c.l.b16 %v273
    %v1306 = vunpack.c.l.b16 %v274
    %v1307 = vunpack.c.l.b16 %v275
    %v1308 = vunpack.c.l.b16 %v276
    %v1309 = vunpack.c.l.b16 %v277
    %v1310 = vunpack.c.l.b16 %v278
    %v1311 = vunpack.c.l.b16 %v279
    %v1312 = vunpack.c.l.b16 %v280
    %v1313 = vunpack.c.l.b16 %v281
    %v1314 = vunpack.c.l.b16 %v282
    %v1315 = vunpack.c.l.b16 %v283
    %v1316 = vunpack.c.l.b16 %v284
    %v1317 = vunpack.c.l.b16 %v285
    %v1318 = vunpack.c.l.b16 %v286
    %v1319 = vunpack.c.l.b16 %v287
    %v1320 = vunpack.c.l.b16 %v288
    %v1321 = vunpack.c.l.b16 %v289
    %v1322 = vunpack.c.l.b16 %v290
    %v1323 = vunpack.c.l.b16 %v291
    %v1324 = vunpack.c.l.b16 %v292
    %v1325 = vunpack.c.l.b16 %v293
    %v1326 = vunpack.c.l.b16 %v294
    %v1327 = vunpack.c.l.b16 %v295
    %v1328 = vunpack.c.l.b16 %v296
    %v1329 = vunpack.c.l.b16 %v297
    %v1330 = vunpack.c.l.b16 %v298
    %v1331 = vunpack.c.l.b16 %v299
    %v1332 = vunpack.c.l.b16 %v300
    %v1333 = vunpack.c.l.b16 %v301
    %v1334 = vunpack.c.l.b16 %v302
    %v1335 = vunpack.c.l.b16 %v303
    %v1336 = vunpack.c.l.b16 %v304
    %v1337 = vunpack.c.l.b16 %v305
    %v1338 = vunpack.c.l.b16 %v306
    %v1339 = vunpack.c.l.b16 %v307
    %v1340 = vunpack.c.l.b16 %v308
    %v1341 = vunpack.c.l.b16 %v309
    %v1342 = vunpack.c.l.b16 %v310
    %v1343 = vunpack.c.l.b16 %v311
    %v1344 = vunpack.c.l.b16 %v312
    %v1345 = vunpack.c.l.b16 %v313
    %v1346 = vunpack.c.l.b16 %v314
    %v1347 = vunpack.c.l.b16 %v315
    %v1348 = vunpack.c.l.b16 %v316
    %v1349 = vunpack.c.l.b16 %v317
    %v1350 = vunpack.c.l.b16 %v318
    %v1351 = vunpack.c.l.b16 %v319
    %v1352 = vunpack.c.l.b16 %v320
    %v1353 = vunpack.c.l.b16 %v321
    %v1354 = vunpack.c.l.b16 %v322
    %v1355 = vunpack.c.l.b16 %v323
    %v1356 = vunpack.c.l.b16 %v324
    %v1357 = vunpack.c.l.b16 %v325
    %v1358 = vunpack.c.l.b16 %v326
    %v1359 = vunpack.c.l.b16 %v327
    %v1360 = vunpack.c.l.b16 %v328
    %v1361 = vunpack.c.l.b16 %v329
    %v1362 = vunpack.c.l.b16 %v330
    %v1363 = vunpack.c.l.b16 %v331
    %v1364 = vunpack.c.l.b16 %v332
    %v1365 = vunpack.c.l.b16 %v333
    %v1366 = vunpack.c.l.b16 %v334
    %v1367 = vunpack.c.l.b16 %v335
    %v1368 = vunpack.c.l.b16 %v336
    %v1369 = vunpack.c.l.b16 %v337
    %v1370 = vunpack.c.l.b16 %v338
    %v1371 = vunpack.c.l.b16 %v339
    %v1372 = vunpack.c.l.b16 %v340
    %v1373 = vunpack.c.l.b16 %v341
    %v1374 = vunpack.c.l.b16 %v342
    %v1375 = vunpack.c.l.b16 %v343
    %v1376 = vunpack.c.l.b16 %v344
    %v1377 = vunpack.c.l.b16 %v345
    %v1378 = vunpack.c.l.b16 %v346
    %v1379 = vunpack.c.l.b16 %v347
    %v1380 = vunpack.c.l.b16 %v348
    %v1381 = vunpack.c.l.b16 %v349
    %v1382 = vunpack.c.l.b16 %v350
    %v1383 = vunpack.c.l.b16 %v351
    %v1384 = vunpack.c.l.b16 %v352
    %v1385 = vunpack.c.l.b16 %v353
    %v1386 = vunpack.c.l.b16 %v354
    %v1387 = vunpack.c.l.b16 %v355
    %v1388 = vunpack.c.l.b16 %v356
    %v1389 = vunpack.c.l.b16 %v357
    %v1390 = vunpack.c.l.b16 %v358
    %v1391 = vunpack.c.l.b16 %v359
    %v1392 = vunpack.c.l.b16 %v360
    %v1393 = vunpack.c.l.b16 %v361
    %v1394 = vunpack.c.l.b16 %v362
    %v1395 = vunpack.c.l.b16 %v363
    %v1396 = vunpack.c.l.b16 %v364
    %v1397 = vunpack.c.l.b16 %v365
    %v1398 = vunpack.c.l.b16 %v366
    %v1399 = vunpack.c.l.b16 %v367
    %v1400 = vunpack.c.l.b16 %v368
    %v1401 = vunpack.c.l.b16 %v369
    %v1402 = vunpack.c.l.b16 %v370
    %v1403 = vunpack.c.l.b16 %v371
    %v1404 = vunpack.c.l.b16 %v372
    %v1405 = vunpack.c.l.b16 %v373
    %v1406 = vunpack.c.l.b16 %v374
    %v1407 = vunpack.c.l.b16 %v375
    %v1408 = vunpack.c.l.b16 %v376
    %v1409 = vunpack.c.l.b16 %v377
    %v1410 = vunpack.c.l.b16 %v378
    %v1411 = vunpack.c.l.b16 %v379
    %v1412 = vunpack.c.l.b16 %v380
    %v1413 = vunpack.c.l.b16 %v381
    %v1414 = vunpack.c.l.b16 %v382
    %v1415 = vunpack.c.l.b16 %v383
    %v1416 = vunpack.c.l.b16 %v384
    %v1417 = vunpack.c.l.b16 %v385
    %v1418 = vunpack.c.l.b16 %v386
    %v1419 = vunpack.c.l.b16 %v387
    %v1420 = vunpack.c.l.b16 %v388
    %v1421 = vunpack.c.l.b16 %v389
    %v1422 = vunpack.c.l.b16 %v390
    %v1423 = vunpack.c.l.b16 %v391
    %v1424 = vunpack.c.l.b16 %v392
    %v1425 = vunpack.c.l.b16 %v393
    %v1426 = vunpack.c.l.b16 %v394
    %v1427 = vunpack.c.l.b16 %v395
    %v1428 = vunpack.c.l.b16 %v396
    %v1429 = vunpack.c.l.b16 %v397
    %v1430 = vunpack.c.l.b16 %v398
    %v1431 = vunpack.c.l.b16 %v399
    %v1432 = vunpack.c.l.b16 %v400
    %v1433 = vunpack.c.l.b16 %v401
    %v1434 = vunpack.c.l.b16 %v402
    %v1435 = vunpack.c.l.b16 %v403
    %v1436 = vunpack.c.l.b16 %v404
    %v1437 = vunpack.c.l.b16 %v405
    %v1438 = vunpack.c.l.b16 %v406
    %v1439 = vunpack.c.l.b16 %v407
    %v1440 = vunpack.c.l.b16 %v408
    %v1441 = vunpack.c.l.b16 %v409
    %v1442 = vunpack.c.l.b16 %v410
    %v1443 = vunpack.c.l.b16 %v411
    %v1444 = vunpack.c.l.b16 %v412
    %v1445 = vunpack.c.l.b16 %v413
    %v1446 = vunpack.c.l.b16 %v414
    %v1447 = vunpack.c.l.b16 %v415
    %v1448 = vunpack.c.l.b16 %v416
    %v1449 = vunpack.c.l.b16 %v417
    %v1450 = vunpack.c.l.b16 %v418
    %v1451 = vunpack.c.l.b16 %v419
    %v1452 = vunpack.c.l.b16 %v420
    %v1453 = vunpack.c.l.b16 %v421
    %v1454 = vunpack.c.l.b16 %v422
    %v1455 = vunpack.c.l.b16 %v423
    %v1456 = vunpack.c.l.b16 %v424
    %v1457 = vunpack.c.l.b16 %v425
    %v1458 = vunpack.c.l.b16 %v426
    %v1459 = vunpack.c.l.b16 %v427
    %v1460 = vunpack.c.l.b16 %v428
    %v1461 = vunpack.c.l.b16 %v429
    %v1462 = vunpack.c.l.b16 %v430
    %v1463 = vunpack.c.l.b16 %v431
    %v1464 = vunpack.c.l.b16 %v432
    %v1465 = vunpack.c.l.b16 %v433
    %v1466 = vunpack.c.l.b16 %v434
    %v1467 = vunpack.c.l.b16 %v435
    %v1468 = vunpack.c.l.b16 %v436
    %v1469 = vunpack.c.l.b16 %v437
    %v1470 = vunpack.c.l.b16 %v438
    %v1471 = vunpack.c.l.b16 %v439
    %v1472 = vunpack.c.l.b16 %v440
    %v1473 = vunpack.c.l.b16 %v441
    %v1474 = vunpack.c.l.b16 %v442
    %v1475 = vunpack.c.l.b16 %v443
    %v1476 = vunpack.c.l.b16 %v444
    %v1477 = vunpack.c.l.b16 %v445
    %v1478 = vunpack.c.l.b16 %v446
    %v1479 = vunpack.c.l.b16 %v447
    %v1480 = vunpack.c.l.b16 %v448
    %v1481 = vunpack.c.l.b16 %v449
    %v1482 = vunpack.c.l.b16 %v450
    %v1483 = vunpack.c.l.b16 %v451
    %v1484 = vunpack.c.l.b16 %v452
    %v1485 = vunpack.c.l.b16 %v453
    %v1486 = vunpack.c.l.b16 %v454
    %v1487 = vunpack.c.l.b16 %v455
    %v1488 = vunpack.c.l.b16 %v456
    %v1489 = vunpack.c.l.b16 %v457
    %v1490 = vunpack.c.l.b16 %v458
    %v1491 = vunpack.c.l.b16 %v459
    %v1492 = vunpack.c.l.b16 %v460
    %v1493 = vunpack.c.l.b16 %v461
    %v1494 = vunpack.c.l.b16 %v462
    %v1495 = vunpack.c.l.b16 %v463
    %v1496 = vunpack.c.l.b16 %v464
    %v1497 = vunpack.c.l.b16 %v465
    %v1498 = vunpack.c.l.b16 %v466
    %v1499 = vunpack.c.l.b16 %v467
    %v1500 = vunpack.c.l.b16 %v468
    %v1501 = vunpack.c.l.b16 %v469
    %v1502 = vunpack.c.l.b16 %v470
    %v1503 = vunpack.c.l.b16 %v471
    %v1504 = vunpack.c.l.b16 %v472
    %v1505 = vunpack.c.l.b16 %v473
    %v1506 = vunpack.c.l.b16 %v474
    %v1507 = vunpack.c.l.b16 %v475
    %v1508 = vunpack.c.l.b16 %v476
    %v1509 = vunpack.c.l.b16 %v477
    %v1510 = vunpack.c.l.b16 %v478
    %v1511 = vunpack.c.l.b16 %v479
    %v1512 = vunpack.c.l.b16 %v480
    %v1513 = vunpack.c.l.b16 %v481
    %v1514 = vunpack.c.l.b16 %v482
    %v1515 = vunpack.c.l.b16 %v483
    %v1516 = vunpack.c.l.b16 %v484
    %v1517 = vunpack.c.l.b16 %v485
    %v1518 = vunpack.c.l.b16 %v486
    %v1519 = vunpack.c.l.b16 %v487
    %v1520 = vunpack.c.l.b16 %v488
    %v1521 = vunpack.c.l.b16 %v489
    %v1522 = vunpack.c.l.b16 %v490
    %v1523 = vunpack.c.l.b16 %v491
    %v1524 = vunpack.c.l.b16 %v492
    %v1525 = vunpack.c.l.b16 %v493
    %v1526 = vunpack.c.l.b16 %v494
    %v1527 = vunpack.c.l.b16 %v495
    %v1528 = vunpack.c.l.b16 %v496
    %v1529 = vunpack.c.l.b16 %v497
    %v1530 = vunpack.c.l.b16 %v498
    %v1531 = vunpack.c.l.b16 %v499
    %v1532 = vunpack.c.l.b16 %v500
    %v1533 = vunpack.c.l.b16 %v501
    %v1534 = vunpack.c.l.b16 %v502
    %v1535 = vunpack.c.l.b16 %v503
    %v1536 = vunpack.c.l.b16 %v504
    %v1537 = vunpack.c.l.b16 %v505
    %v1538 = vunpack.c.l.b16 %v506
    %v1539 = vunpack.c.l.b16 %v507
    %v1540 = vunpack.c.l.b16 %v508
    %v1541 = vunpack.c.l.b16 %v509
    %v1542 = vunpack.c.l.b16 %v510
    %v1543 = vunpack.c.l.b16 %v511
    %v1544 = vunpack.c.l.b16 %v512
    %v1545 = vunpack.c.l.b16 %v513
    %v1546 = vunpack.c.l.b16 %v514
    %v1547 = vunpack.c.l.b16 %v515
    %v1548 = vunpack.c.l.b16 %v516
    %v1549 = vunpack.c.l.b16 %v517
    %v1550 = vunpack.c.l.b16 %v518
    %v1551 = vunpack.c.l.b16 %v519
    %v1552 = vunpack.c.l.b16 %v520
    %v1553 = vunpack.c.l.b16 %v521
    %v1554 = vunpack.c.l.b16 %v522
    %v1555 = vunpack.c.l.b16 %v523
    %v1556 = vunpack.c.l.b16 %v524
    %v1557 = vunpack.c.l.b16 %v525
    %v1558 = vunpack.c.l.b16 %v526
    %v1559 = vunpack.c.l.b16 %v527
    %v1560 = vunpack.c.l.b16 %v528
    %v1561 = vunpack.c.l.b16 %v529
    %v1562 = vunpack.c.l.b16 %v530
    %v1563 = vpack.c.b16 %v1052, %v1051
    %v1564 = vpack.c.b16 %v1054, %v1053
    %v1565 = vpack.c.b16 %v1056, %v1055
    %v1566 = vpack.c.b16 %v1058, %v1057
    %v1567 = vpack.c.b16 %v1060, %v1059
    %v1568 = vpack.c.b16 %v1062, %v1061
    %v1569 = vpack.c.b16 %v1064, %v1063
    %v1570 = vpack.c.b16 %v1066, %v1065
    %v1571 = vpack.c.b16 %v1068, %v1067
    %v1572 = vpack.c.b16 %v1070, %v1069
    %v1573 = vpack.c.b16 %v1072, %v1071
    %v1574 = vpack.c.b16 %v1074, %v1073
    %v1575 = vpack.c.b16 %v1076, %v1075
    %v1576 = vpack.c.b16 %v1078, %v1077
    %v1577 = vpack.c.b16 %v1080, %v1079
    %v1578 = vpack.c.b16 %v1082, %v1081
    %v1579 = vpack.c.b16 %v1084, %v1083
    %v1580 = vpack.c.b16 %v1086, %v1085
    %v1581 = vpack.c.b16 %v1088, %v1087
    %v1582 = vpack.c.b16 %v1090, %v1089
    %v1583 = vpack.c.b16 %v1092, %v1091
    %v1584 = vpack.c.b16 %v1094, %v1093
    %v1585 = vpack.c.b16 %v1096, %v1095
    %v1586 = vpack.c.b16 %v1098, %v1097
    %v1587 = vpack.c.b16 %v1100, %v1099
    %v1588 = vpack.c.b16 %v1102, %v1101
    %v1589 = vpack.c.b16 %v1104, %v1103
    %v1590 = vpack.c.b16 %v1106, %v1105
    %v1591 = vpack.c.b16 %v1108, %v1107
    %v1592 = vpack.c.b16 %v1110, %v1109
    %v1593 = vpack.c.b16 %v1112, %v1111
    %v1594 = vpack.c.b16 %v1114, %v1113
    %v1595 = vpack.c.b16 %v1116, %v1115
    %v1596 = vpack.c.b16 %v1118, %v1117
    %v1597 = vpack.c.b16 %v1120, %v1119
    %v1598 = vpack.c.b16 %v1122, %v1121
    %v1599 = vpack.c.b16 %v1124, %v1123
    %v1600 = vpack.c.b16 %v1126, %v1125
    %v1601 = vpack.c.b16 %v1128, %v1127
    %v1602 = vpack.c.b16 %v1130, %v1129
    %v1603 = vpack.c.b16 %v1132, %v1131
    %v1604 = vpack.c.b16 %v1134, %v1133
    %v1605 = vpack.c.b16 %v1136, %v1135
    %v1606 = vpack.c.b16 %v1138, %v1137
    %v1607 = vpack.c.b16 %v1140, %v1139
    %v1608 = vpack.c.b16 %v1142, %v1141
    %v1609 = vpack.c.b16 %v1144, %v1143
    %v1610 = vpack.c.b16 %v1146, %v1145
    %v1611 = vpack.c.b16 %v1148, %v1147
    %v1612 = vpack.c.b16 %v1150, %v1149
    %v1613 = vpack.c.b16 %v1152, %v1151
    %v1614 = vpack.c.b16 %v1154, %v1153
    %v1615 = vpack.c.b16 %v1156, %v1155
    %v1616 = vpack.c.b16 %v1158, %v1157
    %v1617 = vpack.c.b16 %v1160, %v1159
    %v1618 = vpack.c.b16 %v1162, %v1161
    %v1619 = vpack.c.b16 %v1164, %v1163
    %v1620 = vpack.c.b16 %v1166, %v1165
    %v1621 = vpack.c.b16 %v1168, %v1167
    %v1622 = vpack.c.b16 %v1170, %v1169
    %v1623 = vpack.c.b16 %v1172, %v1171
    %v1624 = vpack.c.b16 %v1174, %v1173
    %v1625 = vpack.c.b16 %v1176, %v1175
    %v1626 = vpack.c.b16 %v1178, %v1177
    %v1627 = vpack.c.b16 %v1180, %v1179
    %v1628 = vpack.c.b16 %v1182, %v1181
    %v1629 = vpack.c.b16 %v1184, %v1183
    %v1630 = vpack.c.b16 %v1186, %v1185
    %v1631 = vpack.c.b16 %v1188, %v1187
    %v1632 = vpack.c.b16 %v1190, %v1189
    %v1633 = vpack.c.b16 %v1192, %v1191
    %v1634 = vpack.c.b16 %v1194, %v1193
    %v1635 = vpack.c.b16 %v1196, %v1195
    %v1636 = vpack.c.b16 %v1198, %v1197
    %v1637 = vpack.c.b16 %v1200, %v1199
    %v1638 = vpack.c.b16 %v1202, %v1201
    %v1639 = vpack.c.b16 %v1204, %v1203
    %v1640 = vpack.c.b16 %v1206, %v1205
    %v1641 = vpack.c.b16 %v1208, %v1207
    %v1642 = vpack.c.b16 %v1210, %v1209
    %v1643 = vpack.c.b16 %v1212, %v1211
    %v1644 = vpack.c.b16 %v1214, %v1213
    %v1645 = vpack.c.b16 %v1216, %v1215
    %v1646 = vpack.c.b16 %v1218, %v1217
    %v1647 = vpack.c.b16 %v1220, %v1219
    %v1648 = vpack.c.b16 %v1222, %v1221
    %v1649 = vpack.c.b16 %v1224, %v1223
    %v1650 = vpack.c.b16 %v1226, %v1225
    %v1651 = vpack.c.b16 %v1228, %v1227
    %v1652 = vpack.c.b16 %v1230, %v1229
    %v1653 = vpack.c.b16 %v1232, %v1231
    %v1654 = vpack.c.b16 %v1234, %v1233
    %v1655 = vpack.c.b16 %v1236, %v1235
    %v1656 = vpack.c.b16 %v1238, %v1237
    %v1657 = vpack.c.b16 %v1240, %v1239
    %v1658 = vpack.c.b16 %v1242, %v1241
    %v1659 = vpack.c.b16 %v1244, %v1243
    %v1660 = vpack.c.b16 %v1246, %v1245
    %v1661 = vpack.c.b16 %v1248, %v1247
    %v1662 = vpack.c.b16 %v1250, %v1249
    %v1663 = vpack.c.b16 %v1252, %v1251
    %v1664 = vpack.c.b16 %v1254, %v1253
    %v1665 = vpack.c.b16 %v1256, %v1255
    %v1666 = vpack.c.b16 %v1258, %v1257
    %v1667 = vpack.c.b16 %v1260, %v1259
    %v1668 = vpack.c.b16 %v1262, %v1261
    %v1669 = vpack.c.b16 %v1264, %v1263
    %v1670 = vpack.c.b16 %v1266, %v1265
    %v1671 = vpack.c.b16 %v1268, %v1267
    %v1672 = vpack.c.b16 %v1270, %v1269
    %v1673 = vpack.c.b16 %v1272, %v1271
    %v1674 = vpack.c.b16 %v1274, %v1273
    %v1675 = vpack.c.b16 %v1276, %v1275
    %v1676 = vpack.c.b16 %v1278, %v1277
    %v1677 = vpack.c.b16 %v1280, %v1279
    %v1678 = vpack.c.b16 %v1282, %v1281
    %v1679 = vpack.c.b16 %v1284, %v1283
    %v1680 = vpack.c.b16 %v1286, %v1285
    %v1681 = vpack.c.b16 %v1288, %v1287
    %v1682 = vpack.c.b16 %v1290, %v1289
    %v1683 = vpack.c.b16 %v1292, %v1291
    %v1684 = vpack.c.b16 %v1294, %v1293
    %v1685 = vpack.c.b16 %v1296, %v1295
    %v1686 = vpack.c.b16 %v1298, %v1297
    %v1687 = vpack.c.b16 %v1300, %v1299
    %v1688 = vpack.c.b16 %v1302, %v1301
    %v1689 = vpack.c.b16 %v1304, %v1303
    %v1690 = vpack.c.b16 %v1306, %v1305
    %v1691 = vpack.c.b16 %v1308, %v1307
    %v1692 = vpack.c.b16 %v1310, %v1309
    %v1693 = vpack.c.b16 %v1312, %v1311
    %v1694 = vpack.c.b16 %v1314, %v1313
    %v1695 = vpack.c.b16 %v1316, %v1315
    %v1696 = vpack.c.b16 %v1318, %v1317
    %v1697 = vpack.c.b16 %v1320, %v1319
    %v1698 = vpack.c.b16 %v1322, %v1321
    %v1699 = vpack.c.b16 %v1324, %v1323
    %v1700 = vpack.c.b16 %v1326, %v1325
    %v1701 = vpack.c.b16 %v1328, %v1327
    %v1702 = vpack.c.b16 %v1330, %v1329
    %v1703 = vpack.c.b16 %v1332, %v1331
    %v1704 = vpack.c.b16 %v1334, %v1333
    %v1705 = vpack.c.b16 %v1336, %v1335
    %v1706 = vpack.c.b16 %v1338, %v1337
    %v1707 = vpack.c.b16 %v1340, %v1339
    %v1708 = vpack.c.b16 %v1342, %v1341
    %v1709 = vpack.c.b16 %v1344, %v1343
    %v1710 = vpack.c.b16 %v1346, %v1345
    %v1711 = vpack.c.b16 %v1348, %v1347
    %v1712 = vpack.c.b16 %v1350, %v1349
    %v1713 = vpack.c.b16 %v1352, %v1351
    %v1714 = vpack.c.b16 %v1354, %v1353
    %v1715 = vpack.c.b16 %v1356, %v1355
    %v1716 = vpack.c.b16 %v1358, %v1357
    %v1717 = vpack.c.b16 %v1360, %v1359
    %v1718 = vpack.c.b16 %v1362, %v1361
    %v1719 = vpack.c.b16 %v1364, %v1363
    %v1720 = vpack.c.b16 %v1366, %v1365
    %v1721 = vpack.c.b16 %v1368, %v1367
    %v1722 = vpack.c.b16 %v1370, %v1369
    %v1723 = vpack.c.b16 %v1372, %v1371
    %v1724 = vpack.c.b16 %v1374, %v1373
    %v1725 = vpack.c.b16 %v1376, %v1375
    %v1726 = vpack.c.b16 %v1378, %v1377
    %v1727 = vpack.c.b16 %v1380, %v1379
    %v1728 = vpack.c.b16 %v1382, %v1381
    %v1729 = vpack.c.b16 %v1384, %v1383
    %v1730 = vpack.c.b16 %v1386, %v1385
    %v1731 = vpack.c.b16 %v1388, %v1387
    %v1732 = vpack.c.b16 %v1390, %v1389
    %v1733 = vpack.c.b16 %v1392, %v1391
    %v1734 = vpack.c.b16 %v1394, %v1393
    %v1735 = vpack.c.b16 %v1396, %v1395
    %v1736 = vpack.c.b16 %v1398, %v1397
    %v1737 = vpack.c.b16 %v1400, %v1399
    %v1738 = vpack.c.b16 %v1402, %v1401
    %v1739 = vpack.c.b16 %v1404, %v1403
    %v1740 = vpack.c.b16 %v1406, %v1405
    %v1741 = vpack.c.b16 %v1408, %v1407
    %v1742 = vpack.c.b16 %v1410, %v1409
    %v1743 = vpack.c.b16 %v1412, %v1411
    %v1744 = vpack.c.b16 %v1414, %v1413
    %v1745 = vpack.c.b16 %v1416, %v1415
    %v1746 = vpack.c.b16 %v1418, %v1417
    %v1747 = vpack.c.b16 %v1420, %v1419
    %v1748 = vpack.c.b16 %v1422, %v1421
    %v1749 = vpack.c.b16 %v1424, %v1423
    %v1750 = vpack.c.b16 %v1426, %v1425
    %v1751 = vpack.c.b16 %v1428, %v1427
    %v1752 = vpack.c.b16 %v1430, %v1429
    %v1753 = vpack.c.b16 %v1432, %v1431
    %v1754 = vpack.c.b16 %v1434, %v1433
    %v1755 = vpack.c.b16 %v1436, %v1435
    %v1756 = vpack.c.b16 %v1438, %v1437
    %v1757 = vpack.c.b16 %v1440, %v1439
    %v1758 = vpack.c.b16 %v1442, %v1441
    %v1759 = vpack.c.b16 %v1444, %v1443
    %v1760 = vpack.c.b16 %v1446, %v1445
    %v1761 = vpack.c.b16 %v1448, %v1447
    %v1762 = vpack.c.b16 %v1450, %v1449
    %v1763 = vpack.c.b16 %v1452, %v1451
    %v1764 = vpack.c.b16 %v1454, %v1453
    %v1765 = vpack.c.b16 %v1456, %v1455
    %v1766 = vpack.c.b16 %v1458, %v1457
    %v1767 = vpack.c.b16 %v1460, %v1459
    %v1768 = vpack.c.b16 %v1462, %v1461
    %v1769 = vpack.c.b16 %v1464, %v1463
    %v1770 = vpack.c.b16 %v1466, %v1465
    %v1771 = vpack.c.b16 %v1468, %v1467
    %v1772 = vpack.c.b16 %v1470, %v1469
    %v1773 = vpack.c.b16 %v1472, %v1471
    %v1774 = vpack.c.b16 %v1474, %v1473
    %v1775 = vpack.c.b16 %v1476, %v1475
    %v1776 = vpack.c.b16 %v1478, %v1477
    %v1777 = vpack.c.b16 %v1480, %v1479
    %v1778 = vpack.c.b16 %v1482, %v1481
    %v1779 = vpack.c.b16 %v1484, %v1483
    %v1780 = vpack.c.b16 %v1486, %v1485
    %v1781 = vpack.c.b16 %v1488, %v1487
    %v1782 = vpack.c.b16 %v1490, %v1489
    %v1783 = vpack.c.b16 %v1492, %v1491
    %v1784 = vpack.c.b16 %v1494, %v1493
    %v1785 = vpack.c.b16 %v1496, %v1495
    %v1786 = vpack.c.b16 %v1498, %v1497
    %v1787 = vpack.c.b16 %v1500, %v1499
    %v1788 = vpack.c.b16 %v1502, %v1501
    %v1789 = vpack.c.b16 %v1504, %v1503
    %v1790 = vpack.c.b16 %v1506, %v1505
    %v1791 = vpack.c.b16 %v1508, %v1507
    %v1792 = vpack.c.b16 %v1510, %v1509
    %v1793 = vpack.c.b16 %v1512, %v1511
    %v1794 = vpack.c.b16 %v1514, %v1513
    %v1795 = vpack.c.b16 %v1516, %v1515
    %v1796 = vpack.c.b16 %v1518, %v1517
    %v1797 = vpack.c.b16 %v1520, %v1519
    %v1798 = vpack.c.b16 %v1522, %v1521
    %v1799 = vpack.c.b16 %v1524, %v1523
    %v1800 = vpack.c.b16 %v1526, %v1525
    %v1801 = vpack.c.b16 %v1528, %v1527
    %v1802 = vpack.c.b16 %v1530, %v1529
    %v1803 = vpack.c.b16 %v1532, %v1531
    %v1804 = vpack.c.b16 %v1534, %v1533
    %v1805 = vpack.c.b16 %v1536, %v1535
    %v1806 = vpack.c.b16 %v1538, %v1537
    %v1807 = vpack.c.b16 %v1540, %v1539
    %v1808 = vpack.c.b16 %v1542, %v1541
    %v1809 = vpack.c.b16 %v1544, %v1543
    %v1810 = vpack.c.b16 %v1546, %v1545
    %v1811 = vpack.c.b16 %v1548, %v1547
    %v1812 = vpack.c.b16 %v1550, %v1549
    %v1813 = vpack.c.b16 %v1552, %v1551
    %v1814 = vpack.c.b16 %v1554, %v1553
    %v1815 = vpack.c.b16 %v1556, %v1555
    %v1816 = vpack.c.b16 %v1558, %v1557
    %v1817 = vpack.c.b16 %v1560, %v1559
    %v1818 = vpack.c.b16 %v1562, %v1561
    %v1823 = vunpack.c.l.b16 %v531
    %v1824 = vunpack.c.l.b16 %v532
    %v1825 = vunpack.c.l.b16 %v533
    %v1826 = vunpack.c.l.b16 %v534
    %v1827 = vpack.c.b16 %v1824, %v1823
    %v1828 = vpack.c.b16 %v1826, %v1825
    %vm1831 = vcmask 261120
    %v1833 = vsel %vm1831, %v1563, 0
    %v1836 = vsel %vm1831, %v1564, 0
    %v1839 = vsel %vm1831, %v1565, 0
    %v1842 = vsel %vm1831, %v1566, 0
    %v1845 = vsel %vm1831, %v1567, 0
    %v1848 = vsel %vm1831, %v1568, 0
    %v1851 = vsel %vm1831, %v1569, 0
    %v1854 = vsel %vm1831, %v1570, 0
    %v1857 = vsel %vm1831, %v1571, 0
    %v1860 = vsel %vm1831, %v1572, 0
    %v1863 = vsel %vm1831, %v1573, 0
    %v1866 = vsel %vm1831, %v1574, 0
    %v1869 = vsel %vm1831, %v1575, 0
    %v1872 = vsel %vm1831, %v1576, 0
    %v1875 = vsel %vm1831, %v1577, 0
    %v1878 = vsel %vm1831, %v1578, 0
    %v1881 = vsel %vm1831, %v1579, 0
    %v1884 = vsel %vm1831, %v1580, 0
    %v1887 = vsel %vm1831, %v1581, 0
    %v1890 = vsel %vm1831, %v1582, 0
    %v1893 = vsel %vm1831, %v1583, 0
    %v1896 = vsel %vm1831, %v1584, 0
    %v1899 = vsel %vm1831, %v1585, 0
    %v1902 = vsel %vm1831, %v1586, 0
    %v1905 = vsel %vm1831, %v1587, 0
    %v1908 = vsel %vm1831, %v1588, 0
    %v1911 = vsel %vm1831, %v1589, 0
    %v1914 = vsel %vm1831, %v1590, 0
    %v1917 = vsel %vm1831, %v1591, 0
    %v1920 = vsel %vm1831, %v1592, 0
    %v1923 = vsel %vm1831, %v1593, 0
    %v1926 = vsel %vm1831, %v1594, 0
    %v1929 = vsel %vm1831, %v1595, 0
    %v1932 = vsel %vm1831, %v1596, 0
    %v1935 = vsel %vm1831, %v1597, 0
    %v1938 = vsel %vm1831, %v1598, 0
    %v1941 = vsel %vm1831, %v1599, 0
    %v1944 = vsel %vm1831, %v1600, 0
    %v1947 = vsel %vm1831, %v1601, 0
    %v1950 = vsel %vm1831, %v1602, 0
    %v1953 = vsel %vm1831, %v1603, 0
    %v1956 = vsel %vm1831, %v1604, 0
    %v1959 = vsel %vm1831, %v1605, 0
    %v1962 = vsel %vm1831, %v1606, 0
    %v1965 = vsel %vm1831, %v1607, 0
    %v1968 = vsel %vm1831, %v1608, 0
    %v1971 = vsel %vm1831, %v1609, 0
    %v1974 = vsel %vm1831, %v1610, 0
    %v1977 = vsel %vm1831, %v1611, 0
    %v1980 = vsel %vm1831, %v1612, 0
    %v1983 = vsel %vm1831, %v1613, 0
    %v1986 = vsel %vm1831, %v1614, 0
    %v1989 = vsel %vm1831, %v1615, 0
    %v1992 = vsel %vm1831, %v1616, 0
    %v1995 = vsel %vm1831, %v1617, 0
    %v1998 = vsel %vm1831, %v1618, 0
    %v2001 = vsel %vm1831, %v1619, 0
    %v2004 = vsel %vm1831, %v1620, 0
    %v2007 = vsel %vm1831, %v1621, 0
    %v2010 = vsel %vm1831, %v1622, 0
    %v2013 = vsel %vm1831, %v1623, 0
    %v2016 = vsel %vm1831, %v1624, 0
    %v2019 = vsel %vm1831, %v1625, 0
    %v2022 = vsel %vm1831, %v1626, 0
    %v2025 = vsel %vm1831, %v1627, 0
    %v2028 = vsel %vm1831, %v1628, 0
    %v2031 = vsel %vm1831, %v1629, 0
    %v2034 = vsel %vm1831, %v1630, 0
    %v2037 = vsel %vm1831, %v1631, 0
    %v2040 = vsel %vm1831, %v1632, 0
    %v2043 = vsel %vm1831, %v1633, 0
    %v2046 = vsel %vm1831, %v1634, 0
    %v2049 = vsel %vm1831, %v1635, 0
    %v2052 = vsel %vm1831, %v1636, 0
    %v2055 = vsel %vm1831, %v1637, 0
    %v2058 = vsel %vm1831, %v1638, 0
    %v2061 = vsel %vm1831, %v1639, 0
    %v2064 = vsel %vm1831, %v1640, 0
    %v2067 = vsel %vm1831, %v1641, 0
    %v2070 = vsel %vm1831, %v1642, 0
    %v2073 = vsel %vm1831, %v1643, 0
    %v2076 = vsel %vm1831, %v1644, 0
    %v2079 = vsel %vm1831, %v1645, 0
    %v2082 = vsel %vm1831, %v1646, 0
    %v2085 = vsel %vm1831, %v1647, 0
    %v2088 = vsel %vm1831, %v1648, 0
    %v2091 = vsel %vm1831, %v1649, 0
    %v2094 = vsel %vm1831, %v1650, 0
    %v2097 = vsel %vm1831, %v1651, 0
    %v2100 = vsel %vm1831, %v1652, 0
    %v2103 = vsel %vm1831, %v1653, 0
    %v2106 = vsel %vm1831, %v1654, 0
    %v2109 = vsel %vm1831, %v1655, 0
    %v2112 = vsel %vm1831, %v1656, 0
    %v2115 = vsel %vm1831, %v1657, 0
    %v2118 = vsel %vm1831, %v1658, 0
    %v2121 = vsel %vm1831, %v1659, 0
    %v2124 = vsel %vm1831, %v1660, 0
    %v2127 = vsel %vm1831, %v1661, 0
    %v2130 = vsel %vm1831, %v1662, 0
    %v2133 = vsel %vm1831, %v1663, 0
    %v2136 = vsel %vm1831, %v1664, 0
    %v2139 = vsel %vm1831, %v1665, 0
    %v2142 = vsel %vm1831, %v1666, 0
    %v2145 = vsel %vm1831, %v1667, 0
    %v2148 = vsel %vm1831, %v1668, 0
    %v2151 = vsel %vm1831, %v1669, 0
    %v2154 = vsel %vm1831, %v1670, 0
    %v2157 = vsel %vm1831, %v1671, 0
    %v2160 = vsel %vm1831, %v1672, 0
    %v2163 = vsel %vm1831, %v1673, 0
    %v2166 = vsel %vm1831, %v1674, 0
    %v2169 = vsel %vm1831, %v1675, 0
    %v2172 = vsel %vm1831, %v1676, 0
    %v2175 = vsel %vm1831, %v1677, 0
    %v2178 = vsel %vm1831, %v1678, 0
    %v2181 = vsel %vm1831, %v1679, 0
    %v2184 = vsel %vm1831, %v1680, 0
    %v2187 = vsel %vm1831, %v1681, 0
    %v2190 = vsel %vm1831, %v1682, 0
    %v2193 = vsel %vm1831, %v1683, 0
    %v2196 = vsel %vm1831, %v1684, 0
    %v2199 = vsel %vm1831, %v1685, 0
    %v2202 = vsel %vm1831, %v1686, 0
    %v2205 = vsel %vm1831, %v1687, 0
    %v2208 = vsel %vm1831, %v1688, 0
    %v2211 = vsel %vm1831, %v1689, 0
    %v2214 = vsel %vm1831, %v1690, 0
    %v2217 = vsel %vm1831, %v1691, 0
    %v2220 = vsel %vm1831, %v1692, 0
    %v2223 = vsel %vm1831, %v1693, 0
    %v2226 = vsel %vm1831, %v1694, 0
    %v2229 = vsel %vm1831, %v1695, 0
    %v2232 = vsel %vm1831, %v1696, 0
    %v2235 = vsel %vm1831, %v1697, 0
    %v2238 = vsel %vm1831, %v1698, 0
    %v2241 = vsel %vm1831, %v1699, 0
    %v2244 = vsel %vm1831, %v1700, 0
    %v2247 = vsel %vm1831, %v1701, 0
    %v2250 = vsel %vm1831, %v1702, 0
    %v2253 = vsel %vm1831, %v1703, 0
    %v2256 = vsel %vm1831, %v1704, 0
    %v2259 = vsel %vm1831, %v1705, 0
    %v2262 = vsel %vm1831, %v1706, 0
    %v2265 = vsel %vm1831, %v1707, 0
    %v2268 = vsel %vm1831, %v1708, 0
    %v2271 = vsel %vm1831, %v1709, 0
    %v2274 = vsel %vm1831, %v1710, 0
    %v2277 = vsel %vm1831, %v1711, 0
    %v2280 = vsel %vm1831, %v1712, 0
    %v2283 = vsel %vm1831, %v1713, 0
    %v2286 = vsel %vm1831, %v1714, 0
    %v2289 = vsel %vm1831, %v1715, 0
    %v2292 = vsel %vm1831, %v1716, 0
    %v2295 = vsel %vm1831, %v1717, 0
    %v2298 = vsel %vm1831, %v1718, 0
    %v2301 = vsel %vm1831, %v1719, 0
    %v2304 = vsel %vm1831, %v1720, 0
    %v2307 = vsel %vm1831, %v1721, 0
    %v2310 = vsel %vm1831, %v1722, 0
    %v2313 = vsel %vm1831, %v1723, 0
    %v2316 = vsel %vm1831, %v1724, 0
    %v2319 = vsel %vm1831, %v1725, 0
    %v2322 = vsel %vm1831, %v1726, 0
    %v2325 = vsel %vm1831, %v1727, 0
    %v2328 = vsel %vm1831, %v1728, 0
    %v2331 = vsel %vm1831, %v1729, 0
    %v2334 = vsel %vm1831, %v1730, 0
    %v2337 = vsel %vm1831, %v1731, 0
    %v2340 = vsel %vm1831, %v1732, 0
    %v2343 = vsel %vm1831, %v1733, 0
    %v2346 = vsel %vm1831, %v1734, 0
    %v2349 = vsel %vm1831, %v1735, 0
    %v2352 = vsel %vm1831, %v1736, 0
    %v2355 = vsel %vm1831, %v1737, 0
    %v2358 = vsel %vm1831, %v1738, 0
    %v2361 = vsel %vm1831, %v1739, 0
    %v2364 = vsel %vm1831, %v1740, 0
    %v2367 = vsel %vm1831, %v1741, 0
    %v2370 = vsel %vm1831, %v1742, 0
    %v2373 = vsel %vm1831, %v1743, 0
    %v2376 = vsel %vm1831, %v1744, 0
    %v2379 = vsel %vm1831, %v1745, 0
    %v2382 = vsel %vm1831, %v1746, 0
    %v2385 = vsel %vm1831, %v1747, 0
    %v2388 = vsel %vm1831, %v1748, 0
    %v2391 = vsel %vm1831, %v1749, 0
    %v2394 = vsel %vm1831, %v1750, 0
    %v2397 = vsel %vm1831, %v1751, 0
    %v2400 = vsel %vm1831, %v1752, 0
    %v2403 = vsel %vm1831, %v1753, 0
    %v2406 = vsel %vm1831, %v1754, 0
    %v2409 = vsel %vm1831, %v1755, 0
    %v2412 = vsel %vm1831, %v1756, 0
    %v2415 = vsel %vm1831, %v1757, 0
    %v2418 = vsel %vm1831, %v1758, 0
    %v2421 = vsel %vm1831, %v1759, 0
    %v2424 = vsel %vm1831, %v1760, 0
    %v2427 = vsel %vm1831, %v1761, 0
    %v2430 = vsel %vm1831, %v1762, 0
    %v2433 = vsel %vm1831, %v1763, 0
    %v2436 = vsel %vm1831, %v1764, 0
    %v2439 = vsel %vm1831, %v1765, 0
    %v2442 = vsel %vm1831, %v1766, 0
    %v2445 = vsel %vm1831, %v1767, 0
    %v2448 = vsel %vm1831, %v1768, 0
    %v2451 = vsel %vm1831, %v1769, 0
    %v2454 = vsel %vm1831, %v1770, 0
    %v2457 = vsel %vm1831, %v1771, 0
    %v2460 = vsel %vm1831, %v1772, 0
    %v2463 = vsel %vm1831, %v1773, 0
    %v2466 = vsel %vm1831, %v1774, 0
    %v2469 = vsel %vm1831, %v1775, 0
    %v2472 = vsel %vm1831, %v1776, 0
    %v2475 = vsel %vm1831, %v1777, 0
    %v2478 = vsel %vm1831, %v1778, 0
    %v2481 = vsel %vm1831, %v1779, 0
    %v2484 = vsel %vm1831, %v1780, 0
    %v2487 = vsel %vm1831, %v1781, 0
    %v2490 = vsel %vm1831, %v1782, 0
    %v2493 = vsel %vm1831, %v1783, 0
    %v2496 = vsel %vm1831, %v1784, 0
    %v2499 = vsel %vm1831, %v1785, 0
    %v2502 = vsel %vm1831, %v1786, 0
    %v2505 = vsel %vm1831, %v1787, 0
    %v2508 = vsel %vm1831, %v1788, 0
    %v2511 = vsel %vm1831, %v1789, 0
    %v2514 = vsel %vm1831, %v1790, 0
    %v2517 = vsel %vm1831, %v1791, 0
    %v2520 = vsel %vm1831, %v1792, 0
    %v2523 = vsel %vm1831, %v1793, 0
    %v2526 = vsel %vm1831, %v1794, 0
    %v2529 = vsel %vm1831, %v1795, 0
    %v2532 = vsel %vm1831, %v1796, 0
    %v2535 = vsel %vm1831, %v1797, 0
    %v2538 = vsel %vm1831, %v1798, 0
    %v2541 = vsel %vm1831, %v1799, 0
    %v2544 = vsel %vm1831, %v1800, 0
    %v2547 = vsel %vm1831, %v1801, 0
    %v2550 = vsel %vm1831, %v1802, 0
    %v2553 = vsel %vm1831, %v1803, 0
    %v2556 = vsel %vm1831, %v1804, 0
    %v2559 = vsel %vm1831, %v1805, 0
    %v2562 = vsel %vm1831, %v1806, 0
    %v2565 = vsel %vm1831, %v1807, 0
    %v2568 = vsel %vm1831, %v1808, 0
    %v2571 = vsel %vm1831, %v1809, 0
    %v2574 = vsel %vm1831, %v1810, 0
    %v2577 = vsel %vm1831, %v1811, 0
    %v2580 = vsel %vm1831, %v1812, 0
    %v2583 = vsel %vm1831, %v1813, 0
    %v2586 = vsel %vm1831, %v1814, 0
    %v2589 = vsel %vm1831, %v1815, 0
    %v2592 = vsel %vm1831, %v1816, 0
    %v2595 = vsel %vm1831, %v1817, 0
    %v2598 = vsel %vm1831, %v1818, 0
    %2600 = vmatpush.bf16.msra.mxu0 0
    %2601 = vmatpush.bf16.msra.mxu0 0
    %2602 = vmatpush.bf16.msra.mxu0 0
    %2603 = vmatpush.bf16.msra.mxu0 0
    %2604 = vmatpush.bf16.msra.mxu0 0
    %2605 = vmatpush.bf16.msra.mxu0 0
    %2606 = vmatpush.bf16.msra.mxu0 %v1828
    %2607 = vmatpush.bf16.msra.mxu0 %v1827
    %2608 = vmatmul.bf16.gmra.mxu0 %v1833
    %v2609 = vpop.f32.mrf.mxu0
    %v2610 = vadd.f32 %v537, %v2609
    %v2611 = vpop.f32.mrf.mxu0
    %v2612 = vadd.f32 %v537, %v2611
    %2613 = vmatmul.bf16.gmra.mxu0 %v1836
    %v2614 = vpop.f32.mrf.mxu0
    %v2615 = vadd.f32 %v537, %v2614
    %v2616 = vpop.f32.mrf.mxu0
    %v2617 = vadd.f32 %v537, %v2616
    %2618 = vmatmul.bf16.gmra.mxu0 %v1839
    %v2619 = vpop.f32.mrf.mxu0
    %v2620 = vadd.f32 %v537, %v2619
    %v2621 = vpop.f32.mrf.mxu0
    %v2622 = vadd.f32 %v537, %v2621
    %2623 = vmatmul.bf16.gmra.mxu0 %v1842
    %v2624 = vpop.f32.mrf.mxu0
    %v2625 = vadd.f32 %v537, %v2624
    %v2626 = vpop.f32.mrf.mxu0
    %v2627 = vadd.f32 %v537, %v2626
    %2628 = vmatmul.bf16.gmra.mxu0 %v1845
    %v2629 = vpop.f32.mrf.mxu0
    %v2630 = vadd.f32 %v537, %v2629
    %v2631 = vpop.f32.mrf.mxu0
    %v2632 = vadd.f32 %v537, %v2631
    %2633 = vmatmul.bf16.gmra.mxu0 %v1848
    %v2634 = vpop.f32.mrf.mxu0
    %v2635 = vadd.f32 %v537, %v2634
    %v2636 = vpop.f32.mrf.mxu0
    %v2637 = vadd.f32 %v537, %v2636
    %2638 = vmatmul.bf16.gmra.mxu0 %v1851
    %v2639 = vpop.f32.mrf.mxu0
    %v2640 = vadd.f32 %v537, %v2639
    %v2641 = vpop.f32.mrf.mxu0
    %v2642 = vadd.f32 %v537, %v2641
    %2643 = vmatmul.bf16.gmra.mxu0 %v1854
    %v2644 = vpop.f32.mrf.mxu0
    %v2645 = vadd.f32 %v537, %v2644
    %v2646 = vpop.f32.mrf.mxu0
    %v2647 = vadd.f32 %v537, %v2646
    %2648 = vmatmul.bf16.gmra.mxu0 %v1857
    %v2649 = vpop.f32.mrf.mxu0
    %v2650 = vadd.f32 %v537, %v2649
    %v2651 = vpop.f32.mrf.mxu0
    %v2652 = vadd.f32 %v537, %v2651
    %2653 = vmatmul.bf16.gmra.mxu0 %v1860
    %v2654 = vpop.f32.mrf.mxu0
    %v2655 = vadd.f32 %v537, %v2654
    %v2656 = vpop.f32.mrf.mxu0
    %v2657 = vadd.f32 %v537, %v2656
    %2658 = vmatmul.bf16.gmra.mxu0 %v1863
    %v2659 = vpop.f32.mrf.mxu0
    %v2660 = vadd.f32 %v537, %v2659
    %v2661 = vpop.f32.mrf.mxu0
    %v2662 = vadd.f32 %v537, %v2661
    %2663 = vmatmul.bf16.gmra.mxu0 %v1866
    %v2664 = vpop.f32.mrf.mxu0
    %v2665 = vadd.f32 %v537, %v2664
    %v2666 = vpop.f32.mrf.mxu0
    %v2667 = vadd.f32 %v537, %v2666
    %2668 = vmatmul.bf16.gmra.mxu0 %v1869
    %v2669 = vpop.f32.mrf.mxu0
    %v2670 = vadd.f32 %v537, %v2669
    %v2671 = vpop.f32.mrf.mxu0
    %v2672 = vadd.f32 %v537, %v2671
    %2673 = vmatmul.bf16.gmra.mxu0 %v1872
    %v2674 = vpop.f32.mrf.mxu0
    %v2675 = vadd.f32 %v537, %v2674
    %v2676 = vpop.f32.mrf.mxu0
    %v2677 = vadd.f32 %v537, %v2676
    %2678 = vmatmul.bf16.gmra.mxu0 %v1875
    %v2679 = vpop.f32.mrf.mxu0
    %v2680 = vadd.f32 %v537, %v2679
    %v2681 = vpop.f32.mrf.mxu0
    %v2682 = vadd.f32 %v537, %v2681
    %2683 = vmatmul.bf16.gmra.mxu0 %v1878
    %v2684 = vpop.f32.mrf.mxu0
    %v2685 = vadd.f32 %v537, %v2684
    %v2686 = vpop.f32.mrf.mxu0
    %v2687 = vadd.f32 %v537, %v2686
    %2688 = vmatmul.bf16.gmra.mxu0 %v1881
    %v2689 = vpop.f32.mrf.mxu0
    %v2690 = vadd.f32 %v537, %v2689
    %v2691 = vpop.f32.mrf.mxu0
    %v2692 = vadd.f32 %v537, %v2691
    %2693 = vmatmul.bf16.gmra.mxu0 %v1884
    %v2694 = vpop.f32.mrf.mxu0
    %v2695 = vadd.f32 %v537, %v2694
    %v2696 = vpop.f32.mrf.mxu0
    %v2697 = vadd.f32 %v537, %v2696
    %2698 = vmatmul.bf16.gmra.mxu0 %v1887
    %v2699 = vpop.f32.mrf.mxu0
    %v2700 = vadd.f32 %v537, %v2699
    %v2701 = vpop.f32.mrf.mxu0
    %v2702 = vadd.f32 %v537, %v2701
    %2703 = vmatmul.bf16.gmra.mxu0 %v1890
    %v2704 = vpop.f32.mrf.mxu0
    %v2705 = vadd.f32 %v537, %v2704
    %v2706 = vpop.f32.mrf.mxu0
    %v2707 = vadd.f32 %v537, %v2706
    %2708 = vmatmul.bf16.gmra.mxu0 %v1893
    %v2709 = vpop.f32.mrf.mxu0
    %v2710 = vadd.f32 %v537, %v2709
    %v2711 = vpop.f32.mrf.mxu0
    %v2712 = vadd.f32 %v537, %v2711
    %2713 = vmatmul.bf16.gmra.mxu0 %v1896
    %v2714 = vpop.f32.mrf.mxu0
    %v2715 = vadd.f32 %v537, %v2714
    %v2716 = vpop.f32.mrf.mxu0
    %v2717 = vadd.f32 %v537, %v2716
    %2718 = vmatmul.bf16.gmra.mxu0 %v1899
    %v2719 = vpop.f32.mrf.mxu0
    %v2720 = vadd.f32 %v537, %v2719
    %v2721 = vpop.f32.mrf.mxu0
    %v2722 = vadd.f32 %v537, %v2721
    %2723 = vmatmul.bf16.gmra.mxu0 %v1902
    %v2724 = vpop.f32.mrf.mxu0
    %v2725 = vadd.f32 %v537, %v2724
    %v2726 = vpop.f32.mrf.mxu0
    %v2727 = vadd.f32 %v537, %v2726
    %2728 = vmatmul.bf16.gmra.mxu0 %v1905
    %v2729 = vpop.f32.mrf.mxu0
    %v2730 = vadd.f32 %v537, %v2729
    %v2731 = vpop.f32.mrf.mxu0
    %v2732 = vadd.f32 %v537, %v2731
    %2733 = vmatmul.bf16.gmra.mxu0 %v1908
    %v2734 = vpop.f32.mrf.mxu0
    %v2735 = vadd.f32 %v537, %v2734
    %v2736 = vpop.f32.mrf.mxu0
    %v2737 = vadd.f32 %v537, %v2736
    %2738 = vmatmul.bf16.gmra.mxu0 %v1911
    %v2739 = vpop.f32.mrf.mxu0
    %v2740 = vadd.f32 %v537, %v2739
    %v2741 = vpop.f32.mrf.mxu0
    %v2742 = vadd.f32 %v537, %v2741
    %2743 = vmatmul.bf16.gmra.mxu0 %v1914
    %v2744 = vpop.f32.mrf.mxu0
    %v2745 = vadd.f32 %v537, %v2744
    %v2746 = vpop.f32.mrf.mxu0
    %v2747 = vadd.f32 %v537, %v2746
    %2748 = vmatmul.bf16.gmra.mxu0 %v1917
    %v2749 = vpop.f32.mrf.mxu0
    %v2750 = vadd.f32 %v537, %v2749
    %v2751 = vpop.f32.mrf.mxu0
    %v2752 = vadd.f32 %v537, %v2751
    %2753 = vmatmul.bf16.gmra.mxu0 %v1920
    %v2754 = vpop.f32.mrf.mxu0
    %v2755 = vadd.f32 %v537, %v2754
    %v2756 = vpop.f32.mrf.mxu0
    %v2757 = vadd.f32 %v537, %v2756
    %2758 = vmatmul.bf16.gmra.mxu0 %v1923
    %v2759 = vpop.f32.mrf.mxu0
    %v2760 = vadd.f32 %v537, %v2759
    %v2761 = vpop.f32.mrf.mxu0
    %v2762 = vadd.f32 %v537, %v2761
    %2763 = vmatmul.bf16.gmra.mxu0 %v1926
    %v2764 = vpop.f32.mrf.mxu0
    %v2765 = vadd.f32 %v537, %v2764
    %v2766 = vpop.f32.mrf.mxu0
    %v2767 = vadd.f32 %v537, %v2766
    %2768 = vmatmul.bf16.gmra.mxu0 %v1929
    %v2769 = vpop.f32.mrf.mxu0
    %v2770 = vadd.f32 %v537, %v2769
    %v2771 = vpop.f32.mrf.mxu0
    %v2772 = vadd.f32 %v537, %v2771
    %2773 = vmatmul.bf16.gmra.mxu0 %v1932
    %v2774 = vpop.f32.mrf.mxu0
    %v2775 = vadd.f32 %v537, %v2774
    %v2776 = vpop.f32.mrf.mxu0
    %v2777 = vadd.f32 %v537, %v2776
    %2778 = vmatmul.bf16.gmra.mxu0 %v1935
    %v2779 = vpop.f32.mrf.mxu0
    %v2780 = vadd.f32 %v537, %v2779
    %v2781 = vpop.f32.mrf.mxu0
    %v2782 = vadd.f32 %v537, %v2781
    %2783 = vmatmul.bf16.gmra.mxu0 %v1938
    %v2784 = vpop.f32.mrf.mxu0
    %v2785 = vadd.f32 %v537, %v2784
    %v2786 = vpop.f32.mrf.mxu0
    %v2787 = vadd.f32 %v537, %v2786
    %2788 = vmatmul.bf16.gmra.mxu0 %v1941
    %v2789 = vpop.f32.mrf.mxu0
    %v2790 = vadd.f32 %v537, %v2789
    %v2791 = vpop.f32.mrf.mxu0
    %v2792 = vadd.f32 %v537, %v2791
    %2793 = vmatmul.bf16.gmra.mxu0 %v1944
    %v2794 = vpop.f32.mrf.mxu0
    %v2795 = vadd.f32 %v537, %v2794
    %v2796 = vpop.f32.mrf.mxu0
    %v2797 = vadd.f32 %v537, %v2796
    %2798 = vmatmul.bf16.gmra.mxu0 %v1947
    %v2799 = vpop.f32.mrf.mxu0
    %v2800 = vadd.f32 %v537, %v2799
    %v2801 = vpop.f32.mrf.mxu0
    %v2802 = vadd.f32 %v537, %v2801
    %2803 = vmatmul.bf16.gmra.mxu0 %v1950
    %v2804 = vpop.f32.mrf.mxu0
    %v2805 = vadd.f32 %v537, %v2804
    %v2806 = vpop.f32.mrf.mxu0
    %v2807 = vadd.f32 %v537, %v2806
    %2808 = vmatmul.bf16.gmra.mxu0 %v1953
    %v2809 = vpop.f32.mrf.mxu0
    %v2810 = vadd.f32 %v537, %v2809
    %v2811 = vpop.f32.mrf.mxu0
    %v2812 = vadd.f32 %v537, %v2811
    %2813 = vmatmul.bf16.gmra.mxu0 %v1956
    %v2814 = vpop.f32.mrf.mxu0
    %v2815 = vadd.f32 %v537, %v2814
    %v2816 = vpop.f32.mrf.mxu0
    %v2817 = vadd.f32 %v537, %v2816
    %2818 = vmatmul.bf16.gmra.mxu0 %v1959
    %v2819 = vpop.f32.mrf.mxu0
    %v2820 = vadd.f32 %v537, %v2819
    %v2821 = vpop.f32.mrf.mxu0
    %v2822 = vadd.f32 %v537, %v2821
    %2823 = vmatmul.bf16.gmra.mxu0 %v1962
    %v2824 = vpop.f32.mrf.mxu0
    %v2825 = vadd.f32 %v537, %v2824
    %v2826 = vpop.f32.mrf.mxu0
    %v2827 = vadd.f32 %v537, %v2826
    %2828 = vmatmul.bf16.gmra.mxu0 %v1965
    %v2829 = vpop.f32.mrf.mxu0
    %v2830 = vadd.f32 %v537, %v2829
    %v2831 = vpop.f32.mrf.mxu0
    %v2832 = vadd.f32 %v537, %v2831
    %2833 = vmatmul.bf16.gmra.mxu0 %v1968
    %v2834 = vpop.f32.mrf.mxu0
    %v2835 = vadd.f32 %v537, %v2834
    %v2836 = vpop.f32.mrf.mxu0
    %v2837 = vadd.f32 %v537, %v2836
    %2838 = vmatmul.bf16.gmra.mxu0 %v1971
    %v2839 = vpop.f32.mrf.mxu0
    %v2840 = vadd.f32 %v537, %v2839
    %v2841 = vpop.f32.mrf.mxu0
    %v2842 = vadd.f32 %v537, %v2841
    %2843 = vmatmul.bf16.gmra.mxu0 %v1974
    %v2844 = vpop.f32.mrf.mxu0
    %v2845 = vadd.f32 %v537, %v2844
    %v2846 = vpop.f32.mrf.mxu0
    %v2847 = vadd.f32 %v537, %v2846
    %2848 = vmatmul.bf16.gmra.mxu0 %v1977
    %v2849 = vpop.f32.mrf.mxu0
    %v2850 = vadd.f32 %v537, %v2849
    %v2851 = vpop.f32.mrf.mxu0
    %v2852 = vadd.f32 %v537, %v2851
    %2853 = vmatmul.bf16.gmra.mxu0 %v1980
    %v2854 = vpop.f32.mrf.mxu0
    %v2855 = vadd.f32 %v537, %v2854
    %v2856 = vpop.f32.mrf.mxu0
    %v2857 = vadd.f32 %v537, %v2856
    %2858 = vmatmul.bf16.gmra.mxu0 %v1983
    %v2859 = vpop.f32.mrf.mxu0
    %v2860 = vadd.f32 %v537, %v2859
    %v2861 = vpop.f32.mrf.mxu0
    %v2862 = vadd.f32 %v537, %v2861
    %2863 = vmatmul.bf16.gmra.mxu0 %v1986
    %v2864 = vpop.f32.mrf.mxu0
    %v2865 = vadd.f32 %v537, %v2864
    %v2866 = vpop.f32.mrf.mxu0
    %v2867 = vadd.f32 %v537, %v2866
    %2868 = vmatmul.bf16.gmra.mxu0 %v1989
    %v2869 = vpop.f32.mrf.mxu0
    %v2870 = vadd.f32 %v537, %v2869
    %v2871 = vpop.f32.mrf.mxu0
    %v2872 = vadd.f32 %v537, %v2871
    %2873 = vmatmul.bf16.gmra.mxu0 %v1992
    %v2874 = vpop.f32.mrf.mxu0
    %v2875 = vadd.f32 %v537, %v2874
    %v2876 = vpop.f32.mrf.mxu0
    %v2877 = vadd.f32 %v537, %v2876
    %2878 = vmatmul.bf16.gmra.mxu0 %v1995
    %v2879 = vpop.f32.mrf.mxu0
    %v2880 = vadd.f32 %v537, %v2879
    %v2881 = vpop.f32.mrf.mxu0
    %v2882 = vadd.f32 %v537, %v2881
    %2883 = vmatmul.bf16.gmra.mxu0 %v1998
    %v2884 = vpop.f32.mrf.mxu0
    %v2885 = vadd.f32 %v537, %v2884
    %v2886 = vpop.f32.mrf.mxu0
    %v2887 = vadd.f32 %v537, %v2886
    %2888 = vmatmul.bf16.gmra.mxu0 %v2001
    %v2889 = vpop.f32.mrf.mxu0
    %v2890 = vadd.f32 %v537, %v2889
    %v2891 = vpop.f32.mrf.mxu0
    %v2892 = vadd.f32 %v537, %v2891
    %2893 = vmatmul.bf16.gmra.mxu0 %v2004
    %v2894 = vpop.f32.mrf.mxu0
    %v2895 = vadd.f32 %v537, %v2894
    %v2896 = vpop.f32.mrf.mxu0
    %v2897 = vadd.f32 %v537, %v2896
    %2898 = vmatmul.bf16.gmra.mxu0 %v2007
    %v2899 = vpop.f32.mrf.mxu0
    %v2900 = vadd.f32 %v537, %v2899
    %v2901 = vpop.f32.mrf.mxu0
    %v2902 = vadd.f32 %v537, %v2901
    %2903 = vmatmul.bf16.gmra.mxu0 %v2010
    %v2904 = vpop.f32.mrf.mxu0
    %v2905 = vadd.f32 %v537, %v2904
    %v2906 = vpop.f32.mrf.mxu0
    %v2907 = vadd.f32 %v537, %v2906
    %2908 = vmatmul.bf16.gmra.mxu0 %v2013
    %v2909 = vpop.f32.mrf.mxu0
    %v2910 = vadd.f32 %v537, %v2909
    %v2911 = vpop.f32.mrf.mxu0
    %v2912 = vadd.f32 %v537, %v2911
    %2913 = vmatmul.bf16.gmra.mxu0 %v2016
    %v2914 = vpop.f32.mrf.mxu0
    %v2915 = vadd.f32 %v537, %v2914
    %v2916 = vpop.f32.mrf.mxu0
    %v2917 = vadd.f32 %v537, %v2916
    %2918 = vmatmul.bf16.gmra.mxu0 %v2019
    %v2919 = vpop.f32.mrf.mxu0
    %v2920 = vadd.f32 %v537, %v2919
    %v2921 = vpop.f32.mrf.mxu0
    %v2922 = vadd.f32 %v537, %v2921
    %2923 = vmatmul.bf16.gmra.mxu0 %v2022
    %v2924 = vpop.f32.mrf.mxu0
    %v2925 = vadd.f32 %v537, %v2924
    %v2926 = vpop.f32.mrf.mxu0
    %v2927 = vadd.f32 %v537, %v2926
    %2928 = vmatmul.bf16.gmra.mxu0 %v2025
    %v2929 = vpop.f32.mrf.mxu0
    %v2930 = vadd.f32 %v537, %v2929
    %v2931 = vpop.f32.mrf.mxu0
    %v2932 = vadd.f32 %v537, %v2931
    %2933 = vmatmul.bf16.gmra.mxu0 %v2028
    %v2934 = vpop.f32.mrf.mxu0
    %v2935 = vadd.f32 %v537, %v2934
    %v2936 = vpop.f32.mrf.mxu0
    %v2937 = vadd.f32 %v537, %v2936
    %2938 = vmatmul.bf16.gmra.mxu0 %v2031
    %v2939 = vpop.f32.mrf.mxu0
    %v2940 = vadd.f32 %v537, %v2939
    %v2941 = vpop.f32.mrf.mxu0
    %v2942 = vadd.f32 %v537, %v2941
    %2943 = vmatmul.bf16.gmra.mxu0 %v2034
    %v2944 = vpop.f32.mrf.mxu0
    %v2945 = vadd.f32 %v537, %v2944
    %v2946 = vpop.f32.mrf.mxu0
    %v2947 = vadd.f32 %v537, %v2946
    %2948 = vmatmul.bf16.gmra.mxu0 %v2037
    %v2949 = vpop.f32.mrf.mxu0
    %v2950 = vadd.f32 %v537, %v2949
    %v2951 = vpop.f32.mrf.mxu0
    %v2952 = vadd.f32 %v537, %v2951
    %2953 = vmatmul.bf16.gmra.mxu0 %v2040
    %v2954 = vpop.f32.mrf.mxu0
    %v2955 = vadd.f32 %v537, %v2954
    %v2956 = vpop.f32.mrf.mxu0
    %v2957 = vadd.f32 %v537, %v2956
    %2958 = vmatmul.bf16.gmra.mxu0 %v2043
    %v2959 = vpop.f32.mrf.mxu0
    %v2960 = vadd.f32 %v537, %v2959
    %v2961 = vpop.f32.mrf.mxu0
    %v2962 = vadd.f32 %v537, %v2961
    %2963 = vmatmul.bf16.gmra.mxu0 %v2046
    %v2964 = vpop.f32.mrf.mxu0
    %v2965 = vadd.f32 %v537, %v2964
    %v2966 = vpop.f32.mrf.mxu0
    %v2967 = vadd.f32 %v537, %v2966
    %2968 = vmatmul.bf16.gmra.mxu0 %v2049
    %v2969 = vpop.f32.mrf.mxu0
    %v2970 = vadd.f32 %v537, %v2969
    %v2971 = vpop.f32.mrf.mxu0
    %v2972 = vadd.f32 %v537, %v2971
    %2973 = vmatmul.bf16.gmra.mxu0 %v2052
    %v2974 = vpop.f32.mrf.mxu0
    %v2975 = vadd.f32 %v537, %v2974
    %v2976 = vpop.f32.mrf.mxu0
    %v2977 = vadd.f32 %v537, %v2976
    %2978 = vmatmul.bf16.gmra.mxu0 %v2055
    %v2979 = vpop.f32.mrf.mxu0
    %v2980 = vadd.f32 %v537, %v2979
    %v2981 = vpop.f32.mrf.mxu0
    %v2982 = vadd.f32 %v537, %v2981
    %2983 = vmatmul.bf16.gmra.mxu0 %v2058
    %v2984 = vpop.f32.mrf.mxu0
    %v2985 = vadd.f32 %v537, %v2984
    %v2986 = vpop.f32.mrf.mxu0
    %v2987 = vadd.f32 %v537, %v2986
    %2988 = vmatmul.bf16.gmra.mxu0 %v2061
    %v2989 = vpop.f32.mrf.mxu0
    %v2990 = vadd.f32 %v537, %v2989
    %v2991 = vpop.f32.mrf.mxu0
    %v2992 = vadd.f32 %v537, %v2991
    %2993 = vmatmul.bf16.gmra.mxu0 %v2064
    %v2994 = vpop.f32.mrf.mxu0
    %v2995 = vadd.f32 %v537, %v2994
    %v2996 = vpop.f32.mrf.mxu0
    %v2997 = vadd.f32 %v537, %v2996
    %2998 = vmatmul.bf16.gmra.mxu0 %v2067
    %v2999 = vpop.f32.mrf.mxu0
    %v3000 = vadd.f32 %v537, %v2999
    %v3001 = vpop.f32.mrf.mxu0
    %v3002 = vadd.f32 %v537, %v3001
    %3003 = vmatmul.bf16.gmra.mxu0 %v2070
    %v3004 = vpop.f32.mrf.mxu0
    %v3005 = vadd.f32 %v537, %v3004
    %v3006 = vpop.f32.mrf.mxu0
    %v3007 = vadd.f32 %v537, %v3006
    %3008 = vmatmul.bf16.gmra.mxu0 %v2073
    %v3009 = vpop.f32.mrf.mxu0
    %v3010 = vadd.f32 %v537, %v3009
    %v3011 = vpop.f32.mrf.mxu0
    %v3012 = vadd.f32 %v537, %v3011
    %3013 = vmatmul.bf16.gmra.mxu0 %v2076
    %v3014 = vpop.f32.mrf.mxu0
    %v3015 = vadd.f32 %v537, %v3014
    %v3016 = vpop.f32.mrf.mxu0
    %v3017 = vadd.f32 %v537, %v3016
    %3018 = vmatmul.bf16.gmra.mxu0 %v2079
    %v3019 = vpop.f32.mrf.mxu0
    %v3020 = vadd.f32 %v537, %v3019
    %v3021 = vpop.f32.mrf.mxu0
    %v3022 = vadd.f32 %v537, %v3021
    %3023 = vmatmul.bf16.gmra.mxu0 %v2082
    %v3024 = vpop.f32.mrf.mxu0
    %v3025 = vadd.f32 %v537, %v3024
    %v3026 = vpop.f32.mrf.mxu0
    %v3027 = vadd.f32 %v537, %v3026
    %3028 = vmatmul.bf16.gmra.mxu0 %v2085
    %v3029 = vpop.f32.mrf.mxu0
    %v3030 = vadd.f32 %v537, %v3029
    %v3031 = vpop.f32.mrf.mxu0
    %v3032 = vadd.f32 %v537, %v3031
    %3033 = vmatmul.bf16.gmra.mxu0 %v2088
    %v3034 = vpop.f32.mrf.mxu0
    %v3035 = vadd.f32 %v537, %v3034
    %v3036 = vpop.f32.mrf.mxu0
    %v3037 = vadd.f32 %v537, %v3036
    %3038 = vmatmul.bf16.gmra.mxu0 %v2091
    %v3039 = vpop.f32.mrf.mxu0
    %v3040 = vadd.f32 %v537, %v3039
    %v3041 = vpop.f32.mrf.mxu0
    %v3042 = vadd.f32 %v537, %v3041
    %3043 = vmatmul.bf16.gmra.mxu0 %v2094
    %v3044 = vpop.f32.mrf.mxu0
    %v3045 = vadd.f32 %v537, %v3044
    %v3046 = vpop.f32.mrf.mxu0
    %v3047 = vadd.f32 %v537, %v3046
    %3048 = vmatmul.bf16.gmra.mxu0 %v2097
    %v3049 = vpop.f32.mrf.mxu0
    %v3050 = vadd.f32 %v537, %v3049
    %v3051 = vpop.f32.mrf.mxu0
    %v3052 = vadd.f32 %v537, %v3051
    %3053 = vmatmul.bf16.gmra.mxu0 %v2100
    %v3054 = vpop.f32.mrf.mxu0
    %v3055 = vadd.f32 %v537, %v3054
    %v3056 = vpop.f32.mrf.mxu0
    %v3057 = vadd.f32 %v537, %v3056
    %3058 = vmatmul.bf16.gmra.mxu0 %v2103
    %v3059 = vpop.f32.mrf.mxu0
    %v3060 = vadd.f32 %v537, %v3059
    %v3061 = vpop.f32.mrf.mxu0
    %v3062 = vadd.f32 %v537, %v3061
    %3063 = vmatmul.bf16.gmra.mxu0 %v2106
    %v3064 = vpop.f32.mrf.mxu0
    %v3065 = vadd.f32 %v537, %v3064
    %v3066 = vpop.f32.mrf.mxu0
    %v3067 = vadd.f32 %v537, %v3066
    %3068 = vmatmul.bf16.gmra.mxu0 %v2109
    %v3069 = vpop.f32.mrf.mxu0
    %v3070 = vadd.f32 %v537, %v3069
    %v3071 = vpop.f32.mrf.mxu0
    %v3072 = vadd.f32 %v537, %v3071
    %3073 = vmatmul.bf16.gmra.mxu0 %v2112
    %v3074 = vpop.f32.mrf.mxu0
    %v3075 = vadd.f32 %v537, %v3074
    %v3076 = vpop.f32.mrf.mxu0
    %v3077 = vadd.f32 %v537, %v3076
    %3078 = vmatmul.bf16.gmra.mxu0 %v2115
    %v3079 = vpop.f32.mrf.mxu0
    %v3080 = vadd.f32 %v537, %v3079
    %v3081 = vpop.f32.mrf.mxu0
    %v3082 = vadd.f32 %v537, %v3081
    %3083 = vmatmul.bf16.gmra.mxu0 %v2118
    %v3084 = vpop.f32.mrf.mxu0
    %v3085 = vadd.f32 %v537, %v3084
    %v3086 = vpop.f32.mrf.mxu0
    %v3087 = vadd.f32 %v537, %v3086
    %3088 = vmatmul.bf16.gmra.mxu0 %v2121
    %v3089 = vpop.f32.mrf.mxu0
    %v3090 = vadd.f32 %v537, %v3089
    %v3091 = vpop.f32.mrf.mxu0
    %v3092 = vadd.f32 %v537, %v3091
    %3093 = vmatmul.bf16.gmra.mxu0 %v2124
    %v3094 = vpop.f32.mrf.mxu0
    %v3095 = vadd.f32 %v537, %v3094
    %v3096 = vpop.f32.mrf.mxu0
    %v3097 = vadd.f32 %v537, %v3096
    %3098 = vmatmul.bf16.gmra.mxu0 %v2127
    %v3099 = vpop.f32.mrf.mxu0
    %v3100 = vadd.f32 %v537, %v3099
    %v3101 = vpop.f32.mrf.mxu0
    %v3102 = vadd.f32 %v537, %v3101
    %3103 = vmatmul.bf16.gmra.mxu0 %v2130
    %v3104 = vpop.f32.mrf.mxu0
    %v3105 = vadd.f32 %v537, %v3104
    %v3106 = vpop.f32.mrf.mxu0
    %v3107 = vadd.f32 %v537, %v3106
    %3108 = vmatmul.bf16.gmra.mxu0 %v2133
    %v3109 = vpop.f32.mrf.mxu0
    %v3110 = vadd.f32 %v537, %v3109
    %v3111 = vpop.f32.mrf.mxu0
    %v3112 = vadd.f32 %v537, %v3111
    %3113 = vmatmul.bf16.gmra.mxu0 %v2136
    %v3114 = vpop.f32.mrf.mxu0
    %v3115 = vadd.f32 %v537, %v3114
    %v3116 = vpop.f32.mrf.mxu0
    %v3117 = vadd.f32 %v537, %v3116
    %3118 = vmatmul.bf16.gmra.mxu0 %v2139
    %v3119 = vpop.f32.mrf.mxu0
    %v3120 = vadd.f32 %v537, %v3119
    %v3121 = vpop.f32.mrf.mxu0
    %v3122 = vadd.f32 %v537, %v3121
    %3123 = vmatmul.bf16.gmra.mxu0 %v2142
    %v3124 = vpop.f32.mrf.mxu0
    %v3125 = vadd.f32 %v537, %v3124
    %v3126 = vpop.f32.mrf.mxu0
    %v3127 = vadd.f32 %v537, %v3126
    %3128 = vmatmul.bf16.gmra.mxu0 %v2145
    %v3129 = vpop.f32.mrf.mxu0
    %v3130 = vadd.f32 %v537, %v3129
    %v3131 = vpop.f32.mrf.mxu0
    %v3132 = vadd.f32 %v537, %v3131
    %3133 = vmatmul.bf16.gmra.mxu0 %v2148
    %v3134 = vpop.f32.mrf.mxu0
    %v3135 = vadd.f32 %v537, %v3134
    %v3136 = vpop.f32.mrf.mxu0
    %v3137 = vadd.f32 %v537, %v3136
    %3138 = vmatmul.bf16.gmra.mxu0 %v2151
    %v3139 = vpop.f32.mrf.mxu0
    %v3140 = vadd.f32 %v537, %v3139
    %v3141 = vpop.f32.mrf.mxu0
    %v3142 = vadd.f32 %v537, %v3141
    %3143 = vmatmul.bf16.gmra.mxu0 %v2154
    %v3144 = vpop.f32.mrf.mxu0
    %v3145 = vadd.f32 %v537, %v3144
    %v3146 = vpop.f32.mrf.mxu0
    %v3147 = vadd.f32 %v537, %v3146
    %3148 = vmatmul.bf16.gmra.mxu0 %v2157
    %v3149 = vpop.f32.mrf.mxu0
    %v3150 = vadd.f32 %v537, %v3149
    %v3151 = vpop.f32.mrf.mxu0
    %v3152 = vadd.f32 %v537, %v3151
    %3153 = vmatmul.bf16.gmra.mxu0 %v2160
    %v3154 = vpop.f32.mrf.mxu0
    %v3155 = vadd.f32 %v537, %v3154
    %v3156 = vpop.f32.mrf.mxu0
    %v3157 = vadd.f32 %v537, %v3156
    %3158 = vmatmul.bf16.gmra.mxu0 %v2163
    %v3159 = vpop.f32.mrf.mxu0
    %v3160 = vadd.f32 %v537, %v3159
    %v3161 = vpop.f32.mrf.mxu0
    %v3162 = vadd.f32 %v537, %v3161
    %3163 = vmatmul.bf16.gmra.mxu0 %v2166
    %v3164 = vpop.f32.mrf.mxu0
    %v3165 = vadd.f32 %v537, %v3164
    %v3166 = vpop.f32.mrf.mxu0
    %v3167 = vadd.f32 %v537, %v3166
    %3168 = vmatmul.bf16.gmra.mxu0 %v2169
    %v3169 = vpop.f32.mrf.mxu0
    %v3170 = vadd.f32 %v537, %v3169
    %v3171 = vpop.f32.mrf.mxu0
    %v3172 = vadd.f32 %v537, %v3171
    %3173 = vmatmul.bf16.gmra.mxu0 %v2172
    %v3174 = vpop.f32.mrf.mxu0
    %v3175 = vadd.f32 %v537, %v3174
    %v3176 = vpop.f32.mrf.mxu0
    %v3177 = vadd.f32 %v537, %v3176
    %3178 = vmatmul.bf16.gmra.mxu0 %v2175
    %v3179 = vpop.f32.mrf.mxu0
    %v3180 = vadd.f32 %v537, %v3179
    %v3181 = vpop.f32.mrf.mxu0
    %v3182 = vadd.f32 %v537, %v3181
    %3183 = vmatmul.bf16.gmra.mxu0 %v2178
    %v3184 = vpop.f32.mrf.mxu0
    %v3185 = vadd.f32 %v537, %v3184
    %v3186 = vpop.f32.mrf.mxu0
    %v3187 = vadd.f32 %v537, %v3186
    %3188 = vmatmul.bf16.gmra.mxu0 %v2181
    %v3189 = vpop.f32.mrf.mxu0
    %v3190 = vadd.f32 %v537, %v3189
    %v3191 = vpop.f32.mrf.mxu0
    %v3192 = vadd.f32 %v537, %v3191
    %3193 = vmatmul.bf16.gmra.mxu0 %v2184
    %v3194 = vpop.f32.mrf.mxu0
    %v3195 = vadd.f32 %v537, %v3194
    %v3196 = vpop.f32.mrf.mxu0
    %v3197 = vadd.f32 %v537, %v3196
    %3198 = vmatmul.bf16.gmra.mxu0 %v2187
    %v3199 = vpop.f32.mrf.mxu0
    %v3200 = vadd.f32 %v537, %v3199
    %v3201 = vpop.f32.mrf.mxu0
    %v3202 = vadd.f32 %v537, %v3201
    %3203 = vmatmul.bf16.gmra.mxu0 %v2190
    %v3204 = vpop.f32.mrf.mxu0
    %v3205 = vadd.f32 %v537, %v3204
    %v3206 = vpop.f32.mrf.mxu0
    %v3207 = vadd.f32 %v537, %v3206
    %3208 = vmatmul.bf16.gmra.mxu0 %v2193
    %v3209 = vpop.f32.mrf.mxu0
    %v3210 = vadd.f32 %v537, %v3209
    %v3211 = vpop.f32.mrf.mxu0
    %v3212 = vadd.f32 %v537, %v3211
    %3213 = vmatmul.bf16.gmra.mxu0 %v2196
    %v3214 = vpop.f32.mrf.mxu0
    %v3215 = vadd.f32 %v537, %v3214
    %v3216 = vpop.f32.mrf.mxu0
    %v3217 = vadd.f32 %v537, %v3216
    %3218 = vmatmul.bf16.gmra.mxu0 %v2199
    %v3219 = vpop.f32.mrf.mxu0
    %v3220 = vadd.f32 %v537, %v3219
    %v3221 = vpop.f32.mrf.mxu0
    %v3222 = vadd.f32 %v537, %v3221
    %3223 = vmatmul.bf16.gmra.mxu0 %v2202
    %v3224 = vpop.f32.mrf.mxu0
    %v3225 = vadd.f32 %v537, %v3224
    %v3226 = vpop.f32.mrf.mxu0
    %v3227 = vadd.f32 %v537, %v3226
    %3228 = vmatmul.bf16.gmra.mxu0 %v2205
    %v3229 = vpop.f32.mrf.mxu0
    %v3230 = vadd.f32 %v537, %v3229
    %v3231 = vpop.f32.mrf.mxu0
    %v3232 = vadd.f32 %v537, %v3231
    %3233 = vmatmul.bf16.gmra.mxu0 %v2208
    %v3234 = vpop.f32.mrf.mxu0
    %v3235 = vadd.f32 %v537, %v3234
    %v3236 = vpop.f32.mrf.mxu0
    %v3237 = vadd.f32 %v537, %v3236
    %3238 = vmatmul.bf16.gmra.mxu0 %v2211
    %v3239 = vpop.f32.mrf.mxu0
    %v3240 = vadd.f32 %v537, %v3239
    %v3241 = vpop.f32.mrf.mxu0
    %v3242 = vadd.f32 %v537, %v3241
    %3243 = vmatmul.bf16.gmra.mxu0 %v2214
    %v3244 = vpop.f32.mrf.mxu0
    %v3245 = vadd.f32 %v537, %v3244
    %v3246 = vpop.f32.mrf.mxu0
    %v3247 = vadd.f32 %v537, %v3246
    %3248 = vmatmul.bf16.gmra.mxu0 %v2217
    %v3249 = vpop.f32.mrf.mxu0
    %v3250 = vadd.f32 %v537, %v3249
    %v3251 = vpop.f32.mrf.mxu0
    %v3252 = vadd.f32 %v537, %v3251
    %3253 = vmatmul.bf16.gmra.mxu0 %v2220
    %v3254 = vpop.f32.mrf.mxu0
    %v3255 = vadd.f32 %v537, %v3254
    %v3256 = vpop.f32.mrf.mxu0
    %v3257 = vadd.f32 %v537, %v3256
    %3258 = vmatmul.bf16.gmra.mxu0 %v2223
    %v3259 = vpop.f32.mrf.mxu0
    %v3260 = vadd.f32 %v537, %v3259
    %v3261 = vpop.f32.mrf.mxu0
    %v3262 = vadd.f32 %v537, %v3261
    %3263 = vmatmul.bf16.gmra.mxu0 %v2226
    %v3264 = vpop.f32.mrf.mxu0
    %v3265 = vadd.f32 %v537, %v3264
    %v3266 = vpop.f32.mrf.mxu0
    %v3267 = vadd.f32 %v537, %v3266
    %3268 = vmatmul.bf16.gmra.mxu0 %v2229
    %v3269 = vpop.f32.mrf.mxu0
    %v3270 = vadd.f32 %v537, %v3269
    %v3271 = vpop.f32.mrf.mxu0
    %v3272 = vadd.f32 %v537, %v3271
    %3273 = vmatmul.bf16.gmra.mxu0 %v2232
    %v3274 = vpop.f32.mrf.mxu0
    %v3275 = vadd.f32 %v537, %v3274
    %v3276 = vpop.f32.mrf.mxu0
    %v3277 = vadd.f32 %v537, %v3276
    %3278 = vmatmul.bf16.gmra.mxu0 %v2235
    %v3279 = vpop.f32.mrf.mxu0
    %v3280 = vadd.f32 %v537, %v3279
    %v3281 = vpop.f32.mrf.mxu0
    %v3282 = vadd.f32 %v537, %v3281
    %3283 = vmatmul.bf16.gmra.mxu0 %v2238
    %v3284 = vpop.f32.mrf.mxu0
    %v3285 = vadd.f32 %v537, %v3284
    %v3286 = vpop.f32.mrf.mxu0
    %v3287 = vadd.f32 %v537, %v3286
    %3288 = vmatmul.bf16.gmra.mxu0 %v2241
    %v3289 = vpop.f32.mrf.mxu0
    %v3290 = vadd.f32 %v537, %v3289
    %v3291 = vpop.f32.mrf.mxu0
    %v3292 = vadd.f32 %v537, %v3291
    %3293 = vmatmul.bf16.gmra.mxu0 %v2244
    %v3294 = vpop.f32.mrf.mxu0
    %v3295 = vadd.f32 %v537, %v3294
    %v3296 = vpop.f32.mrf.mxu0
    %v3297 = vadd.f32 %v537, %v3296
    %3298 = vmatmul.bf16.gmra.mxu0 %v2247
    %v3299 = vpop.f32.mrf.mxu0
    %v3300 = vadd.f32 %v537, %v3299
    %v3301 = vpop.f32.mrf.mxu0
    %v3302 = vadd.f32 %v537, %v3301
    %3303 = vmatmul.bf16.gmra.mxu0 %v2250
    %v3304 = vpop.f32.mrf.mxu0
    %v3305 = vadd.f32 %v537, %v3304
    %v3306 = vpop.f32.mrf.mxu0
    %v3307 = vadd.f32 %v537, %v3306
    %3308 = vmatmul.bf16.gmra.mxu0 %v2253
    %v3309 = vpop.f32.mrf.mxu0
    %v3310 = vadd.f32 %v537, %v3309
    %v3311 = vpop.f32.mrf.mxu0
    %v3312 = vadd.f32 %v537, %v3311
    %3313 = vmatmul.bf16.gmra.mxu0 %v2256
    %v3314 = vpop.f32.mrf.mxu0
    %v3315 = vadd.f32 %v537, %v3314
    %v3316 = vpop.f32.mrf.mxu0
    %v3317 = vadd.f32 %v537, %v3316
    %3318 = vmatmul.bf16.gmra.mxu0 %v2259
    %v3319 = vpop.f32.mrf.mxu0
    %v3320 = vadd.f32 %v537, %v3319
    %v3321 = vpop.f32.mrf.mxu0
    %v3322 = vadd.f32 %v537, %v3321
    %3323 = vmatmul.bf16.gmra.mxu0 %v2262
    %v3324 = vpop.f32.mrf.mxu0
    %v3325 = vadd.f32 %v537, %v3324
    %v3326 = vpop.f32.mrf.mxu0
    %v3327 = vadd.f32 %v537, %v3326
    %3328 = vmatmul.bf16.gmra.mxu0 %v2265
    %v3329 = vpop.f32.mrf.mxu0
    %v3330 = vadd.f32 %v537, %v3329
    %v3331 = vpop.f32.mrf.mxu0
    %v3332 = vadd.f32 %v537, %v3331
    %3333 = vmatmul.bf16.gmra.mxu0 %v2268
    %v3334 = vpop.f32.mrf.mxu0
    %v3335 = vadd.f32 %v537, %v3334
    %v3336 = vpop.f32.mrf.mxu0
    %v3337 = vadd.f32 %v537, %v3336
    %3338 = vmatmul.bf16.gmra.mxu0 %v2271
    %v3339 = vpop.f32.mrf.mxu0
    %v3340 = vadd.f32 %v537, %v3339
    %v3341 = vpop.f32.mrf.mxu0
    %v3342 = vadd.f32 %v537, %v3341
    %3343 = vmatmul.bf16.gmra.mxu0 %v2274
    %v3344 = vpop.f32.mrf.mxu0
    %v3345 = vadd.f32 %v537, %v3344
    %v3346 = vpop.f32.mrf.mxu0
    %v3347 = vadd.f32 %v537, %v3346
    %3348 = vmatmul.bf16.gmra.mxu0 %v2277
    %v3349 = vpop.f32.mrf.mxu0
    %v3350 = vadd.f32 %v537, %v3349
    %v3351 = vpop.f32.mrf.mxu0
    %v3352 = vadd.f32 %v537, %v3351
    %3353 = vmatmul.bf16.gmra.mxu0 %v2280
    %v3354 = vpop.f32.mrf.mxu0
    %v3355 = vadd.f32 %v537, %v3354
    %v3356 = vpop.f32.mrf.mxu0
    %v3357 = vadd.f32 %v537, %v3356
    %3358 = vmatmul.bf16.gmra.mxu0 %v2283
    %v3359 = vpop.f32.mrf.mxu0
    %v3360 = vadd.f32 %v537, %v3359
    %v3361 = vpop.f32.mrf.mxu0
    %v3362 = vadd.f32 %v537, %v3361
    %3363 = vmatmul.bf16.gmra.mxu0 %v2286
    %v3364 = vpop.f32.mrf.mxu0
    %v3365 = vadd.f32 %v537, %v3364
    %v3366 = vpop.f32.mrf.mxu0
    %v3367 = vadd.f32 %v537, %v3366
    %3368 = vmatmul.bf16.gmra.mxu0 %v2289
    %v3369 = vpop.f32.mrf.mxu0
    %v3370 = vadd.f32 %v537, %v3369
    %v3371 = vpop.f32.mrf.mxu0
    %v3372 = vadd.f32 %v537, %v3371
    %3373 = vmatmul.bf16.gmra.mxu0 %v2292
    %v3374 = vpop.f32.mrf.mxu0
    %v3375 = vadd.f32 %v537, %v3374
    %v3376 = vpop.f32.mrf.mxu0
    %v3377 = vadd.f32 %v537, %v3376
    %3378 = vmatmul.bf16.gmra.mxu0 %v2295
    %v3379 = vpop.f32.mrf.mxu0
    %v3380 = vadd.f32 %v537, %v3379
    %v3381 = vpop.f32.mrf.mxu0
    %v3382 = vadd.f32 %v537, %v3381
    %3383 = vmatmul.bf16.gmra.mxu0 %v2298
    %v3384 = vpop.f32.mrf.mxu0
    %v3385 = vadd.f32 %v537, %v3384
    %v3386 = vpop.f32.mrf.mxu0
    %v3387 = vadd.f32 %v537, %v3386
    %3388 = vmatmul.bf16.gmra.mxu0 %v2301
    %v3389 = vpop.f32.mrf.mxu0
    %v3390 = vadd.f32 %v537, %v3389
    %v3391 = vpop.f32.mrf.mxu0
    %v3392 = vadd.f32 %v537, %v3391
    %3393 = vmatmul.bf16.gmra.mxu0 %v2304
    %v3394 = vpop.f32.mrf.mxu0
    %v3395 = vadd.f32 %v537, %v3394
    %v3396 = vpop.f32.mrf.mxu0
    %v3397 = vadd.f32 %v537, %v3396
    %3398 = vmatmul.bf16.gmra.mxu0 %v2307
    %v3399 = vpop.f32.mrf.mxu0
    %v3400 = vadd.f32 %v537, %v3399
    %v3401 = vpop.f32.mrf.mxu0
    %v3402 = vadd.f32 %v537, %v3401
    %3403 = vmatmul.bf16.gmra.mxu0 %v2310
    %v3404 = vpop.f32.mrf.mxu0
    %v3405 = vadd.f32 %v537, %v3404
    %v3406 = vpop.f32.mrf.mxu0
    %v3407 = vadd.f32 %v537, %v3406
    %3408 = vmatmul.bf16.gmra.mxu0 %v2313
    %v3409 = vpop.f32.mrf.mxu0
    %v3410 = vadd.f32 %v537, %v3409
    %v3411 = vpop.f32.mrf.mxu0
    %v3412 = vadd.f32 %v537, %v3411
    %3413 = vmatmul.bf16.gmra.mxu0 %v2316
    %v3414 = vpop.f32.mrf.mxu0
    %v3415 = vadd.f32 %v537, %v3414
    %v3416 = vpop.f32.mrf.mxu0
    %v3417 = vadd.f32 %v537, %v3416
    %3418 = vmatmul.bf16.gmra.mxu0 %v2319
    %v3419 = vpop.f32.mrf.mxu0
    %v3420 = vadd.f32 %v537, %v3419
    %v3421 = vpop.f32.mrf.mxu0
    %v3422 = vadd.f32 %v537, %v3421
    %3423 = vmatmul.bf16.gmra.mxu0 %v2322
    %v3424 = vpop.f32.mrf.mxu0
    %v3425 = vadd.f32 %v537, %v3424
    %v3426 = vpop.f32.mrf.mxu0
    %v3427 = vadd.f32 %v537, %v3426
    %3428 = vmatmul.bf16.gmra.mxu0 %v2325
    %v3429 = vpop.f32.mrf.mxu0
    %v3430 = vadd.f32 %v537, %v3429
    %v3431 = vpop.f32.mrf.mxu0
    %v3432 = vadd.f32 %v537, %v3431
    %3433 = vmatmul.bf16.gmra.mxu0 %v2328
    %v3434 = vpop.f32.mrf.mxu0
    %v3435 = vadd.f32 %v537, %v3434
    %v3436 = vpop.f32.mrf.mxu0
    %v3437 = vadd.f32 %v537, %v3436
    %3438 = vmatmul.bf16.gmra.mxu0 %v2331
    %v3439 = vpop.f32.mrf.mxu0
    %v3440 = vadd.f32 %v537, %v3439
    %v3441 = vpop.f32.mrf.mxu0
    %v3442 = vadd.f32 %v537, %v3441
    %3443 = vmatmul.bf16.gmra.mxu0 %v2334
    %v3444 = vpop.f32.mrf.mxu0
    %v3445 = vadd.f32 %v537, %v3444
    %v3446 = vpop.f32.mrf.mxu0
    %v3447 = vadd.f32 %v537, %v3446
    %3448 = vmatmul.bf16.gmra.mxu0 %v2337
    %v3449 = vpop.f32.mrf.mxu0
    %v3450 = vadd.f32 %v537, %v3449
    %v3451 = vpop.f32.mrf.mxu0
    %v3452 = vadd.f32 %v537, %v3451
    %3453 = vmatmul.bf16.gmra.mxu0 %v2340
    %v3454 = vpop.f32.mrf.mxu0
    %v3455 = vadd.f32 %v537, %v3454
    %v3456 = vpop.f32.mrf.mxu0
    %v3457 = vadd.f32 %v537, %v3456
    %3458 = vmatmul.bf16.gmra.mxu0 %v2343
    %v3459 = vpop.f32.mrf.mxu0
    %v3460 = vadd.f32 %v537, %v3459
    %v3461 = vpop.f32.mrf.mxu0
    %v3462 = vadd.f32 %v537, %v3461
    %3463 = vmatmul.bf16.gmra.mxu0 %v2346
    %v3464 = vpop.f32.mrf.mxu0
    %v3465 = vadd.f32 %v537, %v3464
    %v3466 = vpop.f32.mrf.mxu0
    %v3467 = vadd.f32 %v537, %v3466
    %3468 = vmatmul.bf16.gmra.mxu0 %v2349
    %v3469 = vpop.f32.mrf.mxu0
    %v3470 = vadd.f32 %v537, %v3469
    %v3471 = vpop.f32.mrf.mxu0
    %v3472 = vadd.f32 %v537, %v3471
    %3473 = vmatmul.bf16.gmra.mxu0 %v2352
    %v3474 = vpop.f32.mrf.mxu0
    %v3475 = vadd.f32 %v537, %v3474
    %v3476 = vpop.f32.mrf.mxu0
    %v3477 = vadd.f32 %v537, %v3476
    %3478 = vmatmul.bf16.gmra.mxu0 %v2355
    %v3479 = vpop.f32.mrf.mxu0
    %v3480 = vadd.f32 %v537, %v3479
    %v3481 = vpop.f32.mrf.mxu0
    %v3482 = vadd.f32 %v537, %v3481
    %3483 = vmatmul.bf16.gmra.mxu0 %v2358
    %v3484 = vpop.f32.mrf.mxu0
    %v3485 = vadd.f32 %v537, %v3484
    %v3486 = vpop.f32.mrf.mxu0
    %v3487 = vadd.f32 %v537, %v3486
    %3488 = vmatmul.bf16.gmra.mxu0 %v2361
    %v3489 = vpop.f32.mrf.mxu0
    %v3490 = vadd.f32 %v537, %v3489
    %v3491 = vpop.f32.mrf.mxu0
    %v3492 = vadd.f32 %v537, %v3491
    %3493 = vmatmul.bf16.gmra.mxu0 %v2364
    %v3494 = vpop.f32.mrf.mxu0
    %v3495 = vadd.f32 %v537, %v3494
    %v3496 = vpop.f32.mrf.mxu0
    %v3497 = vadd.f32 %v537, %v3496
    %3498 = vmatmul.bf16.gmra.mxu0 %v2367
    %v3499 = vpop.f32.mrf.mxu0
    %v3500 = vadd.f32 %v537, %v3499
    %v3501 = vpop.f32.mrf.mxu0
    %v3502 = vadd.f32 %v537, %v3501
    %3503 = vmatmul.bf16.gmra.mxu0 %v2370
    %v3504 = vpop.f32.mrf.mxu0
    %v3505 = vadd.f32 %v537, %v3504
    %v3506 = vpop.f32.mrf.mxu0
    %v3507 = vadd.f32 %v537, %v3506
    %3508 = vmatmul.bf16.gmra.mxu0 %v2373
    %v3509 = vpop.f32.mrf.mxu0
    %v3510 = vadd.f32 %v537, %v3509
    %v3511 = vpop.f32.mrf.mxu0
    %v3512 = vadd.f32 %v537, %v3511
    %3513 = vmatmul.bf16.gmra.mxu0 %v2376
    %v3514 = vpop.f32.mrf.mxu0
    %v3515 = vadd.f32 %v537, %v3514
    %v3516 = vpop.f32.mrf.mxu0
    %v3517 = vadd.f32 %v537, %v3516
    %3518 = vmatmul.bf16.gmra.mxu0 %v2379
    %v3519 = vpop.f32.mrf.mxu0
    %v3520 = vadd.f32 %v537, %v3519
    %v3521 = vpop.f32.mrf.mxu0
    %v3522 = vadd.f32 %v537, %v3521
    %3523 = vmatmul.bf16.gmra.mxu0 %v2382
    %v3524 = vpop.f32.mrf.mxu0
    %v3525 = vadd.f32 %v537, %v3524
    %v3526 = vpop.f32.mrf.mxu0
    %v3527 = vadd.f32 %v537, %v3526
    %3528 = vmatmul.bf16.gmra.mxu0 %v2385
    %v3529 = vpop.f32.mrf.mxu0
    %v3530 = vadd.f32 %v537, %v3529
    %v3531 = vpop.f32.mrf.mxu0
    %v3532 = vadd.f32 %v537, %v3531
    %3533 = vmatmul.bf16.gmra.mxu0 %v2388
    %v3534 = vpop.f32.mrf.mxu0
    %v3535 = vadd.f32 %v537, %v3534
    %v3536 = vpop.f32.mrf.mxu0
    %v3537 = vadd.f32 %v537, %v3536
    %3538 = vmatmul.bf16.gmra.mxu0 %v2391
    %v3539 = vpop.f32.mrf.mxu0
    %v3540 = vadd.f32 %v537, %v3539
    %v3541 = vpop.f32.mrf.mxu0
    %v3542 = vadd.f32 %v537, %v3541
    %3543 = vmatmul.bf16.gmra.mxu0 %v2394
    %v3544 = vpop.f32.mrf.mxu0
    %v3545 = vadd.f32 %v537, %v3544
    %v3546 = vpop.f32.mrf.mxu0
    %v3547 = vadd.f32 %v537, %v3546
    %3548 = vmatmul.bf16.gmra.mxu0 %v2397
    %v3549 = vpop.f32.mrf.mxu0
    %v3550 = vadd.f32 %v537, %v3549
    %v3551 = vpop.f32.mrf.mxu0
    %v3552 = vadd.f32 %v537, %v3551
    %3553 = vmatmul.bf16.gmra.mxu0 %v2400
    %v3554 = vpop.f32.mrf.mxu0
    %v3555 = vadd.f32 %v537, %v3554
    %v3556 = vpop.f32.mrf.mxu0
    %v3557 = vadd.f32 %v537, %v3556
    %3558 = vmatmul.bf16.gmra.mxu0 %v2403
    %v3559 = vpop.f32.mrf.mxu0
    %v3560 = vadd.f32 %v537, %v3559
    %v3561 = vpop.f32.mrf.mxu0
    %v3562 = vadd.f32 %v537, %v3561
    %3563 = vmatmul.bf16.gmra.mxu0 %v2406
    %v3564 = vpop.f32.mrf.mxu0
    %v3565 = vadd.f32 %v537, %v3564
    %v3566 = vpop.f32.mrf.mxu0
    %v3567 = vadd.f32 %v537, %v3566
    %3568 = vmatmul.bf16.gmra.mxu0 %v2409
    %v3569 = vpop.f32.mrf.mxu0
    %v3570 = vadd.f32 %v537, %v3569
    %v3571 = vpop.f32.mrf.mxu0
    %v3572 = vadd.f32 %v537, %v3571
    %3573 = vmatmul.bf16.gmra.mxu0 %v2412
    %v3574 = vpop.f32.mrf.mxu0
    %v3575 = vadd.f32 %v537, %v3574
    %v3576 = vpop.f32.mrf.mxu0
    %v3577 = vadd.f32 %v537, %v3576
    %3578 = vmatmul.bf16.gmra.mxu0 %v2415
    %v3579 = vpop.f32.mrf.mxu0
    %v3580 = vadd.f32 %v537, %v3579
    %v3581 = vpop.f32.mrf.mxu0
    %v3582 = vadd.f32 %v537, %v3581
    %3583 = vmatmul.bf16.gmra.mxu0 %v2418
    %v3584 = vpop.f32.mrf.mxu0
    %v3585 = vadd.f32 %v537, %v3584
    %v3586 = vpop.f32.mrf.mxu0
    %v3587 = vadd.f32 %v537, %v3586
    %3588 = vmatmul.bf16.gmra.mxu0 %v2421
    %v3589 = vpop.f32.mrf.mxu0
    %v3590 = vadd.f32 %v537, %v3589
    %v3591 = vpop.f32.mrf.mxu0
    %v3592 = vadd.f32 %v537, %v3591
    %3593 = vmatmul.bf16.gmra.mxu0 %v2424
    %v3594 = vpop.f32.mrf.mxu0
    %v3595 = vadd.f32 %v537, %v3594
    %v3596 = vpop.f32.mrf.mxu0
    %v3597 = vadd.f32 %v537, %v3596
    %3598 = vmatmul.bf16.gmra.mxu0 %v2427
    %v3599 = vpop.f32.mrf.mxu0
    %v3600 = vadd.f32 %v537, %v3599
    %v3601 = vpop.f32.mrf.mxu0
    %v3602 = vadd.f32 %v537, %v3601
    %3603 = vmatmul.bf16.gmra.mxu0 %v2430
    %v3604 = vpop.f32.mrf.mxu0
    %v3605 = vadd.f32 %v537, %v3604
    %v3606 = vpop.f32.mrf.mxu0
    %v3607 = vadd.f32 %v537, %v3606
    %3608 = vmatmul.bf16.gmra.mxu0 %v2433
    %v3609 = vpop.f32.mrf.mxu0
    %v3610 = vadd.f32 %v537, %v3609
    %v3611 = vpop.f32.mrf.mxu0
    %v3612 = vadd.f32 %v537, %v3611
    %3613 = vmatmul.bf16.gmra.mxu0 %v2436
    %v3614 = vpop.f32.mrf.mxu0
    %v3615 = vadd.f32 %v537, %v3614
    %v3616 = vpop.f32.mrf.mxu0
    %v3617 = vadd.f32 %v537, %v3616
    %3618 = vmatmul.bf16.gmra.mxu0 %v2439
    %v3619 = vpop.f32.mrf.mxu0
    %v3620 = vadd.f32 %v537, %v3619
    %v3621 = vpop.f32.mrf.mxu0
    %v3622 = vadd.f32 %v537, %v3621
    %3623 = vmatmul.bf16.gmra.mxu0 %v2442
    %v3624 = vpop.f32.mrf.mxu0
    %v3625 = vadd.f32 %v537, %v3624
    %v3626 = vpop.f32.mrf.mxu0
    %v3627 = vadd.f32 %v537, %v3626
    %3628 = vmatmul.bf16.gmra.mxu0 %v2445
    %v3629 = vpop.f32.mrf.mxu0
    %v3630 = vadd.f32 %v537, %v3629
    %v3631 = vpop.f32.mrf.mxu0
    %v3632 = vadd.f32 %v537, %v3631
    %3633 = vmatmul.bf16.gmra.mxu0 %v2448
    %v3634 = vpop.f32.mrf.mxu0
    %v3635 = vadd.f32 %v537, %v3634
    %v3636 = vpop.f32.mrf.mxu0
    %v3637 = vadd.f32 %v537, %v3636
    %3638 = vmatmul.bf16.gmra.mxu0 %v2451
    %v3639 = vpop.f32.mrf.mxu0
    %v3640 = vadd.f32 %v537, %v3639
    %v3641 = vpop.f32.mrf.mxu0
    %v3642 = vadd.f32 %v537, %v3641
    %3643 = vmatmul.bf16.gmra.mxu0 %v2454
    %v3644 = vpop.f32.mrf.mxu0
    %v3645 = vadd.f32 %v537, %v3644
    %v3646 = vpop.f32.mrf.mxu0
    %v3647 = vadd.f32 %v537, %v3646
    %3648 = vmatmul.bf16.gmra.mxu0 %v2457
    %v3649 = vpop.f32.mrf.mxu0
    %v3650 = vadd.f32 %v537, %v3649
    %v3651 = vpop.f32.mrf.mxu0
    %v3652 = vadd.f32 %v537, %v3651
    %3653 = vmatmul.bf16.gmra.mxu0 %v2460
    %v3654 = vpop.f32.mrf.mxu0
    %v3655 = vadd.f32 %v537, %v3654
    %v3656 = vpop.f32.mrf.mxu0
    %v3657 = vadd.f32 %v537, %v3656
    %3658 = vmatmul.bf16.gmra.mxu0 %v2463
    %v3659 = vpop.f32.mrf.mxu0
    %v3660 = vadd.f32 %v537, %v3659
    %v3661 = vpop.f32.mrf.mxu0
    %v3662 = vadd.f32 %v537, %v3661
    %3663 = vmatmul.bf16.gmra.mxu0 %v2466
    %v3664 = vpop.f32.mrf.mxu0
    %v3665 = vadd.f32 %v537, %v3664
    %v3666 = vpop.f32.mrf.mxu0
    %v3667 = vadd.f32 %v537, %v3666
    %3668 = vmatmul.bf16.gmra.mxu0 %v2469
    %v3669 = vpop.f32.mrf.mxu0
    %v3670 = vadd.f32 %v537, %v3669
    %v3671 = vpop.f32.mrf.mxu0
    %v3672 = vadd.f32 %v537, %v3671
    %3673 = vmatmul.bf16.gmra.mxu0 %v2472
    %v3674 = vpop.f32.mrf.mxu0
    %v3675 = vadd.f32 %v537, %v3674
    %v3676 = vpop.f32.mrf.mxu0
    %v3677 = vadd.f32 %v537, %v3676
    %3678 = vmatmul.bf16.gmra.mxu0 %v2475
    %v3679 = vpop.f32.mrf.mxu0
    %v3680 = vadd.f32 %v537, %v3679
    %v3681 = vpop.f32.mrf.mxu0
    %v3682 = vadd.f32 %v537, %v3681
    %3683 = vmatmul.bf16.gmra.mxu0 %v2478
    %v3684 = vpop.f32.mrf.mxu0
    %v3685 = vadd.f32 %v537, %v3684
    %v3686 = vpop.f32.mrf.mxu0
    %v3687 = vadd.f32 %v537, %v3686
    %3688 = vmatmul.bf16.gmra.mxu0 %v2481
    %v3689 = vpop.f32.mrf.mxu0
    %v3690 = vadd.f32 %v537, %v3689
    %v3691 = vpop.f32.mrf.mxu0
    %v3692 = vadd.f32 %v537, %v3691
    %3693 = vmatmul.bf16.gmra.mxu0 %v2484
    %v3694 = vpop.f32.mrf.mxu0
    %v3695 = vadd.f32 %v537, %v3694
    %v3696 = vpop.f32.mrf.mxu0
    %v3697 = vadd.f32 %v537, %v3696
    %3698 = vmatmul.bf16.gmra.mxu0 %v2487
    %v3699 = vpop.f32.mrf.mxu0
    %v3700 = vadd.f32 %v537, %v3699
    %v3701 = vpop.f32.mrf.mxu0
    %v3702 = vadd.f32 %v537, %v3701
    %3703 = vmatmul.bf16.gmra.mxu0 %v2490
    %v3704 = vpop.f32.mrf.mxu0
    %v3705 = vadd.f32 %v537, %v3704
    %v3706 = vpop.f32.mrf.mxu0
    %v3707 = vadd.f32 %v537, %v3706
    %3708 = vmatmul.bf16.gmra.mxu0 %v2493
    %v3709 = vpop.f32.mrf.mxu0
    %v3710 = vadd.f32 %v537, %v3709
    %v3711 = vpop.f32.mrf.mxu0
    %v3712 = vadd.f32 %v537, %v3711
    %3713 = vmatmul.bf16.gmra.mxu0 %v2496
    %v3714 = vpop.f32.mrf.mxu0
    %v3715 = vadd.f32 %v537, %v3714
    %v3716 = vpop.f32.mrf.mxu0
    %v3717 = vadd.f32 %v537, %v3716
    %3718 = vmatmul.bf16.gmra.mxu0 %v2499
    %v3719 = vpop.f32.mrf.mxu0
    %v3720 = vadd.f32 %v537, %v3719
    %v3721 = vpop.f32.mrf.mxu0
    %v3722 = vadd.f32 %v537, %v3721
    %3723 = vmatmul.bf16.gmra.mxu0 %v2502
    %v3724 = vpop.f32.mrf.mxu0
    %v3725 = vadd.f32 %v537, %v3724
    %v3726 = vpop.f32.mrf.mxu0
    %v3727 = vadd.f32 %v537, %v3726
    %3728 = vmatmul.bf16.gmra.mxu0 %v2505
    %v3729 = vpop.f32.mrf.mxu0
    %v3730 = vadd.f32 %v537, %v3729
    %v3731 = vpop.f32.mrf.mxu0
    %v3732 = vadd.f32 %v537, %v3731
    %3733 = vmatmul.bf16.gmra.mxu0 %v2508
    %v3734 = vpop.f32.mrf.mxu0
    %v3735 = vadd.f32 %v537, %v3734
    %v3736 = vpop.f32.mrf.mxu0
    %v3737 = vadd.f32 %v537, %v3736
    %3738 = vmatmul.bf16.gmra.mxu0 %v2511
    %v3739 = vpop.f32.mrf.mxu0
    %v3740 = vadd.f32 %v537, %v3739
    %v3741 = vpop.f32.mrf.mxu0
    %v3742 = vadd.f32 %v537, %v3741
    %3743 = vmatmul.bf16.gmra.mxu0 %v2514
    %v3744 = vpop.f32.mrf.mxu0
    %v3745 = vadd.f32 %v537, %v3744
    %v3746 = vpop.f32.mrf.mxu0
    %v3747 = vadd.f32 %v537, %v3746
    %3748 = vmatmul.bf16.gmra.mxu0 %v2517
    %v3749 = vpop.f32.mrf.mxu0
    %v3750 = vadd.f32 %v537, %v3749
    %v3751 = vpop.f32.mrf.mxu0
    %v3752 = vadd.f32 %v537, %v3751
    %3753 = vmatmul.bf16.gmra.mxu0 %v2520
    %v3754 = vpop.f32.mrf.mxu0
    %v3755 = vadd.f32 %v537, %v3754
    %v3756 = vpop.f32.mrf.mxu0
    %v3757 = vadd.f32 %v537, %v3756
    %3758 = vmatmul.bf16.gmra.mxu0 %v2523
    %v3759 = vpop.f32.mrf.mxu0
    %v3760 = vadd.f32 %v537, %v3759
    %v3761 = vpop.f32.mrf.mxu0
    %v3762 = vadd.f32 %v537, %v3761
    %3763 = vmatmul.bf16.gmra.mxu0 %v2526
    %v3764 = vpop.f32.mrf.mxu0
    %v3765 = vadd.f32 %v537, %v3764
    %v3766 = vpop.f32.mrf.mxu0
    %v3767 = vadd.f32 %v537, %v3766
    %3768 = vmatmul.bf16.gmra.mxu0 %v2529
    %v3769 = vpop.f32.mrf.mxu0
    %v3770 = vadd.f32 %v537, %v3769
    %v3771 = vpop.f32.mrf.mxu0
    %v3772 = vadd.f32 %v537, %v3771
    %3773 = vmatmul.bf16.gmra.mxu0 %v2532
    %v3774 = vpop.f32.mrf.mxu0
    %v3775 = vadd.f32 %v537, %v3774
    %v3776 = vpop.f32.mrf.mxu0
    %v3777 = vadd.f32 %v537, %v3776
    %3778 = vmatmul.bf16.gmra.mxu0 %v2535
    %v3779 = vpop.f32.mrf.mxu0
    %v3780 = vadd.f32 %v537, %v3779
    %v3781 = vpop.f32.mrf.mxu0
    %v3782 = vadd.f32 %v537, %v3781
    %3783 = vmatmul.bf16.gmra.mxu0 %v2538
    %v3784 = vpop.f32.mrf.mxu0
    %v3785 = vadd.f32 %v537, %v3784
    %v3786 = vpop.f32.mrf.mxu0
    %v3787 = vadd.f32 %v537, %v3786
    %3788 = vmatmul.bf16.gmra.mxu0 %v2541
    %v3789 = vpop.f32.mrf.mxu0
    %v3790 = vadd.f32 %v537, %v3789
    %v3791 = vpop.f32.mrf.mxu0
    %v3792 = vadd.f32 %v537, %v3791
    %3793 = vmatmul.bf16.gmra.mxu0 %v2544
    %v3794 = vpop.f32.mrf.mxu0
    %v3795 = vadd.f32 %v537, %v3794
    %v3796 = vpop.f32.mrf.mxu0
    %v3797 = vadd.f32 %v537, %v3796
    %3798 = vmatmul.bf16.gmra.mxu0 %v2547
    %v3799 = vpop.f32.mrf.mxu0
    %v3800 = vadd.f32 %v537, %v3799
    %v3801 = vpop.f32.mrf.mxu0
    %v3802 = vadd.f32 %v537, %v3801
    %3803 = vmatmul.bf16.gmra.mxu0 %v2550
    %v3804 = vpop.f32.mrf.mxu0
    %v3805 = vadd.f32 %v537, %v3804
    %v3806 = vpop.f32.mrf.mxu0
    %v3807 = vadd.f32 %v537, %v3806
    %3808 = vmatmul.bf16.gmra.mxu0 %v2553
    %v3809 = vpop.f32.mrf.mxu0
    %v3810 = vadd.f32 %v537, %v3809
    %v3811 = vpop.f32.mrf.mxu0
    %v3812 = vadd.f32 %v537, %v3811
    %3813 = vmatmul.bf16.gmra.mxu0 %v2556
    %v3814 = vpop.f32.mrf.mxu0
    %v3815 = vadd.f32 %v537, %v3814
    %v3816 = vpop.f32.mrf.mxu0
    %v3817 = vadd.f32 %v537, %v3816
    %3818 = vmatmul.bf16.gmra.mxu0 %v2559
    %v3819 = vpop.f32.mrf.mxu0
    %v3820 = vadd.f32 %v537, %v3819
    %v3821 = vpop.f32.mrf.mxu0
    %v3822 = vadd.f32 %v537, %v3821
    %3823 = vmatmul.bf16.gmra.mxu0 %v2562
    %v3824 = vpop.f32.mrf.mxu0
    %v3825 = vadd.f32 %v537, %v3824
    %v3826 = vpop.f32.mrf.mxu0
    %v3827 = vadd.f32 %v537, %v3826
    %3828 = vmatmul.bf16.gmra.mxu0 %v2565
    %v3829 = vpop.f32.mrf.mxu0
    %v3830 = vadd.f32 %v537, %v3829
    %v3831 = vpop.f32.mrf.mxu0
    %v3832 = vadd.f32 %v537, %v3831
    %3833 = vmatmul.bf16.gmra.mxu0 %v2568
    %v3834 = vpop.f32.mrf.mxu0
    %v3835 = vadd.f32 %v537, %v3834
    %v3836 = vpop.f32.mrf.mxu0
    %v3837 = vadd.f32 %v537, %v3836
    %3838 = vmatmul.bf16.gmra.mxu0 %v2571
    %v3839 = vpop.f32.mrf.mxu0
    %v3840 = vadd.f32 %v537, %v3839
    %v3841 = vpop.f32.mrf.mxu0
    %v3842 = vadd.f32 %v537, %v3841
    %3843 = vmatmul.bf16.gmra.mxu0 %v2574
    %v3844 = vpop.f32.mrf.mxu0
    %v3845 = vadd.f32 %v537, %v3844
    %v3846 = vpop.f32.mrf.mxu0
    %v3847 = vadd.f32 %v537, %v3846
    %3848 = vmatmul.bf16.gmra.mxu0 %v2577
    %v3849 = vpop.f32.mrf.mxu0
    %v3850 = vadd.f32 %v537, %v3849
    %v3851 = vpop.f32.mrf.mxu0
    %v3852 = vadd.f32 %v537, %v3851
    %3853 = vmatmul.bf16.gmra.mxu0 %v2580
    %v3854 = vpop.f32.mrf.mxu0
    %v3855 = vadd.f32 %v537, %v3854
    %v3856 = vpop.f32.mrf.mxu0
    %v3857 = vadd.f32 %v537, %v3856
    %3858 = vmatmul.bf16.gmra.mxu0 %v2583
    %v3859 = vpop.f32.mrf.mxu0
    %v3860 = vadd.f32 %v537, %v3859
    %v3861 = vpop.f32.mrf.mxu0
    %v3862 = vadd.f32 %v537, %v3861
    %3863 = vmatmul.bf16.gmra.mxu0 %v2586
    %v3864 = vpop.f32.mrf.mxu0
    %v3865 = vadd.f32 %v537, %v3864
    %v3866 = vpop.f32.mrf.mxu0
    %v3867 = vadd.f32 %v537, %v3866
    %3868 = vmatmul.bf16.gmra.mxu0 %v2589
    %v3869 = vpop.f32.mrf.mxu0
    %v3870 = vadd.f32 %v537, %v3869
    %v3871 = vpop.f32.mrf.mxu0
    %v3872 = vadd.f32 %v537, %v3871
    %3873 = vmatmul.bf16.gmra.mxu0 %v2592
    %v3874 = vpop.f32.mrf.mxu0
    %v3875 = vadd.f32 %v537, %v3874
    %v3876 = vpop.f32.mrf.mxu0
    %v3877 = vadd.f32 %v537, %v3876
    %3878 = vmatmul.bf16.gmra.mxu0 %v2595
    %v3879 = vpop.f32.mrf.mxu0
    %v3880 = vadd.f32 %v537, %v3879
    %v3881 = vpop.f32.mrf.mxu0
    %v3882 = vadd.f32 %v537, %v3881
    %3883 = vmatmul.bf16.gmra.mxu0 %v2598
    %v3884 = vpop.f32.mrf.mxu0
    %v3885 = vadd.f32 %v537, %v3884
    %v3886 = vpop.f32.mrf.mxu0
    %v3887 = vadd.f32 %v537, %v3886
    %3888 = vdwg.mxu0
    %v3889 = vmax.f32 %v2610, 0.0
    %v3890 = vmax.f32 %v2612, 0.0
    %v3891 = vmax.f32 %v2615, 0.0
    %v3892 = vmax.f32 %v2617, 0.0
    %v3893 = vmax.f32 %v2620, 0.0
    %v3894 = vmax.f32 %v2622, 0.0
    %v3895 = vmax.f32 %v2625, 0.0
    %v3896 = vmax.f32 %v2627, 0.0
    %v3897 = vmax.f32 %v2630, 0.0
    %v3898 = vmax.f32 %v2632, 0.0
    %v3899 = vmax.f32 %v2635, 0.0
    %v3900 = vmax.f32 %v2637, 0.0
    %v3901 = vmax.f32 %v2640, 0.0
    %v3902 = vmax.f32 %v2642, 0.0
    %v3903 = vmax.f32 %v2645, 0.0
    %v3904 = vmax.f32 %v2647, 0.0
    %v3905 = vmax.f32 %v2650, 0.0
    %v3906 = vmax.f32 %v2652, 0.0
    %v3907 = vmax.f32 %v2655, 0.0
    %v3908 = vmax.f32 %v2657, 0.0
    %v3909 = vmax.f32 %v2660, 0.0
    %v3910 = vmax.f32 %v2662, 0.0
    %v3911 = vmax.f32 %v2665, 0.0
    %v3912 = vmax.f32 %v2667, 0.0
    %v3913 = vmax.f32 %v2670, 0.0
    %v3914 = vmax.f32 %v2672, 0.0
    %v3915 = vmax.f32 %v2675, 0.0
    %v3916 = vmax.f32 %v2677, 0.0
    %v3917 = vmax.f32 %v2680, 0.0
    %v3918 = vmax.f32 %v2682, 0.0
    %v3919 = vmax.f32 %v2685, 0.0
    %v3920 = vmax.f32 %v2687, 0.0
    %v3921 = vmax.f32 %v2690, 0.0
    %v3922 = vmax.f32 %v2692, 0.0
    %v3923 = vmax.f32 %v2695, 0.0
    %v3924 = vmax.f32 %v2697, 0.0
    %v3925 = vmax.f32 %v2700, 0.0
    %v3926 = vmax.f32 %v2702, 0.0
    %v3927 = vmax.f32 %v2705, 0.0
    %v3928 = vmax.f32 %v2707, 0.0
    %v3929 = vmax.f32 %v2710, 0.0
    %v3930 = vmax.f32 %v2712, 0.0
    %v3931 = vmax.f32 %v2715, 0.0
    %v3932 = vmax.f32 %v2717, 0.0
    %v3933 = vmax.f32 %v2720, 0.0
    %v3934 = vmax.f32 %v2722, 0.0
    %v3935 = vmax.f32 %v2725, 0.0
    %v3936 = vmax.f32 %v2727, 0.0
    %v3937 = vmax.f32 %v2730, 0.0
    %v3938 = vmax.f32 %v2732, 0.0
    %v3939 = vmax.f32 %v2735, 0.0
    %v3940 = vmax.f32 %v2737, 0.0
    %v3941 = vmax.f32 %v2740, 0.0
    %v3942 = vmax.f32 %v2742, 0.0
    %v3943 = vmax.f32 %v2745, 0.0
    %v3944 = vmax.f32 %v2747, 0.0
    %v3945 = vmax.f32 %v2750, 0.0
    %v3946 = vmax.f32 %v2752, 0.0
    %v3947 = vmax.f32 %v2755, 0.0
    %v3948 = vmax.f32 %v2757, 0.0
    %v3949 = vmax.f32 %v2760, 0.0
    %v3950 = vmax.f32 %v2762, 0.0
    %v3951 = vmax.f32 %v2765, 0.0
    %v3952 = vmax.f32 %v2767, 0.0
    %v3953 = vmax.f32 %v2770, 0.0
    %v3954 = vmax.f32 %v2772, 0.0
    %v3955 = vmax.f32 %v2775, 0.0
    %v3956 = vmax.f32 %v2777, 0.0
    %v3957 = vmax.f32 %v2780, 0.0
    %v3958 = vmax.f32 %v2782, 0.0
    %v3959 = vmax.f32 %v2785, 0.0
    %v3960 = vmax.f32 %v2787, 0.0
    %v3961 = vmax.f32 %v2790, 0.0
    %v3962 = vmax.f32 %v2792, 0.0
    %v3963 = vmax.f32 %v2795, 0.0
    %v3964 = vmax.f32 %v2797, 0.0
    %v3965 = vmax.f32 %v2800, 0.0
    %v3966 = vmax.f32 %v2802, 0.0
    %v3967 = vmax.f32 %v2805, 0.0
    %v3968 = vmax.f32 %v2807, 0.0
    %v3969 = vmax.f32 %v2810, 0.0
    %v3970 = vmax.f32 %v2812, 0.0
    %v3971 = vmax.f32 %v2815, 0.0
    %v3972 = vmax.f32 %v2817, 0.0
    %v3973 = vmax.f32 %v2820, 0.0
    %v3974 = vmax.f32 %v2822, 0.0
    %v3975 = vmax.f32 %v2825, 0.0
    %v3976 = vmax.f32 %v2827, 0.0
    %v3977 = vmax.f32 %v2830, 0.0
    %v3978 = vmax.f32 %v2832, 0.0
    %v3979 = vmax.f32 %v2835, 0.0
    %v3980 = vmax.f32 %v2837, 0.0
    %v3981 = vmax.f32 %v2840, 0.0
    %v3982 = vmax.f32 %v2842, 0.0
    %v3983 = vmax.f32 %v2845, 0.0
    %v3984 = vmax.f32 %v2847, 0.0
    %v3985 = vmax.f32 %v2850, 0.0
    %v3986 = vmax.f32 %v2852, 0.0
    %v3987 = vmax.f32 %v2855, 0.0
    %v3988 = vmax.f32 %v2857, 0.0
    %v3989 = vmax.f32 %v2860, 0.0
    %v3990 = vmax.f32 %v2862, 0.0
    %v3991 = vmax.f32 %v2865, 0.0
    %v3992 = vmax.f32 %v2867, 0.0
    %v3993 = vmax.f32 %v2870, 0.0
    %v3994 = vmax.f32 %v2872, 0.0
    %v3995 = vmax.f32 %v2875, 0.0
    %v3996 = vmax.f32 %v2877, 0.0
    %v3997 = vmax.f32 %v2880, 0.0
    %v3998 = vmax.f32 %v2882, 0.0
    %v3999 = vmax.f32 %v2885, 0.0
    %v4000 = vmax.f32 %v2887, 0.0
    %v4001 = vmax.f32 %v2890, 0.0
    %v4002 = vmax.f32 %v2892, 0.0
    %v4003 = vmax.f32 %v2895, 0.0
    %v4004 = vmax.f32 %v2897, 0.0
    %v4005 = vmax.f32 %v2900, 0.0
    %v4006 = vmax.f32 %v2902, 0.0
    %v4007 = vmax.f32 %v2905, 0.0
    %v4008 = vmax.f32 %v2907, 0.0
    %v4009 = vmax.f32 %v2910, 0.0
    %v4010 = vmax.f32 %v2912, 0.0
    %v4011 = vmax.f32 %v2915, 0.0
    %v4012 = vmax.f32 %v2917, 0.0
    %v4013 = vmax.f32 %v2920, 0.0
    %v4014 = vmax.f32 %v2922, 0.0
    %v4015 = vmax.f32 %v2925, 0.0
    %v4016 = vmax.f32 %v2927, 0.0
    %v4017 = vmax.f32 %v2930, 0.0
    %v4018 = vmax.f32 %v2932, 0.0
    %v4019 = vmax.f32 %v2935, 0.0
    %v4020 = vmax.f32 %v2937, 0.0
    %v4021 = vmax.f32 %v2940, 0.0
    %v4022 = vmax.f32 %v2942, 0.0
    %v4023 = vmax.f32 %v2945, 0.0
    %v4024 = vmax.f32 %v2947, 0.0
    %v4025 = vmax.f32 %v2950, 0.0
    %v4026 = vmax.f32 %v2952, 0.0
    %v4027 = vmax.f32 %v2955, 0.0
    %v4028 = vmax.f32 %v2957, 0.0
    %v4029 = vmax.f32 %v2960, 0.0
    %v4030 = vmax.f32 %v2962, 0.0
    %v4031 = vmax.f32 %v2965, 0.0
    %v4032 = vmax.f32 %v2967, 0.0
    %v4033 = vmax.f32 %v2970, 0.0
    %v4034 = vmax.f32 %v2972, 0.0
    %v4035 = vmax.f32 %v2975, 0.0
    %v4036 = vmax.f32 %v2977, 0.0
    %v4037 = vmax.f32 %v2980, 0.0
    %v4038 = vmax.f32 %v2982, 0.0
    %v4039 = vmax.f32 %v2985, 0.0
    %v4040 = vmax.f32 %v2987, 0.0
    %v4041 = vmax.f32 %v2990, 0.0
    %v4042 = vmax.f32 %v2992, 0.0
    %v4043 = vmax.f32 %v2995, 0.0
    %v4044 = vmax.f32 %v2997, 0.0
    %v4045 = vmax.f32 %v3000, 0.0
    %v4046 = vmax.f32 %v3002, 0.0
    %v4047 = vmax.f32 %v3005, 0.0
    %v4048 = vmax.f32 %v3007, 0.0
    %v4049 = vmax.f32 %v3010, 0.0
    %v4050 = vmax.f32 %v3012, 0.0
    %v4051 = vmax.f32 %v3015, 0.0
    %v4052 = vmax.f32 %v3017, 0.0
    %v4053 = vmax.f32 %v3020, 0.0
    %v4054 = vmax.f32 %v3022, 0.0
    %v4055 = vmax.f32 %v3025, 0.0
    %v4056 = vmax.f32 %v3027, 0.0
    %v4057 = vmax.f32 %v3030, 0.0
    %v4058 = vmax.f32 %v3032, 0.0
    %v4059 = vmax.f32 %v3035, 0.0
    %v4060 = vmax.f32 %v3037, 0.0
    %v4061 = vmax.f32 %v3040, 0.0
    %v4062 = vmax.f32 %v3042, 0.0
    %v4063 = vmax.f32 %v3045, 0.0
    %v4064 = vmax.f32 %v3047, 0.0
    %v4065 = vmax.f32 %v3050, 0.0
    %v4066 = vmax.f32 %v3052, 0.0
    %v4067 = vmax.f32 %v3055, 0.0
    %v4068 = vmax.f32 %v3057, 0.0
    %v4069 = vmax.f32 %v3060, 0.0
    %v4070 = vmax.f32 %v3062, 0.0
    %v4071 = vmax.f32 %v3065, 0.0
    %v4072 = vmax.f32 %v3067, 0.0
    %v4073 = vmax.f32 %v3070, 0.0
    %v4074 = vmax.f32 %v3072, 0.0
    %v4075 = vmax.f32 %v3075, 0.0
    %v4076 = vmax.f32 %v3077, 0.0
    %v4077 = vmax.f32 %v3080, 0.0
    %v4078 = vmax.f32 %v3082, 0.0
    %v4079 = vmax.f32 %v3085, 0.0
    %v4080 = vmax.f32 %v3087, 0.0
    %v4081 = vmax.f32 %v3090, 0.0
    %v4082 = vmax.f32 %v3092, 0.0
    %v4083 = vmax.f32 %v3095, 0.0
    %v4084 = vmax.f32 %v3097, 0.0
    %v4085 = vmax.f32 %v3100, 0.0
    %v4086 = vmax.f32 %v3102, 0.0
    %v4087 = vmax.f32 %v3105, 0.0
    %v4088 = vmax.f32 %v3107, 0.0
    %v4089 = vmax.f32 %v3110, 0.0
    %v4090 = vmax.f32 %v3112, 0.0
    %v4091 = vmax.f32 %v3115, 0.0
    %v4092 = vmax.f32 %v3117, 0.0
    %v4093 = vmax.f32 %v3120, 0.0
    %v4094 = vmax.f32 %v3122, 0.0
    %v4095 = vmax.f32 %v3125, 0.0
    %v4096 = vmax.f32 %v3127, 0.0
    %v4097 = vmax.f32 %v3130, 0.0
    %v4098 = vmax.f32 %v3132, 0.0
    %v4099 = vmax.f32 %v3135, 0.0
    %v4100 = vmax.f32 %v3137, 0.0
    %v4101 = vmax.f32 %v3140, 0.0
    %v4102 = vmax.f32 %v3142, 0.0
    %v4103 = vmax.f32 %v3145, 0.0
    %v4104 = vmax.f32 %v3147, 0.0
    %v4105 = vmax.f32 %v3150, 0.0
    %v4106 = vmax.f32 %v3152, 0.0
    %v4107 = vmax.f32 %v3155, 0.0
    %v4108 = vmax.f32 %v3157, 0.0
    %v4109 = vmax.f32 %v3160, 0.0
    %v4110 = vmax.f32 %v3162, 0.0
    %v4111 = vmax.f32 %v3165, 0.0
    %v4112 = vmax.f32 %v3167, 0.0
    %v4113 = vmax.f32 %v3170, 0.0
    %v4114 = vmax.f32 %v3172, 0.0
    %v4115 = vmax.f32 %v3175, 0.0
    %v4116 = vmax.f32 %v3177, 0.0
    %v4117 = vmax.f32 %v3180, 0.0
    %v4118 = vmax.f32 %v3182, 0.0
    %v4119 = vmax.f32 %v3185, 0.0
    %v4120 = vmax.f32 %v3187, 0.0
    %v4121 = vmax.f32 %v3190, 0.0
    %v4122 = vmax.f32 %v3192, 0.0
    %v4123 = vmax.f32 %v3195, 0.0
    %v4124 = vmax.f32 %v3197, 0.0
    %v4125 = vmax.f32 %v3200, 0.0
    %v4126 = vmax.f32 %v3202, 0.0
    %v4127 = vmax.f32 %v3205, 0.0
    %v4128 = vmax.f32 %v3207, 0.0
    %v4129 = vmax.f32 %v3210, 0.0
    %v4130 = vmax.f32 %v3212, 0.0
    %v4131 = vmax.f32 %v3215, 0.0
    %v4132 = vmax.f32 %v3217, 0.0
    %v4133 = vmax.f32 %v3220, 0.0
    %v4134 = vmax.f32 %v3222, 0.0
    %v4135 = vmax.f32 %v3225, 0.0
    %v4136 = vmax.f32 %v3227, 0.0
    %v4137 = vmax.f32 %v3230, 0.0
    %v4138 = vmax.f32 %v3232, 0.0
    %v4139 = vmax.f32 %v3235, 0.0
    %v4140 = vmax.f32 %v3237, 0.0
    %v4141 = vmax.f32 %v3240, 0.0
    %v4142 = vmax.f32 %v3242, 0.0
    %v4143 = vmax.f32 %v3245, 0.0
    %v4144 = vmax.f32 %v3247, 0.0
    %v4145 = vmax.f32 %v3250, 0.0
    %v4146 = vmax.f32 %v3252, 0.0
    %v4147 = vmax.f32 %v3255, 0.0
    %v4148 = vmax.f32 %v3257, 0.0
    %v4149 = vmax.f32 %v3260, 0.0
    %v4150 = vmax.f32 %v3262, 0.0
    %v4151 = vmax.f32 %v3265, 0.0
    %v4152 = vmax.f32 %v3267, 0.0
    %v4153 = vmax.f32 %v3270, 0.0
    %v4154 = vmax.f32 %v3272, 0.0
    %v4155 = vmax.f32 %v3275, 0.0
    %v4156 = vmax.f32 %v3277, 0.0
    %v4157 = vmax.f32 %v3280, 0.0
    %v4158 = vmax.f32 %v3282, 0.0
    %v4159 = vmax.f32 %v3285, 0.0
    %v4160 = vmax.f32 %v3287, 0.0
    %v4161 = vmax.f32 %v3290, 0.0
    %v4162 = vmax.f32 %v3292, 0.0
    %v4163 = vmax.f32 %v3295, 0.0
    %v4164 = vmax.f32 %v3297, 0.0
    %v4165 = vmax.f32 %v3300, 0.0
    %v4166 = vmax.f32 %v3302, 0.0
    %v4167 = vmax.f32 %v3305, 0.0
    %v4168 = vmax.f32 %v3307, 0.0
    %v4169 = vmax.f32 %v3310, 0.0
    %v4170 = vmax.f32 %v3312, 0.0
    %v4171 = vmax.f32 %v3315, 0.0
    %v4172 = vmax.f32 %v3317, 0.0
    %v4173 = vmax.f32 %v3320, 0.0
    %v4174 = vmax.f32 %v3322, 0.0
    %v4175 = vmax.f32 %v3325, 0.0
    %v4176 = vmax.f32 %v3327, 0.0
    %v4177 = vmax.f32 %v3330, 0.0
    %v4178 = vmax.f32 %v3332, 0.0
    %v4179 = vmax.f32 %v3335, 0.0
    %v4180 = vmax.f32 %v3337, 0.0
    %v4181 = vmax.f32 %v3340, 0.0
    %v4182 = vmax.f32 %v3342, 0.0
    %v4183 = vmax.f32 %v3345, 0.0
    %v4184 = vmax.f32 %v3347, 0.0
    %v4185 = vmax.f32 %v3350, 0.0
    %v4186 = vmax.f32 %v3352, 0.0
    %v4187 = vmax.f32 %v3355, 0.0
    %v4188 = vmax.f32 %v3357, 0.0
    %v4189 = vmax.f32 %v3360, 0.0
    %v4190 = vmax.f32 %v3362, 0.0
    %v4191 = vmax.f32 %v3365, 0.0
    %v4192 = vmax.f32 %v3367, 0.0
    %v4193 = vmax.f32 %v3370, 0.0
    %v4194 = vmax.f32 %v3372, 0.0
    %v4195 = vmax.f32 %v3375, 0.0
    %v4196 = vmax.f32 %v3377, 0.0
    %v4197 = vmax.f32 %v3380, 0.0
    %v4198 = vmax.f32 %v3382, 0.0
    %v4199 = vmax.f32 %v3385, 0.0
    %v4200 = vmax.f32 %v3387, 0.0
    %v4201 = vmax.f32 %v3390, 0.0
    %v4202 = vmax.f32 %v3392, 0.0
    %v4203 = vmax.f32 %v3395, 0.0
    %v4204 = vmax.f32 %v3397, 0.0
    %v4205 = vmax.f32 %v3400, 0.0
    %v4206 = vmax.f32 %v3402, 0.0
    %v4207 = vmax.f32 %v3405, 0.0
    %v4208 = vmax.f32 %v3407, 0.0
    %v4209 = vmax.f32 %v3410, 0.0
    %v4210 = vmax.f32 %v3412, 0.0
    %v4211 = vmax.f32 %v3415, 0.0
    %v4212 = vmax.f32 %v3417, 0.0
    %v4213 = vmax.f32 %v3420, 0.0
    %v4214 = vmax.f32 %v3422, 0.0
    %v4215 = vmax.f32 %v3425, 0.0
    %v4216 = vmax.f32 %v3427, 0.0
    %v4217 = vmax.f32 %v3430, 0.0
    %v4218 = vmax.f32 %v3432, 0.0
    %v4219 = vmax.f32 %v3435, 0.0
    %v4220 = vmax.f32 %v3437, 0.0
    %v4221 = vmax.f32 %v3440, 0.0
    %v4222 = vmax.f32 %v3442, 0.0
    %v4223 = vmax.f32 %v3445, 0.0
    %v4224 = vmax.f32 %v3447, 0.0
    %v4225 = vmax.f32 %v3450, 0.0
    %v4226 = vmax.f32 %v3452, 0.0
    %v4227 = vmax.f32 %v3455, 0.0
    %v4228 = vmax.f32 %v3457, 0.0
    %v4229 = vmax.f32 %v3460, 0.0
    %v4230 = vmax.f32 %v3462, 0.0
    %v4231 = vmax.f32 %v3465, 0.0
    %v4232 = vmax.f32 %v3467, 0.0
    %v4233 = vmax.f32 %v3470, 0.0
    %v4234 = vmax.f32 %v3472, 0.0
    %v4235 = vmax.f32 %v3475, 0.0
    %v4236 = vmax.f32 %v3477, 0.0
    %v4237 = vmax.f32 %v3480, 0.0
    %v4238 = vmax.f32 %v3482, 0.0
    %v4239 = vmax.f32 %v3485, 0.0
    %v4240 = vmax.f32 %v3487, 0.0
    %v4241 = vmax.f32 %v3490, 0.0
    %v4242 = vmax.f32 %v3492, 0.0
    %v4243 = vmax.f32 %v3495, 0.0
    %v4244 = vmax.f32 %v3497, 0.0
    %v4245 = vmax.f32 %v3500, 0.0
    %v4246 = vmax.f32 %v3502, 0.0
    %v4247 = vmax.f32 %v3505, 0.0
    %v4248 = vmax.f32 %v3507, 0.0
    %v4249 = vmax.f32 %v3510, 0.0
    %v4250 = vmax.f32 %v3512, 0.0
    %v4251 = vmax.f32 %v3515, 0.0
    %v4252 = vmax.f32 %v3517, 0.0
    %v4253 = vmax.f32 %v3520, 0.0
    %v4254 = vmax.f32 %v3522, 0.0
    %v4255 = vmax.f32 %v3525, 0.0
    %v4256 = vmax.f32 %v3527, 0.0
    %v4257 = vmax.f32 %v3530, 0.0
    %v4258 = vmax.f32 %v3532, 0.0
    %v4259 = vmax.f32 %v3535, 0.0
    %v4260 = vmax.f32 %v3537, 0.0
    %v4261 = vmax.f32 %v3540, 0.0
    %v4262 = vmax.f32 %v3542, 0.0
    %v4263 = vmax.f32 %v3545, 0.0
    %v4264 = vmax.f32 %v3547, 0.0
    %v4265 = vmax.f32 %v3550, 0.0
    %v4266 = vmax.f32 %v3552, 0.0
    %v4267 = vmax.f32 %v3555, 0.0
    %v4268 = vmax.f32 %v3557, 0.0
    %v4269 = vmax.f32 %v3560, 0.0
    %v4270 = vmax.f32 %v3562, 0.0
    %v4271 = vmax.f32 %v3565, 0.0
    %v4272 = vmax.f32 %v3567, 0.0
    %v4273 = vmax.f32 %v3570, 0.0
    %v4274 = vmax.f32 %v3572, 0.0
    %v4275 = vmax.f32 %v3575, 0.0
    %v4276 = vmax.f32 %v3577, 0.0
    %v4277 = vmax.f32 %v3580, 0.0
    %v4278 = vmax.f32 %v3582, 0.0
    %v4279 = vmax.f32 %v3585, 0.0
    %v4280 = vmax.f32 %v3587, 0.0
    %v4281 = vmax.f32 %v3590, 0.0
    %v4282 = vmax.f32 %v3592, 0.0
    %v4283 = vmax.f32 %v3595, 0.0
    %v4284 = vmax.f32 %v3597, 0.0
    %v4285 = vmax.f32 %v3600, 0.0
    %v4286 = vmax.f32 %v3602, 0.0
    %v4287 = vmax.f32 %v3605, 0.0
    %v4288 = vmax.f32 %v3607, 0.0
    %v4289 = vmax.f32 %v3610, 0.0
    %v4290 = vmax.f32 %v3612, 0.0
    %v4291 = vmax.f32 %v3615, 0.0
    %v4292 = vmax.f32 %v3617, 0.0
    %v4293 = vmax.f32 %v3620, 0.0
    %v4294 = vmax.f32 %v3622, 0.0
    %v4295 = vmax.f32 %v3625, 0.0
    %v4296 = vmax.f32 %v3627, 0.0
    %v4297 = vmax.f32 %v3630, 0.0
    %v4298 = vmax.f32 %v3632, 0.0
    %v4299 = vmax.f32 %v3635, 0.0
    %v4300 = vmax.f32 %v3637, 0.0
    %v4301 = vmax.f32 %v3640, 0.0
    %v4302 = vmax.f32 %v3642, 0.0
    %v4303 = vmax.f32 %v3645, 0.0
    %v4304 = vmax.f32 %v3647, 0.0
    %v4305 = vmax.f32 %v3650, 0.0
    %v4306 = vmax.f32 %v3652, 0.0
    %v4307 = vmax.f32 %v3655, 0.0
    %v4308 = vmax.f32 %v3657, 0.0
    %v4309 = vmax.f32 %v3660, 0.0
    %v4310 = vmax.f32 %v3662, 0.0
    %v4311 = vmax.f32 %v3665, 0.0
    %v4312 = vmax.f32 %v3667, 0.0
    %v4313 = vmax.f32 %v3670, 0.0
    %v4314 = vmax.f32 %v3672, 0.0
    %v4315 = vmax.f32 %v3675, 0.0
    %v4316 = vmax.f32 %v3677, 0.0
    %v4317 = vmax.f32 %v3680, 0.0
    %v4318 = vmax.f32 %v3682, 0.0
    %v4319 = vmax.f32 %v3685, 0.0
    %v4320 = vmax.f32 %v3687, 0.0
    %v4321 = vmax.f32 %v3690, 0.0
    %v4322 = vmax.f32 %v3692, 0.0
    %v4323 = vmax.f32 %v3695, 0.0
    %v4324 = vmax.f32 %v3697, 0.0
    %v4325 = vmax.f32 %v3700, 0.0
    %v4326 = vmax.f32 %v3702, 0.0
    %v4327 = vmax.f32 %v3705, 0.0
    %v4328 = vmax.f32 %v3707, 0.0
    %v4329 = vmax.f32 %v3710, 0.0
    %v4330 = vmax.f32 %v3712, 0.0
    %v4331 = vmax.f32 %v3715, 0.0
    %v4332 = vmax.f32 %v3717, 0.0
    %v4333 = vmax.f32 %v3720, 0.0
    %v4334 = vmax.f32 %v3722, 0.0
    %v4335 = vmax.f32 %v3725, 0.0
    %v4336 = vmax.f32 %v3727, 0.0
    %v4337 = vmax.f32 %v3730, 0.0
    %v4338 = vmax.f32 %v3732, 0.0
    %v4339 = vmax.f32 %v3735, 0.0
    %v4340 = vmax.f32 %v3737, 0.0
    %v4341 = vmax.f32 %v3740, 0.0
    %v4342 = vmax.f32 %v3742, 0.0
    %v4343 = vmax.f32 %v3745, 0.0
    %v4344 = vmax.f32 %v3747, 0.0
    %v4345 = vmax.f32 %v3750, 0.0
    %v4346 = vmax.f32 %v3752, 0.0
    %v4347 = vmax.f32 %v3755, 0.0
    %v4348 = vmax.f32 %v3757, 0.0
    %v4349 = vmax.f32 %v3760, 0.0
    %v4350 = vmax.f32 %v3762, 0.0
    %v4351 = vmax.f32 %v3765, 0.0
    %v4352 = vmax.f32 %v3767, 0.0
    %v4353 = vmax.f32 %v3770, 0.0
    %v4354 = vmax.f32 %v3772, 0.0
    %v4355 = vmax.f32 %v3775, 0.0
    %v4356 = vmax.f32 %v3777, 0.0
    %v4357 = vmax.f32 %v3780, 0.0
    %v4358 = vmax.f32 %v3782, 0.0
    %v4359 = vmax.f32 %v3785, 0.0
    %v4360 = vmax.f32 %v3787, 0.0
    %v4361 = vmax.f32 %v3790, 0.0
    %v4362 = vmax.f32 %v3792, 0.0
    %v4363 = vmax.f32 %v3795, 0.0
    %v4364 = vmax.f32 %v3797, 0.0
    %v4365 = vmax.f32 %v3800, 0.0
    %v4366 = vmax.f32 %v3802, 0.0
    %v4367 = vmax.f32 %v3805, 0.0
    %v4368 = vmax.f32 %v3807, 0.0
    %v4369 = vmax.f32 %v3810, 0.0
    %v4370 = vmax.f32 %v3812, 0.0
    %v4371 = vmax.f32 %v3815, 0.0
    %v4372 = vmax.f32 %v3817, 0.0
    %v4373 = vmax.f32 %v3820, 0.0
    %v4374 = vmax.f32 %v3822, 0.0
    %v4375 = vmax.f32 %v3825, 0.0
    %v4376 = vmax.f32 %v3827, 0.0
    %v4377 = vmax.f32 %v3830, 0.0
    %v4378 = vmax.f32 %v3832, 0.0
    %v4379 = vmax.f32 %v3835, 0.0
    %v4380 = vmax.f32 %v3837, 0.0
    %v4381 = vmax.f32 %v3840, 0.0
    %v4382 = vmax.f32 %v3842, 0.0
    %v4383 = vmax.f32 %v3845, 0.0
    %v4384 = vmax.f32 %v3847, 0.0
    %v4385 = vmax.f32 %v3850, 0.0
    %v4386 = vmax.f32 %v3852, 0.0
    %v4387 = vmax.f32 %v3855, 0.0
    %v4388 = vmax.f32 %v3857, 0.0
    %v4389 = vmax.f32 %v3860, 0.0
    %v4390 = vmax.f32 %v3862, 0.0
    %v4391 = vmax.f32 %v3865, 0.0
    %v4392 = vmax.f32 %v3867, 0.0
    %v4393 = vmax.f32 %v3870, 0.0
    %v4394 = vmax.f32 %v3872, 0.0
    %v4395 = vmax.f32 %v3875, 0.0
    %v4396 = vmax.f32 %v3877, 0.0
    %v4397 = vmax.f32 %v3880, 0.0
    %v4398 = vmax.f32 %v3882, 0.0
    %v4399 = vmax.f32 %v3885, 0.0
    %v4400 = vmax.f32 %v3887, 0.0
    %v4401 = vpack.c.bf16 %v3890, %v3889
    %v4402 = vpack.c.bf16 %v3892, %v3891
    %v4403 = vpack.c.bf16 %v3894, %v3893
    %v4404 = vpack.c.bf16 %v3896, %v3895
    %v4405 = vpack.c.bf16 %v3898, %v3897
    %v4406 = vpack.c.bf16 %v3900, %v3899
    %v4407 = vpack.c.bf16 %v3902, %v3901
    %v4408 = vpack.c.bf16 %v3904, %v3903
    %v4409 = vpack.c.bf16 %v3906, %v3905
    %v4410 = vpack.c.bf16 %v3908, %v3907
    %v4411 = vpack.c.bf16 %v3910, %v3909
    %v4412 = vpack.c.bf16 %v3912, %v3911
    %v4413 = vpack.c.bf16 %v3914, %v3913
    %v4414 = vpack.c.bf16 %v3916, %v3915
    %v4415 = vpack.c.bf16 %v3918, %v3917
    %v4416 = vpack.c.bf16 %v3920, %v3919
    %v4417 = vpack.c.bf16 %v3922, %v3921
    %v4418 = vpack.c.bf16 %v3924, %v3923
    %v4419 = vpack.c.bf16 %v3926, %v3925
    %v4420 = vpack.c.bf16 %v3928, %v3927
    %v4421 = vpack.c.bf16 %v3930, %v3929
    %v4422 = vpack.c.bf16 %v3932, %v3931
    %v4423 = vpack.c.bf16 %v3934, %v3933
    %v4424 = vpack.c.bf16 %v3936, %v3935
    %v4425 = vpack.c.bf16 %v3938, %v3937
    %v4426 = vpack.c.bf16 %v3940, %v3939
    %v4427 = vpack.c.bf16 %v3942, %v3941
    %v4428 = vpack.c.bf16 %v3944, %v3943
    %v4429 = vpack.c.bf16 %v3946, %v3945
    %v4430 = vpack.c.bf16 %v3948, %v3947
    %v4431 = vpack.c.bf16 %v3950, %v3949
    %v4432 = vpack.c.bf16 %v3952, %v3951
    %v4433 = vpack.c.bf16 %v3954, %v3953
    %v4434 = vpack.c.bf16 %v3956, %v3955
    %v4435 = vpack.c.bf16 %v3958, %v3957
    %v4436 = vpack.c.bf16 %v3960, %v3959
    %v4437 = vpack.c.bf16 %v3962, %v3961
    %v4438 = vpack.c.bf16 %v3964, %v3963
    %v4439 = vpack.c.bf16 %v3966, %v3965
    %v4440 = vpack.c.bf16 %v3968, %v3967
    %v4441 = vpack.c.bf16 %v3970, %v3969
    %v4442 = vpack.c.bf16 %v3972, %v3971
    %v4443 = vpack.c.bf16 %v3974, %v3973
    %v4444 = vpack.c.bf16 %v3976, %v3975
    %v4445 = vpack.c.bf16 %v3978, %v3977
    %v4446 = vpack.c.bf16 %v3980, %v3979
    %v4447 = vpack.c.bf16 %v3982, %v3981
    %v4448 = vpack.c.bf16 %v3984, %v3983
    %v4449 = vpack.c.bf16 %v3986, %v3985
    %v4450 = vpack.c.bf16 %v3988, %v3987
    %v4451 = vpack.c.bf16 %v3990, %v3989
    %v4452 = vpack.c.bf16 %v3992, %v3991
    %v4453 = vpack.c.bf16 %v3994, %v3993
    %v4454 = vpack.c.bf16 %v3996, %v3995
    %v4455 = vpack.c.bf16 %v3998, %v3997
    %v4456 = vpack.c.bf16 %v4000, %v3999
    %v4457 = vpack.c.bf16 %v4002, %v4001
    %v4458 = vpack.c.bf16 %v4004, %v4003
    %v4459 = vpack.c.bf16 %v4006, %v4005
    %v4460 = vpack.c.bf16 %v4008, %v4007
    %v4461 = vpack.c.bf16 %v4010, %v4009
    %v4462 = vpack.c.bf16 %v4012, %v4011
    %v4463 = vpack.c.bf16 %v4014, %v4013
    %v4464 = vpack.c.bf16 %v4016, %v4015
    %v4465 = vpack.c.bf16 %v4018, %v4017
    %v4466 = vpack.c.bf16 %v4020, %v4019
    %v4467 = vpack.c.bf16 %v4022, %v4021
    %v4468 = vpack.c.bf16 %v4024, %v4023
    %v4469 = vpack.c.bf16 %v4026, %v4025
    %v4470 = vpack.c.bf16 %v4028, %v4027
    %v4471 = vpack.c.bf16 %v4030, %v4029
    %v4472 = vpack.c.bf16 %v4032, %v4031
    %v4473 = vpack.c.bf16 %v4034, %v4033
    %v4474 = vpack.c.bf16 %v4036, %v4035
    %v4475 = vpack.c.bf16 %v4038, %v4037
    %v4476 = vpack.c.bf16 %v4040, %v4039
    %v4477 = vpack.c.bf16 %v4042, %v4041
    %v4478 = vpack.c.bf16 %v4044, %v4043
    %v4479 = vpack.c.bf16 %v4046, %v4045
    %v4480 = vpack.c.bf16 %v4048, %v4047
    %v4481 = vpack.c.bf16 %v4050, %v4049
    %v4482 = vpack.c.bf16 %v4052, %v4051
    %v4483 = vpack.c.bf16 %v4054, %v4053
    %v4484 = vpack.c.bf16 %v4056, %v4055
    %v4485 = vpack.c.bf16 %v4058, %v4057
    %v4486 = vpack.c.bf16 %v4060, %v4059
    %v4487 = vpack.c.bf16 %v4062, %v4061
    %v4488 = vpack.c.bf16 %v4064, %v4063
    %v4489 = vpack.c.bf16 %v4066, %v4065
    %v4490 = vpack.c.bf16 %v4068, %v4067
    %v4491 = vpack.c.bf16 %v4070, %v4069
    %v4492 = vpack.c.bf16 %v4072, %v4071
    %v4493 = vpack.c.bf16 %v4074, %v4073
    %v4494 = vpack.c.bf16 %v4076, %v4075
    %v4495 = vpack.c.bf16 %v4078, %v4077
    %v4496 = vpack.c.bf16 %v4080, %v4079
    %v4497 = vpack.c.bf16 %v4082, %v4081
    %v4498 = vpack.c.bf16 %v4084, %v4083
    %v4499 = vpack.c.bf16 %v4086, %v4085
    %v4500 = vpack.c.bf16 %v4088, %v4087
    %v4501 = vpack.c.bf16 %v4090, %v4089
    %v4502 = vpack.c.bf16 %v4092, %v4091
    %v4503 = vpack.c.bf16 %v4094, %v4093
    %v4504 = vpack.c.bf16 %v4096, %v4095
    %v4505 = vpack.c.bf16 %v4098, %v4097
    %v4506 = vpack.c.bf16 %v4100, %v4099
    %v4507 = vpack.c.bf16 %v4102, %v4101
    %v4508 = vpack.c.bf16 %v4104, %v4103
    %v4509 = vpack.c.bf16 %v4106, %v4105
    %v4510 = vpack.c.bf16 %v4108, %v4107
    %v4511 = vpack.c.bf16 %v4110, %v4109
    %v4512 = vpack.c.bf16 %v4112, %v4111
    %v4513 = vpack.c.bf16 %v4114, %v4113
    %v4514 = vpack.c.bf16 %v4116, %v4115
    %v4515 = vpack.c.bf16 %v4118, %v4117
    %v4516 = vpack.c.bf16 %v4120, %v4119
    %v4517 = vpack.c.bf16 %v4122, %v4121
    %v4518 = vpack.c.bf16 %v4124, %v4123
    %v4519 = vpack.c.bf16 %v4126, %v4125
    %v4520 = vpack.c.bf16 %v4128, %v4127
    %v4521 = vpack.c.bf16 %v4130, %v4129
    %v4522 = vpack.c.bf16 %v4132, %v4131
    %v4523 = vpack.c.bf16 %v4134, %v4133
    %v4524 = vpack.c.bf16 %v4136, %v4135
    %v4525 = vpack.c.bf16 %v4138, %v4137
    %v4526 = vpack.c.bf16 %v4140, %v4139
    %v4527 = vpack.c.bf16 %v4142, %v4141
    %v4528 = vpack.c.bf16 %v4144, %v4143
    %v4529 = vpack.c.bf16 %v4146, %v4145
    %v4530 = vpack.c.bf16 %v4148, %v4147
    %v4531 = vpack.c.bf16 %v4150, %v4149
    %v4532 = vpack.c.bf16 %v4152, %v4151
    %v4533 = vpack.c.bf16 %v4154, %v4153
    %v4534 = vpack.c.bf16 %v4156, %v4155
    %v4535 = vpack.c.bf16 %v4158, %v4157
    %v4536 = vpack.c.bf16 %v4160, %v4159
    %v4537 = vpack.c.bf16 %v4162, %v4161
    %v4538 = vpack.c.bf16 %v4164, %v4163
    %v4539 = vpack.c.bf16 %v4166, %v4165
    %v4540 = vpack.c.bf16 %v4168, %v4167
    %v4541 = vpack.c.bf16 %v4170, %v4169
    %v4542 = vpack.c.bf16 %v4172, %v4171
    %v4543 = vpack.c.bf16 %v4174, %v4173
    %v4544 = vpack.c.bf16 %v4176, %v4175
    %v4545 = vpack.c.bf16 %v4178, %v4177
    %v4546 = vpack.c.bf16 %v4180, %v4179
    %v4547 = vpack.c.bf16 %v4182, %v4181
    %v4548 = vpack.c.bf16 %v4184, %v4183
    %v4549 = vpack.c.bf16 %v4186, %v4185
    %v4550 = vpack.c.bf16 %v4188, %v4187
    %v4551 = vpack.c.bf16 %v4190, %v4189
    %v4552 = vpack.c.bf16 %v4192, %v4191
    %v4553 = vpack.c.bf16 %v4194, %v4193
    %v4554 = vpack.c.bf16 %v4196, %v4195
    %v4555 = vpack.c.bf16 %v4198, %v4197
    %v4556 = vpack.c.bf16 %v4200, %v4199
    %v4557 = vpack.c.bf16 %v4202, %v4201
    %v4558 = vpack.c.bf16 %v4204, %v4203
    %v4559 = vpack.c.bf16 %v4206, %v4205
    %v4560 = vpack.c.bf16 %v4208, %v4207
    %v4561 = vpack.c.bf16 %v4210, %v4209
    %v4562 = vpack.c.bf16 %v4212, %v4211
    %v4563 = vpack.c.bf16 %v4214, %v4213
    %v4564 = vpack.c.bf16 %v4216, %v4215
    %v4565 = vpack.c.bf16 %v4218, %v4217
    %v4566 = vpack.c.bf16 %v4220, %v4219
    %v4567 = vpack.c.bf16 %v4222, %v4221
    %v4568 = vpack.c.bf16 %v4224, %v4223
    %v4569 = vpack.c.bf16 %v4226, %v4225
    %v4570 = vpack.c.bf16 %v4228, %v4227
    %v4571 = vpack.c.bf16 %v4230, %v4229
    %v4572 = vpack.c.bf16 %v4232, %v4231
    %v4573 = vpack.c.bf16 %v4234, %v4233
    %v4574 = vpack.c.bf16 %v4236, %v4235
    %v4575 = vpack.c.bf16 %v4238, %v4237
    %v4576 = vpack.c.bf16 %v4240, %v4239
    %v4577 = vpack.c.bf16 %v4242, %v4241
    %v4578 = vpack.c.bf16 %v4244, %v4243
    %v4579 = vpack.c.bf16 %v4246, %v4245
    %v4580 = vpack.c.bf16 %v4248, %v4247
    %v4581 = vpack.c.bf16 %v4250, %v4249
    %v4582 = vpack.c.bf16 %v4252, %v4251
    %v4583 = vpack.c.bf16 %v4254, %v4253
    %v4584 = vpack.c.bf16 %v4256, %v4255
    %v4585 = vpack.c.bf16 %v4258, %v4257
    %v4586 = vpack.c.bf16 %v4260, %v4259
    %v4587 = vpack.c.bf16 %v4262, %v4261
    %v4588 = vpack.c.bf16 %v4264, %v4263
    %v4589 = vpack.c.bf16 %v4266, %v4265
    %v4590 = vpack.c.bf16 %v4268, %v4267
    %v4591 = vpack.c.bf16 %v4270, %v4269
    %v4592 = vpack.c.bf16 %v4272, %v4271
    %v4593 = vpack.c.bf16 %v4274, %v4273
    %v4594 = vpack.c.bf16 %v4276, %v4275
    %v4595 = vpack.c.bf16 %v4278, %v4277
    %v4596 = vpack.c.bf16 %v4280, %v4279
    %v4597 = vpack.c.bf16 %v4282, %v4281
    %v4598 = vpack.c.bf16 %v4284, %v4283
    %v4599 = vpack.c.bf16 %v4286, %v4285
    %v4600 = vpack.c.bf16 %v4288, %v4287
    %v4601 = vpack.c.bf16 %v4290, %v4289
    %v4602 = vpack.c.bf16 %v4292, %v4291
    %v4603 = vpack.c.bf16 %v4294, %v4293
    %v4604 = vpack.c.bf16 %v4296, %v4295
    %v4605 = vpack.c.bf16 %v4298, %v4297
    %v4606 = vpack.c.bf16 %v4300, %v4299
    %v4607 = vpack.c.bf16 %v4302, %v4301
    %v4608 = vpack.c.bf16 %v4304, %v4303
    %v4609 = vpack.c.bf16 %v4306, %v4305
    %v4610 = vpack.c.bf16 %v4308, %v4307
    %v4611 = vpack.c.bf16 %v4310, %v4309
    %v4612 = vpack.c.bf16 %v4312, %v4311
    %v4613 = vpack.c.bf16 %v4314, %v4313
    %v4614 = vpack.c.bf16 %v4316, %v4315
    %v4615 = vpack.c.bf16 %v4318, %v4317
    %v4616 = vpack.c.bf16 %v4320, %v4319
    %v4617 = vpack.c.bf16 %v4322, %v4321
    %v4618 = vpack.c.bf16 %v4324, %v4323
    %v4619 = vpack.c.bf16 %v4326, %v4325
    %v4620 = vpack.c.bf16 %v4328, %v4327
    %v4621 = vpack.c.bf16 %v4330, %v4329
    %v4622 = vpack.c.bf16 %v4332, %v4331
    %v4623 = vpack.c.bf16 %v4334, %v4333
    %v4624 = vpack.c.bf16 %v4336, %v4335
    %v4625 = vpack.c.bf16 %v4338, %v4337
    %v4626 = vpack.c.bf16 %v4340, %v4339
    %v4627 = vpack.c.bf16 %v4342, %v4341
    %v4628 = vpack.c.bf16 %v4344, %v4343
    %v4629 = vpack.c.bf16 %v4346, %v4345
    %v4630 = vpack.c.bf16 %v4348, %v4347
    %v4631 = vpack.c.bf16 %v4350, %v4349
    %v4632 = vpack.c.bf16 %v4352, %v4351
    %v4633 = vpack.c.bf16 %v4354, %v4353
    %v4634 = vpack.c.bf16 %v4356, %v4355
    %v4635 = vpack.c.bf16 %v4358, %v4357
    %v4636 = vpack.c.bf16 %v4360, %v4359
    %v4637 = vpack.c.bf16 %v4362, %v4361
    %v4638 = vpack.c.bf16 %v4364, %v4363
    %v4639 = vpack.c.bf16 %v4366, %v4365
    %v4640 = vpack.c.bf16 %v4368, %v4367
    %v4641 = vpack.c.bf16 %v4370, %v4369
    %v4642 = vpack.c.bf16 %v4372, %v4371
    %v4643 = vpack.c.bf16 %v4374, %v4373
    %v4644 = vpack.c.bf16 %v4376, %v4375
    %v4645 = vpack.c.bf16 %v4378, %v4377
    %v4646 = vpack.c.bf16 %v4380, %v4379
    %v4647 = vpack.c.bf16 %v4382, %v4381
    %v4648 = vpack.c.bf16 %v4384, %v4383
    %v4649 = vpack.c.bf16 %v4386, %v4385
    %v4650 = vpack.c.bf16 %v4388, %v4387
    %v4651 = vpack.c.bf16 %v4390, %v4389
    %v4652 = vpack.c.bf16 %v4392, %v4391
    %v4653 = vpack.c.bf16 %v4394, %v4393
    %v4654 = vpack.c.bf16 %v4396, %v4395
    %v4655 = vpack.c.bf16 %v4398, %v4397
    %v4656 = vpack.c.bf16 %v4400, %v4399
    %v4657 = vld [vmem:[%s3] sm:$0xff]
    %v4658 = vld [vmem:[%s3 + $0x8] sm:$0xff]
    %v4659 = vld [vmem:[%s3 + $0x10] sm:$0xff]
    %v4660 = vld [vmem:[%s3 + $0x18] sm:$0xff]
    %v4661 = vld [vmem:[%s3 + $0x20] sm:$0xff]
    %v4662 = vld [vmem:[%s3 + $0x28] sm:$0xff]
    %v4663 = vld [vmem:[%s3 + $0x30] sm:$0xff]
    %v4664 = vld [vmem:[%s3 + $0x38] sm:$0xff]
    %v4665 = vld [vmem:[%s3 + $0x40] sm:$0xff]
    %v4666 = vld [vmem:[%s3 + $0x48] sm:$0xff]
    %v4667 = vld [vmem:[%s3 + $0x50] sm:$0xff]
    %v4668 = vld [vmem:[%s3 + $0x58] sm:$0xff]
    %v4669 = vld [vmem:[%s3 + $0x60] sm:$0xff]
    %v4670 = vld [vmem:[%s3 + $0x68] sm:$0xff]
    %v4671 = vld [vmem:[%s3 + $0x70] sm:$0xff]
    %v4672 = vld [vmem:[%s3 + $0x78] sm:$0xff]
    %v4673 = vld [vmem:[%s3 + $0x80] sm:$0xff]
    %v4674 = vld [vmem:[%s3 + $0x88] sm:$0xff]
    %v4675 = vld [vmem:[%s3 + $0x90] sm:$0xff]
    %v4676 = vld [vmem:[%s3 + $0x98] sm:$0xff]
    %v4677 = vld [vmem:[%s3 + $0xa0] sm:$0xff]
    %v4678 = vld [vmem:[%s3 + $0xa8] sm:$0xff]
    %v4679 = vld [vmem:[%s3 + $0xb0] sm:$0xff]
    %v4680 = vld [vmem:[%s3 + $0xb8] sm:$0xff]
    %v4681 = vld [vmem:[%s3 + $0xc0] sm:$0xff]
    %v4682 = vld [vmem:[%s3 + $0xc8] sm:$0xff]
    %v4683 = vld [vmem:[%s3 + $0xd0] sm:$0xff]
    %v4684 = vld [vmem:[%s3 + $0xd8] sm:$0xff]
    %v4685 = vld [vmem:[%s3 + $0xe0] sm:$0xff]
    %v4686 = vld [vmem:[%s3 + $0xe8] sm:$0xff]
    %v4687 = vld [vmem:[%s3 + $0xf0] sm:$0xff]
    %v4688 = vld [vmem:[%s3 + $0xf8] sm:$0xff]
    %v4721 = vunpack.c.l.b16 %v4657
    %v4722 = vunpack.c.h.b16 %v4657
    %v4723 = vunpack.c.l.b16 %v4658
    %v4724 = vunpack.c.h.b16 %v4658
    %v4725 = vunpack.c.l.b16 %v4659
    %v4726 = vunpack.c.h.b16 %v4659
    %v4727 = vunpack.c.l.b16 %v4660
    %v4728 = vunpack.c.h.b16 %v4660
    %v4729 = vunpack.c.l.b16 %v4661
    %v4730 = vunpack.c.h.b16 %v4661
    %v4731 = vunpack.c.l.b16 %v4662
    %v4732 = vunpack.c.h.b16 %v4662
    %v4733 = vunpack.c.l.b16 %v4663
    %v4734 = vunpack.c.h.b16 %v4663
    %v4735 = vunpack.c.l.b16 %v4664
    %v4736 = vunpack.c.h.b16 %v4664
    %v4737 = vunpack.c.l.b16 %v4665
    %v4738 = vunpack.c.h.b16 %v4665
    %v4739 = vunpack.c.l.b16 %v4666
    %v4740 = vunpack.c.h.b16 %v4666
    %v4741 = vunpack.c.l.b16 %v4667
    %v4742 = vunpack.c.h.b16 %v4667
    %v4743 = vunpack.c.l.b16 %v4668
    %v4744 = vunpack.c.h.b16 %v4668
    %v4745 = vunpack.c.l.b16 %v4669
    %v4746 = vunpack.c.h.b16 %v4669
    %v4747 = vunpack.c.l.b16 %v4670
    %v4748 = vunpack.c.h.b16 %v4670
    %v4749 = vunpack.c.l.b16 %v4671
    %v4750 = vunpack.c.h.b16 %v4671
    %v4751 = vunpack.c.l.b16 %v4672
    %v4752 = vunpack.c.h.b16 %v4672
    %v4753 = vunpack.c.l.b16 %v4673
    %v4754 = vunpack.c.h.b16 %v4673
    %v4755 = vunpack.c.l.b16 %v4674
    %v4756 = vunpack.c.h.b16 %v4674
    %v4757 = vunpack.c.l.b16 %v4675
    %v4758 = vunpack.c.h.b16 %v4675
    %v4759 = vunpack.c.l.b16 %v4676
    %v4760 = vunpack.c.h.b16 %v4676
    %v4761 = vunpack.c.l.b16 %v4677
    %v4762 = vunpack.c.h.b16 %v4677
    %v4763 = vunpack.c.l.b16 %v4678
    %v4764 = vunpack.c.h.b16 %v4678
    %v4765 = vunpack.c.l.b16 %v4679
    %v4766 = vunpack.c.h.b16 %v4679
    %v4767 = vunpack.c.l.b16 %v4680
    %v4768 = vunpack.c.h.b16 %v4680
    %v4769 = vunpack.c.l.b16 %v4681
    %v4770 = vunpack.c.h.b16 %v4681
    %v4771 = vunpack.c.l.b16 %v4682
    %v4772 = vunpack.c.h.b16 %v4682
    %v4773 = vunpack.c.l.b16 %v4683
    %v4774 = vunpack.c.h.b16 %v4683
    %v4775 = vunpack.c.l.b16 %v4684
    %v4776 = vunpack.c.h.b16 %v4684
    %v4777 = vunpack.c.l.b16 %v4685
    %v4778 = vunpack.c.h.b16 %v4685
    %v4779 = vunpack.c.l.b16 %v4686
    %v4780 = vunpack.c.h.b16 %v4686
    %v4781 = vunpack.c.l.b16 %v4687
    %v4782 = vunpack.c.h.b16 %v4687
    %v4783 = vunpack.c.l.b16 %v4688
    %v4784 = vunpack.c.h.b16 %v4688
    %v4785 = vpack.c.b16 %v4753, %v4721
    %v4786 = vpack.c.b16 %v4754, %v4722
    %v4787 = vpack.c.b16 %v4755, %v4723
    %v4788 = vpack.c.b16 %v4756, %v4724
    %v4789 = vpack.c.b16 %v4757, %v4725
    %v4790 = vpack.c.b16 %v4758, %v4726
    %v4791 = vpack.c.b16 %v4759, %v4727
    %v4792 = vpack.c.b16 %v4760, %v4728
    %v4793 = vpack.c.b16 %v4761, %v4729
    %v4794 = vpack.c.b16 %v4762, %v4730
    %v4795 = vpack.c.b16 %v4763, %v4731
    %v4796 = vpack.c.b16 %v4764, %v4732
    %v4797 = vpack.c.b16 %v4765, %v4733
    %v4798 = vpack.c.b16 %v4766, %v4734
    %v4799 = vpack.c.b16 %v4767, %v4735
    %v4800 = vpack.c.b16 %v4768, %v4736
    %v4801 = vpack.c.b16 %v4769, %v4737
    %v4802 = vpack.c.b16 %v4770, %v4738
    %v4803 = vpack.c.b16 %v4771, %v4739
    %v4804 = vpack.c.b16 %v4772, %v4740
    %v4805 = vpack.c.b16 %v4773, %v4741
    %v4806 = vpack.c.b16 %v4774, %v4742
    %v4807 = vpack.c.b16 %v4775, %v4743
    %v4808 = vpack.c.b16 %v4776, %v4744
    %v4809 = vpack.c.b16 %v4777, %v4745
    %v4810 = vpack.c.b16 %v4778, %v4746
    %v4811 = vpack.c.b16 %v4779, %v4747
    %v4812 = vpack.c.b16 %v4780, %v4748
    %v4813 = vpack.c.b16 %v4781, %v4749
    %v4814 = vpack.c.b16 %v4782, %v4750
    %v4815 = vpack.c.b16 %v4783, %v4751
    %v4816 = vpack.c.b16 %v4784, %v4752
    %4849 = vmatpush.bf16.msra.mxu0 %v4408
    %4850 = vmatpush.bf16.msra.mxu0 %v4407
    %4851 = vmatpush.bf16.msra.mxu0 %v4406
    %4852 = vmatpush.bf16.msra.mxu0 %v4405
    %4853 = vmatpush.bf16.msra.mxu0 %v4404
    %4854 = vmatpush.bf16.msra.mxu0 %v4403
    %4855 = vmatpush.bf16.msra.mxu0 %v4402
    %4856 = vmatpush.bf16.msra.mxu0 %v4401
    %4857 = vmatmul.bf16.gmra.mxu0 %v4785
    %v4858 = vpop.f32.mrf.mxu0
    %v4859 = vadd.f32 0.0, %v4858
    %v4860 = vpop.f32.mrf.mxu0
    %v4861 = vadd.f32 0.0, %v4860
    %4862 = vdwg.mxu0
    %4863 = vmatpush.bf16.msra.mxu0 %v4416
    %4864 = vmatpush.bf16.msra.mxu0 %v4415
    %4865 = vmatpush.bf16.msra.mxu0 %v4414
    %4866 = vmatpush.bf16.msra.mxu0 %v4413
    %4867 = vmatpush.bf16.msra.mxu0 %v4412
    %4868 = vmatpush.bf16.msra.mxu0 %v4411
    %4869 = vmatpush.bf16.msra.mxu0 %v4410
    %4870 = vmatpush.bf16.msra.mxu0 %v4409
    %4871 = vmatmul.bf16.gmra.mxu0 %v4786
    %v4872 = vpop.f32.mrf.mxu0
    %v4873 = vadd.f32 %v4859, %v4872
    %v4874 = vpop.f32.mrf.mxu0
    %v4875 = vadd.f32 %v4861, %v4874
    %4876 = vdwg.mxu0
    %4877 = vmatpush.bf16.msra.mxu0 %v4424
    %4878 = vmatpush.bf16.msra.mxu0 %v4423
    %4879 = vmatpush.bf16.msra.mxu0 %v4422
    %4880 = vmatpush.bf16.msra.mxu0 %v4421
    %4881 = vmatpush.bf16.msra.mxu0 %v4420
    %4882 = vmatpush.bf16.msra.mxu0 %v4419
    %4883 = vmatpush.bf16.msra.mxu0 %v4418
    %4884 = vmatpush.bf16.msra.mxu0 %v4417
    %4885 = vmatmul.bf16.gmra.mxu0 %v4787
    %v4886 = vpop.f32.mrf.mxu0
    %v4887 = vadd.f32 %v4873, %v4886
    %v4888 = vpop.f32.mrf.mxu0
    %v4889 = vadd.f32 %v4875, %v4888
    %4890 = vdwg.mxu0
    %4891 = vmatpush.bf16.msra.mxu0 %v4432
    %4892 = vmatpush.bf16.msra.mxu0 %v4431
    %4893 = vmatpush.bf16.msra.mxu0 %v4430
    %4894 = vmatpush.bf16.msra.mxu0 %v4429
    %4895 = vmatpush.bf16.msra.mxu0 %v4428
    %4896 = vmatpush.bf16.msra.mxu0 %v4427
    %4897 = vmatpush.bf16.msra.mxu0 %v4426
    %4898 = vmatpush.bf16.msra.mxu0 %v4425
    %4899 = vmatmul.bf16.gmra.mxu0 %v4788
    %v4900 = vpop.f32.mrf.mxu0
    %v4901 = vadd.f32 %v4887, %v4900
    %v4902 = vpop.f32.mrf.mxu0
    %v4903 = vadd.f32 %v4889, %v4902
    %4904 = vdwg.mxu0
    %4905 = vmatpush.bf16.msra.mxu0 %v4440
    %4906 = vmatpush.bf16.msra.mxu0 %v4439
    %4907 = vmatpush.bf16.msra.mxu0 %v4438
    %4908 = vmatpush.bf16.msra.mxu0 %v4437
    %4909 = vmatpush.bf16.msra.mxu0 %v4436
    %4910 = vmatpush.bf16.msra.mxu0 %v4435
    %4911 = vmatpush.bf16.msra.mxu0 %v4434
    %4912 = vmatpush.bf16.msra.mxu0 %v4433
    %4913 = vmatmul.bf16.gmra.mxu0 %v4789
    %v4914 = vpop.f32.mrf.mxu0
    %v4915 = vadd.f32 %v4901, %v4914
    %v4916 = vpop.f32.mrf.mxu0
    %v4917 = vadd.f32 %v4903, %v4916
    %4918 = vdwg.mxu0
    %4919 = vmatpush.bf16.msra.mxu0 %v4448
    %4920 = vmatpush.bf16.msra.mxu0 %v4447
    %4921 = vmatpush.bf16.msra.mxu0 %v4446
    %4922 = vmatpush.bf16.msra.mxu0 %v4445
    %4923 = vmatpush.bf16.msra.mxu0 %v4444
    %4924 = vmatpush.bf16.msra.mxu0 %v4443
    %4925 = vmatpush.bf16.msra.mxu0 %v4442
    %4926 = vmatpush.bf16.msra.mxu0 %v4441
    %4927 = vmatmul.bf16.gmra.mxu0 %v4790
    %v4928 = vpop.f32.mrf.mxu0
    %v4929 = vadd.f32 %v4915, %v4928
    %v4930 = vpop.f32.mrf.mxu0
    %v4931 = vadd.f32 %v4917, %v4930
    %4932 = vdwg.mxu0
    %4933 = vmatpush.bf16.msra.mxu0 %v4456
    %4934 = vmatpush.bf16.msra.mxu0 %v4455
    %4935 = vmatpush.bf16.msra.mxu0 %v4454
    %4936 = vmatpush.bf16.msra.mxu0 %v4453
    %4937 = vmatpush.bf16.msra.mxu0 %v4452
    %4938 = vmatpush.bf16.msra.mxu0 %v4451
    %4939 = vmatpush.bf16.msra.mxu0 %v4450
    %4940 = vmatpush.bf16.msra.mxu0 %v4449
    %4941 = vmatmul.bf16.gmra.mxu0 %v4791
    %v4942 = vpop.f32.mrf.mxu0
    %v4943 = vadd.f32 %v4929, %v4942
    %v4944 = vpop.f32.mrf.mxu0
    %v4945 = vadd.f32 %v4931, %v4944
    %4946 = vdwg.mxu0
    %4947 = vmatpush.bf16.msra.mxu0 %v4464
    %4948 = vmatpush.bf16.msra.mxu0 %v4463
    %4949 = vmatpush.bf16.msra.mxu0 %v4462
    %4950 = vmatpush.bf16.msra.mxu0 %v4461
    %4951 = vmatpush.bf16.msra.mxu0 %v4460
    %4952 = vmatpush.bf16.msra.mxu0 %v4459
    %4953 = vmatpush.bf16.msra.mxu0 %v4458
    %4954 = vmatpush.bf16.msra.mxu0 %v4457
    %4955 = vmatmul.bf16.gmra.mxu0 %v4792
    %v4956 = vpop.f32.mrf.mxu0
    %v4957 = vadd.f32 %v4943, %v4956
    %v4958 = vpop.f32.mrf.mxu0
    %v4959 = vadd.f32 %v4945, %v4958
    %4960 = vdwg.mxu0
    %4961 = vmatpush.bf16.msra.mxu0 %v4472
    %4962 = vmatpush.bf16.msra.mxu0 %v4471
    %4963 = vmatpush.bf16.msra.mxu0 %v4470
    %4964 = vmatpush.bf16.msra.mxu0 %v4469
    %4965 = vmatpush.bf16.msra.mxu0 %v4468
    %4966 = vmatpush.bf16.msra.mxu0 %v4467
    %4967 = vmatpush.bf16.msra.mxu0 %v4466
    %4968 = vmatpush.bf16.msra.mxu0 %v4465
    %4969 = vmatmul.bf16.gmra.mxu0 %v4793
    %v4970 = vpop.f32.mrf.mxu0
    %v4971 = vadd.f32 %v4957, %v4970
    %v4972 = vpop.f32.mrf.mxu0
    %v4973 = vadd.f32 %v4959, %v4972
    %4974 = vdwg.mxu0
    %4975 = vmatpush.bf16.msra.mxu0 %v4480
    %4976 = vmatpush.bf16.msra.mxu0 %v4479
    %4977 = vmatpush.bf16.msra.mxu0 %v4478
    %4978 = vmatpush.bf16.msra.mxu0 %v4477
    %4979 = vmatpush.bf16.msra.mxu0 %v4476
    %4980 = vmatpush.bf16.msra.mxu0 %v4475
    %4981 = vmatpush.bf16.msra.mxu0 %v4474
    %4982 = vmatpush.bf16.msra.mxu0 %v4473
    %4983 = vmatmul.bf16.gmra.mxu0 %v4794
    %v4984 = vpop.f32.mrf.mxu0
    %v4985 = vadd.f32 %v4971, %v4984
    %v4986 = vpop.f32.mrf.mxu0
    %v4987 = vadd.f32 %v4973, %v4986
    %4988 = vdwg.mxu0
    %4989 = vmatpush.bf16.msra.mxu0 %v4488
    %4990 = vmatpush.bf16.msra.mxu0 %v4487
    %4991 = vmatpush.bf16.msra.mxu0 %v4486
    %4992 = vmatpush.bf16.msra.mxu0 %v4485
    %4993 = vmatpush.bf16.msra.mxu0 %v4484
    %4994 = vmatpush.bf16.msra.mxu0 %v4483
    %4995 = vmatpush.bf16.msra.mxu0 %v4482
    %4996 = vmatpush.bf16.msra.mxu0 %v4481
    %4997 = vmatmul.bf16.gmra.mxu0 %v4795
    %v4998 = vpop.f32.mrf.mxu0
    %v4999 = vadd.f32 %v4985, %v4998
    %v5000 = vpop.f32.mrf.mxu0
    %v5001 = vadd.f32 %v4987, %v5000
    %5002 = vdwg.mxu0
    %5003 = vmatpush.bf16.msra.mxu0 %v4496
    %5004 = vmatpush.bf16.msra.mxu0 %v4495
    %5005 = vmatpush.bf16.msra.mxu0 %v4494
    %5006 = vmatpush.bf16.msra.mxu0 %v4493
    %5007 = vmatpush.bf16.msra.mxu0 %v4492
    %5008 = vmatpush.bf16.msra.mxu0 %v4491
    %5009 = vmatpush.bf16.msra.mxu0 %v4490
    %5010 = vmatpush.bf16.msra.mxu0 %v4489
    %5011 = vmatmul.bf16.gmra.mxu0 %v4796
    %v5012 = vpop.f32.mrf.mxu0
    %v5013 = vadd.f32 %v4999, %v5012
    %v5014 = vpop.f32.mrf.mxu0
    %v5015 = vadd.f32 %v5001, %v5014
    %5016 = vdwg.mxu0
    %5017 = vmatpush.bf16.msra.mxu0 %v4504
    %5018 = vmatpush.bf16.msra.mxu0 %v4503
    %5019 = vmatpush.bf16.msra.mxu0 %v4502
    %5020 = vmatpush.bf16.msra.mxu0 %v4501
    %5021 = vmatpush.bf16.msra.mxu0 %v4500
    %5022 = vmatpush.bf16.msra.mxu0 %v4499
    %5023 = vmatpush.bf16.msra.mxu0 %v4498
    %5024 = vmatpush.bf16.msra.mxu0 %v4497
    %5025 = vmatmul.bf16.gmra.mxu0 %v4797
    %v5026 = vpop.f32.mrf.mxu0
    %v5027 = vadd.f32 %v5013, %v5026
    %v5028 = vpop.f32.mrf.mxu0
    %v5029 = vadd.f32 %v5015, %v5028
    %5030 = vdwg.mxu0
    %5031 = vmatpush.bf16.msra.mxu0 %v4512
    %5032 = vmatpush.bf16.msra.mxu0 %v4511
    %5033 = vmatpush.bf16.msra.mxu0 %v4510
    %5034 = vmatpush.bf16.msra.mxu0 %v4509
    %5035 = vmatpush.bf16.msra.mxu0 %v4508
    %5036 = vmatpush.bf16.msra.mxu0 %v4507
    %5037 = vmatpush.bf16.msra.mxu0 %v4506
    %5038 = vmatpush.bf16.msra.mxu0 %v4505
    %5039 = vmatmul.bf16.gmra.mxu0 %v4798
    %v5040 = vpop.f32.mrf.mxu0
    %v5041 = vadd.f32 %v5027, %v5040
    %v5042 = vpop.f32.mrf.mxu0
    %v5043 = vadd.f32 %v5029, %v5042
    %5044 = vdwg.mxu0
    %5045 = vmatpush.bf16.msra.mxu0 %v4520
    %5046 = vmatpush.bf16.msra.mxu0 %v4519
    %5047 = vmatpush.bf16.msra.mxu0 %v4518
    %5048 = vmatpush.bf16.msra.mxu0 %v4517
    %5049 = vmatpush.bf16.msra.mxu0 %v4516
    %5050 = vmatpush.bf16.msra.mxu0 %v4515
    %5051 = vmatpush.bf16.msra.mxu0 %v4514
    %5052 = vmatpush.bf16.msra.mxu0 %v4513
    %5053 = vmatmul.bf16.gmra.mxu0 %v4799
    %v5054 = vpop.f32.mrf.mxu0
    %v5055 = vadd.f32 %v5041, %v5054
    %v5056 = vpop.f32.mrf.mxu0
    %v5057 = vadd.f32 %v5043, %v5056
    %5058 = vdwg.mxu0
    %5059 = vmatpush.bf16.msra.mxu0 %v4528
    %5060 = vmatpush.bf16.msra.mxu0 %v4527
    %5061 = vmatpush.bf16.msra.mxu0 %v4526
    %5062 = vmatpush.bf16.msra.mxu0 %v4525
    %5063 = vmatpush.bf16.msra.mxu0 %v4524
    %5064 = vmatpush.bf16.msra.mxu0 %v4523
    %5065 = vmatpush.bf16.msra.mxu0 %v4522
    %5066 = vmatpush.bf16.msra.mxu0 %v4521
    %5067 = vmatmul.bf16.gmra.mxu0 %v4800
    %v5068 = vpop.f32.mrf.mxu0
    %v5069 = vadd.f32 %v5055, %v5068
    %v5070 = vpop.f32.mrf.mxu0
    %v5071 = vadd.f32 %v5057, %v5070
    %5072 = vdwg.mxu0
    %5073 = vmatpush.bf16.msra.mxu0 %v4536
    %5074 = vmatpush.bf16.msra.mxu0 %v4535
    %5075 = vmatpush.bf16.msra.mxu0 %v4534
    %5076 = vmatpush.bf16.msra.mxu0 %v4533
    %5077 = vmatpush.bf16.msra.mxu0 %v4532
    %5078 = vmatpush.bf16.msra.mxu0 %v4531
    %5079 = vmatpush.bf16.msra.mxu0 %v4530
    %5080 = vmatpush.bf16.msra.mxu0 %v4529
    %5081 = vmatmul.bf16.gmra.mxu0 %v4801
    %v5082 = vpop.f32.mrf.mxu0
    %v5083 = vadd.f32 %v5069, %v5082
    %v5084 = vpop.f32.mrf.mxu0
    %v5085 = vadd.f32 %v5071, %v5084
    %5086 = vdwg.mxu0
    %5087 = vmatpush.bf16.msra.mxu0 %v4544
    %5088 = vmatpush.bf16.msra.mxu0 %v4543
    %5089 = vmatpush.bf16.msra.mxu0 %v4542
    %5090 = vmatpush.bf16.msra.mxu0 %v4541
    %5091 = vmatpush.bf16.msra.mxu0 %v4540
    %5092 = vmatpush.bf16.msra.mxu0 %v4539
    %5093 = vmatpush.bf16.msra.mxu0 %v4538
    %5094 = vmatpush.bf16.msra.mxu0 %v4537
    %5095 = vmatmul.bf16.gmra.mxu0 %v4802
    %v5096 = vpop.f32.mrf.mxu0
    %v5097 = vadd.f32 %v5083, %v5096
    %v5098 = vpop.f32.mrf.mxu0
    %v5099 = vadd.f32 %v5085, %v5098
    %5100 = vdwg.mxu0
    %5101 = vmatpush.bf16.msra.mxu0 %v4552
    %5102 = vmatpush.bf16.msra.mxu0 %v4551
    %5103 = vmatpush.bf16.msra.mxu0 %v4550
    %5104 = vmatpush.bf16.msra.mxu0 %v4549
    %5105 = vmatpush.bf16.msra.mxu0 %v4548
    %5106 = vmatpush.bf16.msra.mxu0 %v4547
    %5107 = vmatpush.bf16.msra.mxu0 %v4546
    %5108 = vmatpush.bf16.msra.mxu0 %v4545
    %5109 = vmatmul.bf16.gmra.mxu0 %v4803
    %v5110 = vpop.f32.mrf.mxu0
    %v5111 = vadd.f32 %v5097, %v5110
    %v5112 = vpop.f32.mrf.mxu0
    %v5113 = vadd.f32 %v5099, %v5112
    %5114 = vdwg.mxu0
    %5115 = vmatpush.bf16.msra.mxu0 %v4560
    %5116 = vmatpush.bf16.msra.mxu0 %v4559
    %5117 = vmatpush.bf16.msra.mxu0 %v4558
    %5118 = vmatpush.bf16.msra.mxu0 %v4557
    %5119 = vmatpush.bf16.msra.mxu0 %v4556
    %5120 = vmatpush.bf16.msra.mxu0 %v4555
    %5121 = vmatpush.bf16.msra.mxu0 %v4554
    %5122 = vmatpush.bf16.msra.mxu0 %v4553
    %5123 = vmatmul.bf16.gmra.mxu0 %v4804
    %v5124 = vpop.f32.mrf.mxu0
    %v5125 = vadd.f32 %v5111, %v5124
    %v5126 = vpop.f32.mrf.mxu0
    %v5127 = vadd.f32 %v5113, %v5126
    %5128 = vdwg.mxu0
    %5129 = vmatpush.bf16.msra.mxu0 %v4568
    %5130 = vmatpush.bf16.msra.mxu0 %v4567
    %5131 = vmatpush.bf16.msra.mxu0 %v4566
    %5132 = vmatpush.bf16.msra.mxu0 %v4565
    %5133 = vmatpush.bf16.msra.mxu0 %v4564
    %5134 = vmatpush.bf16.msra.mxu0 %v4563
    %5135 = vmatpush.bf16.msra.mxu0 %v4562
    %5136 = vmatpush.bf16.msra.mxu0 %v4561
    %5137 = vmatmul.bf16.gmra.mxu0 %v4805
    %v5138 = vpop.f32.mrf.mxu0
    %v5139 = vadd.f32 %v5125, %v5138
    %v5140 = vpop.f32.mrf.mxu0
    %v5141 = vadd.f32 %v5127, %v5140
    %5142 = vdwg.mxu0
    %5143 = vmatpush.bf16.msra.mxu0 %v4576
    %5144 = vmatpush.bf16.msra.mxu0 %v4575
    %5145 = vmatpush.bf16.msra.mxu0 %v4574
    %5146 = vmatpush.bf16.msra.mxu0 %v4573
    %5147 = vmatpush.bf16.msra.mxu0 %v4572
    %5148 = vmatpush.bf16.msra.mxu0 %v4571
    %5149 = vmatpush.bf16.msra.mxu0 %v4570
    %5150 = vmatpush.bf16.msra.mxu0 %v4569
    %5151 = vmatmul.bf16.gmra.mxu0 %v4806
    %v5152 = vpop.f32.mrf.mxu0
    %v5153 = vadd.f32 %v5139, %v5152
    %v5154 = vpop.f32.mrf.mxu0
    %v5155 = vadd.f32 %v5141, %v5154
    %5156 = vdwg.mxu0
    %5157 = vmatpush.bf16.msra.mxu0 %v4584
    %5158 = vmatpush.bf16.msra.mxu0 %v4583
    %5159 = vmatpush.bf16.msra.mxu0 %v4582
    %5160 = vmatpush.bf16.msra.mxu0 %v4581
    %5161 = vmatpush.bf16.msra.mxu0 %v4580
    %5162 = vmatpush.bf16.msra.mxu0 %v4579
    %5163 = vmatpush.bf16.msra.mxu0 %v4578
    %5164 = vmatpush.bf16.msra.mxu0 %v4577
    %5165 = vmatmul.bf16.gmra.mxu0 %v4807
    %v5166 = vpop.f32.mrf.mxu0
    %v5167 = vadd.f32 %v5153, %v5166
    %v5168 = vpop.f32.mrf.mxu0
    %v5169 = vadd.f32 %v5155, %v5168
    %5170 = vdwg.mxu0
    %5171 = vmatpush.bf16.msra.mxu0 %v4592
    %5172 = vmatpush.bf16.msra.mxu0 %v4591
    %5173 = vmatpush.bf16.msra.mxu0 %v4590
    %5174 = vmatpush.bf16.msra.mxu0 %v4589
    %5175 = vmatpush.bf16.msra.mxu0 %v4588
    %5176 = vmatpush.bf16.msra.mxu0 %v4587
    %5177 = vmatpush.bf16.msra.mxu0 %v4586
    %5178 = vmatpush.bf16.msra.mxu0 %v4585
    %5179 = vmatmul.bf16.gmra.mxu0 %v4808
    %v5180 = vpop.f32.mrf.mxu0
    %v5181 = vadd.f32 %v5167, %v5180
    %v5182 = vpop.f32.mrf.mxu0
    %v5183 = vadd.f32 %v5169, %v5182
    %5184 = vdwg.mxu0
    %5185 = vmatpush.bf16.msra.mxu0 %v4600
    %5186 = vmatpush.bf16.msra.mxu0 %v4599
    %5187 = vmatpush.bf16.msra.mxu0 %v4598
    %5188 = vmatpush.bf16.msra.mxu0 %v4597
    %5189 = vmatpush.bf16.msra.mxu0 %v4596
    %5190 = vmatpush.bf16.msra.mxu0 %v4595
    %5191 = vmatpush.bf16.msra.mxu0 %v4594
    %5192 = vmatpush.bf16.msra.mxu0 %v4593
    %5193 = vmatmul.bf16.gmra.mxu0 %v4809
    %v5194 = vpop.f32.mrf.mxu0
    %v5195 = vadd.f32 %v5181, %v5194
    %v5196 = vpop.f32.mrf.mxu0
    %v5197 = vadd.f32 %v5183, %v5196
    %5198 = vdwg.mxu0
    %5199 = vmatpush.bf16.msra.mxu0 %v4608
    %5200 = vmatpush.bf16.msra.mxu0 %v4607
    %5201 = vmatpush.bf16.msra.mxu0 %v4606
    %5202 = vmatpush.bf16.msra.mxu0 %v4605
    %5203 = vmatpush.bf16.msra.mxu0 %v4604
    %5204 = vmatpush.bf16.msra.mxu0 %v4603
    %5205 = vmatpush.bf16.msra.mxu0 %v4602
    %5206 = vmatpush.bf16.msra.mxu0 %v4601
    %5207 = vmatmul.bf16.gmra.mxu0 %v4810
    %v5208 = vpop.f32.mrf.mxu0
    %v5209 = vadd.f32 %v5195, %v5208
    %v5210 = vpop.f32.mrf.mxu0
    %v5211 = vadd.f32 %v5197, %v5210
    %5212 = vdwg.mxu0
    %5213 = vmatpush.bf16.msra.mxu0 %v4616
    %5214 = vmatpush.bf16.msra.mxu0 %v4615
    %5215 = vmatpush.bf16.msra.mxu0 %v4614
    %5216 = vmatpush.bf16.msra.mxu0 %v4613
    %5217 = vmatpush.bf16.msra.mxu0 %v4612
    %5218 = vmatpush.bf16.msra.mxu0 %v4611
    %5219 = vmatpush.bf16.msra.mxu0 %v4610
    %5220 = vmatpush.bf16.msra.mxu0 %v4609
    %5221 = vmatmul.bf16.gmra.mxu0 %v4811
    %v5222 = vpop.f32.mrf.mxu0
    %v5223 = vadd.f32 %v5209, %v5222
    %v5224 = vpop.f32.mrf.mxu0
    %v5225 = vadd.f32 %v5211, %v5224
    %5226 = vdwg.mxu0
    %5227 = vmatpush.bf16.msra.mxu0 %v4624
    %5228 = vmatpush.bf16.msra.mxu0 %v4623
    %5229 = vmatpush.bf16.msra.mxu0 %v4622
    %5230 = vmatpush.bf16.msra.mxu0 %v4621
    %5231 = vmatpush.bf16.msra.mxu0 %v4620
    %5232 = vmatpush.bf16.msra.mxu0 %v4619
    %5233 = vmatpush.bf16.msra.mxu0 %v4618
    %5234 = vmatpush.bf16.msra.mxu0 %v4617
    %5235 = vmatmul.bf16.gmra.mxu0 %v4812
    %v5236 = vpop.f32.mrf.mxu0
    %v5237 = vadd.f32 %v5223, %v5236
    %v5238 = vpop.f32.mrf.mxu0
    %v5239 = vadd.f32 %v5225, %v5238
    %5240 = vdwg.mxu0
    %5241 = vmatpush.bf16.msra.mxu0 %v4632
    %5242 = vmatpush.bf16.msra.mxu0 %v4631
    %5243 = vmatpush.bf16.msra.mxu0 %v4630
    %5244 = vmatpush.bf16.msra.mxu0 %v4629
    %5245 = vmatpush.bf16.msra.mxu0 %v4628
    %5246 = vmatpush.bf16.msra.mxu0 %v4627
    %5247 = vmatpush.bf16.msra.mxu0 %v4626
    %5248 = vmatpush.bf16.msra.mxu0 %v4625
    %5249 = vmatmul.bf16.gmra.mxu0 %v4813
    %v5250 = vpop.f32.mrf.mxu0
    %v5251 = vadd.f32 %v5237, %v5250
    %v5252 = vpop.f32.mrf.mxu0
    %v5253 = vadd.f32 %v5239, %v5252
    %5254 = vdwg.mxu0
    %5255 = vmatpush.bf16.msra.mxu0 %v4640
    %5256 = vmatpush.bf16.msra.mxu0 %v4639
    %5257 = vmatpush.bf16.msra.mxu0 %v4638
    %5258 = vmatpush.bf16.msra.mxu0 %v4637
    %5259 = vmatpush.bf16.msra.mxu0 %v4636
    %5260 = vmatpush.bf16.msra.mxu0 %v4635
    %5261 = vmatpush.bf16.msra.mxu0 %v4634
    %5262 = vmatpush.bf16.msra.mxu0 %v4633
    %5263 = vmatmul.bf16.gmra.mxu0 %v4814
    %v5264 = vpop.f32.mrf.mxu0
    %v5265 = vadd.f32 %v5251, %v5264
    %v5266 = vpop.f32.mrf.mxu0
    %v5267 = vadd.f32 %v5253, %v5266
    %5268 = vdwg.mxu0
    %5269 = vmatpush.bf16.msra.mxu0 %v4648
    %5270 = vmatpush.bf16.msra.mxu0 %v4647
    %5271 = vmatpush.bf16.msra.mxu0 %v4646
    %5272 = vmatpush.bf16.msra.mxu0 %v4645
    %5273 = vmatpush.bf16.msra.mxu0 %v4644
    %5274 = vmatpush.bf16.msra.mxu0 %v4643
    %5275 = vmatpush.bf16.msra.mxu0 %v4642
    %5276 = vmatpush.bf16.msra.mxu0 %v4641
    %5277 = vmatmul.bf16.gmra.mxu0 %v4815
    %v5278 = vpop.f32.mrf.mxu0
    %v5279 = vadd.f32 %v5265, %v5278
    %v5280 = vpop.f32.mrf.mxu0
    %v5281 = vadd.f32 %v5267, %v5280
    %5282 = vdwg.mxu0
    %5283 = vmatpush.bf16.msra.mxu0 %v4656
    %5284 = vmatpush.bf16.msra.mxu0 %v4655
    %5285 = vmatpush.bf16.msra.mxu0 %v4654
    %5286 = vmatpush.bf16.msra.mxu0 %v4653
    %5287 = vmatpush.bf16.msra.mxu0 %v4652
    %5288 = vmatpush.bf16.msra.mxu0 %v4651
    %5289 = vmatpush.bf16.msra.mxu0 %v4650
    %5290 = vmatpush.bf16.msra.mxu0 %v4649
    %5291 = vmatmul.bf16.gmra.mxu0 %v4816
    %v5292 = vpop.f32.mrf.mxu0
    %v5293 = vadd.f32 %v5279, %v5292
    %v5294 = vpop.f32.mrf.mxu0
    %v5295 = vadd.f32 %v5281, %v5294
    %5296 = vdwg.mxu0
    %v5297 = vpack.c.bf16 %v5293, %v5293
    %v5298 = vpack.c.bf16 %v5295, %v5295
    %5299 = vst [vmem:[#allocation2] sm:$0xf] %v5297
    %5300 = vst [vmem:[#allocation2 + $0x4] sm:$0xf] %v5298
    // Predicated region
    $region18: #{tpu_custom_call.1} parent=1 // pred_check
      _
    $region19: #{tpu_custom_call.1} parent=1 // pred_check_branch
      %5302 = sbr.rel (0) target = $region21
    $region20: #{tpu_custom_call.1} parent=1 // pred_region
      %5304 = vsyncadd [#allocation3], 0
      %s5305 = sshll.u32 [#allocation2], 4
      %s5306 = int_to_ptr.vmem [resolvable:$true] %s5305
      %s5307 = sshll.u32 %s4, 4
      %s5308 = int_to_ptr.hbm [resolvable:$true] %s5307
      %5313 = dma.vmem_to_hbm [thread:$0]  %s5306, 128, %s5308, [#allocation3], 64, 64, 4
    $region21: #{tpu_custom_call.1} parent=1 // pred_fallthru
      _
    // Predicated region
    $region22: #{tpu_custom_call.1} parent=1 // pred_check
      _
    $region23: #{tpu_custom_call.1} parent=1 // pred_check_branch
      %5315 = sbr.rel (0) target = $region25
    $region24: #{tpu_custom_call.1} parent=1 // pred_region
      %5317 = dma.done [#allocation3], 128
    $region25: #{tpu_custom_call.1} parent=1 // pred_fallthru
      _
    %5318 = vsyncpa [#allocation3], 1

</llo_original>
